<compile_context>
chip_gen: v7x
topology: tpu7x:2x2x1
jax: 0.10.0
libtpu: 0.0.40
codegen_flags: <defaults>
</compile_context>

<pallas_src>
import functools

import jax
import jax.numpy as jnp
from jax.experimental import pallas as pl
from jax.experimental.pallas import tpu as pltpu


# ------------------------------------------------------------------------------ kernels

def _gemm_bias_elu_kernel(x_ref, w_ref, b_ref, o_ref):
    # x_ref: (tile_m, K) bf16, w_ref: (K, N) bf16, b_ref: (1, N) f32, o_ref: (tile_m, N)
    acc = jnp.dot(x_ref[...], w_ref[...], preferred_element_type=jnp.float32)
    acc = acc + b_ref[...]
    # ELU(alpha=1); no clamp needed: the select never propagates exp() of the untaken branch.
    acc = jnp.where(acc > 0.0, acc, jnp.exp(acc) - 1.0)
    o_ref[...] = acc.astype(o_ref.dtype)


def _conv3_fc_kernel(p_ref, w3_ref, b3_ref, wfc_ref, bfc_ref, o_ref, *, batch):
    # p_ref: (B*16, 2048) bf16, w3_ref: (2048, 256) bf16, b3_ref: (1, 256) f32,
    # wfc_ref: (16, 256) f32 (NHWC-permuted FC weight), bfc_ref: (1, 1) f32, o_ref: (B, 1) f32
    acc = jnp.dot(p_ref[...], w3_ref[...], preferred_element_type=jnp.float32)   # (B*16, 256)
    acc = acc + b3_ref[...]
    a3 = jnp.where(acc > 0.0, acc, jnp.exp(acc) - 1.0)                           # ELU
    hw, c = wfc_ref.shape                                                        # (16, 256)
    a3 = a3.reshape(batch, hw, c)
    prod = a3 * wfc_ref[...].reshape(1, hw, c)
    s = jnp.sum(prod, axis=2)                       # (B, 16)  reduce over lanes
    fc = jnp.sum(s, axis=1, keepdims=True)          # (B, 1)
    o_ref[...] = fc + bfc_ref[...]


# ------------------------------------------------------------------------------ wrappers

def gemm_bias_elu(x, w, b, *, tile_m, out_dtype=jnp.bfloat16):
    """out = ELU(x @ w + b); rows tiled, bf16 operands, f32 accumulate."""
    M, K = x.shape
    N = w.shape[1]
    mp = ((M + tile_m - 1) // tile_m) * tile_m
    if mp != M:                      # pad M instead of collapsing to one giant block (v7x VMEM)
        x = jnp.pad(x, ((0, mp - M), (0, 0)))
    out = pl.pallas_call(
        _gemm_bias_elu_kernel,
        out_shape=jax.ShapeDtypeStruct((mp, N), out_dtype),
        grid=(mp // tile_m,),
        in_specs=[
            pl.BlockSpec((tile_m, K), lambda i: (i, 0)),
            pl.BlockSpec((K, N), lambda i: (0, 0)),
            pl.BlockSpec((1, N), lambda i: (0, 0)),
        ],
        out_specs=pl.BlockSpec((tile_m, N), lambda i: (i, 0)),
        compiler_params=pltpu.CompilerParams(dimension_semantics=("parallel",)),
    )(x, w, b)
    return out[:M] if mp != M else out


def conv3_fc(col, w3, b3, wfc, bfc, batch):
    """conv3 GEMM + bias + ELU with the Linear(4096,1) folded in as an epilogue."""
    M, K = col.shape                                # (B*16, 2048)
    N = w3.shape[1]                                 # 256
    return pl.pallas_call(
        functools.partial(_conv3_fc_kernel, batch=batch),
        out_shape=jax.ShapeDtypeStruct((batch, 1), jnp.float32),
        grid=(1,),
        in_specs=[
            pl.BlockSpec((M, K), lambda i: (0, 0)),
            pl.BlockSpec((K, N), lambda i: (0, 0)),
            pl.BlockSpec((1, N), lambda i: (0, 0)),
            pl.BlockSpec((16, N), lambda i: (0, 0)),
            pl.BlockSpec((1, 1), lambda i: (0, 0)),
        ],
        out_specs=pl.BlockSpec((batch, 1), lambda i: (0, 0)),
        compiler_params=pltpu.CompilerParams(dimension_semantics=("arbitrary",)),
    )(col, w3, b3, wfc, bfc)


# ----------------------------------------------------------------------------------- glue

def im2col_nhwc(x, kh, kw, stride, pad):
    """x: (B, H, W, C) -> (B*Ho*Wo, kh*kw*C), column order (i, j, c) to match HWIO flatten.

    No transposes: NHWC taps concatenate along the channel (lane) axis."""
    B, H, W, C = x.shape
    xp = jnp.pad(x, ((0, 0), (pad, pad), (pad, pad), (0, 0)))
    Ho = (H + 2 * pad - kh) // stride + 1
    Wo = (W + 2 * pad - kw) // stride + 1
    slabs = [xp[:, i:i + stride * Ho:stride, j:j + stride * Wo:stride, :]
             for i in range(kh) for j in range(kw)]
    col = jnp.concatenate(slabs, axis=-1)           # (B, Ho, Wo, kh*kw*C)
    return col.reshape(B * Ho * Wo, kh * kw * C), Ho, Wo


def spectral_normalize(w2d, n_iter=50, eps=1e-12):
    """w2d: (out, in). Divide by the largest singular value (deterministic power iteration).
    (PyTorch runs 1 iteration per forward with a persisted u; this is the converged fixed point.)"""
    u = jnp.full((w2d.shape[0],), 1.0, jnp.float32)
    u = u / jnp.linalg.norm(u)
    v = None
    for _ in range(n_iter):
        v = w2d.T @ u
        v = v / (jnp.linalg.norm(v) + eps)
        u = w2d @ v
        u = u / (jnp.linalg.norm(u) + eps)
    sigma = u @ (w2d @ v)
    return w2d / sigma


def init_params(key):
    """Synthetic params matching the PyTorch module; returns (kernel-format, reference-format)."""
    ks = jax.random.split(key, 8)

    def conv_init(kw_, kb_, cout, cin, k):
        fan_in = cin * k * k
        bound = 1.0 / jnp.sqrt(fan_in)
        w = jax.random.uniform(kw_, (cout, cin, k, k), jnp.float32, -bound, bound)
        b = jax.random.uniform(kb_, (cout,), jnp.float32, -bound, bound)
        return w, b

    w1, b1 = conv_init(ks[0], ks[1], 64, 3, 4)
    w2, b2 = conv_init(ks[2], ks[3], 128, 64, 4)
    w3, b3 = conv_init(ks[4], ks[5], 256, 128, 4)
    bound = 1.0 / jnp.sqrt(4096.0)
    wfc = jax.random.uniform(ks[6], (1, 4096), jnp.float32, -bound, bound)
    bfc = jax.random.uniform(ks[7], (1,), jnp.float32, -bound, bound)

    def sn(w):                                   # spectral norm on weight.view(out, -1), as PyTorch
        cout = w.shape[0]
        return spectral_normalize(w.reshape(cout, -1)).reshape(w.shape)

    w1n, w2n, w3n = sn(w1), sn(w2), sn(w3)
    ref = dict(w1=w1n, b1=b1, w2=w2n, b2=b2, w3=w3n, b3=b3, wfc=wfc, bfc=bfc)

    def to_kernel(w_oihw, cin_pad, cout_pad):
        cout, cin, kh, kw = w_oihw.shape
        w = w_oihw.transpose(2, 3, 1, 0)                                   # HWIO
        w = jnp.pad(w, ((0, 0), (0, 0), (0, cin_pad - cin), (0, cout_pad - cout)))
        return w.reshape(kh * kw * cin_pad, cout_pad).astype(jnp.bfloat16)  # (K, N)

    kparams = dict(
        w1=to_kernel(w1n, 8, 128),                  # K = 4*4*8 = 128, N padded 64->128
        b1=jnp.pad(b1, (0, 64)).reshape(1, 128),
        w2=to_kernel(w2n, 128, 128),                # K = 4*4*128 = 2048 (zero rows for padded ch)
        b2=b2.reshape(1, 128),
        w3=to_kernel(w3n, 128, 256),                # K = 2048, N = 256
        b3=b3.reshape(1, 256),
        # FC weight permuted from torch NCHW-flatten order (c,h,w) to NHWC order (h,w,c):
        wfc=wfc.reshape(256, 4, 4).transpose(1, 2, 0).reshape(16, 256),
        bfc=bfc.reshape(1, 1),
    )
    return kparams, ref


def discriminator_forward(x_nchw, p):
    """x: (B, 3, 32, 32) NCHW f32. Returns (B, 1) f32."""
    B = x_nchw.shape[0]
    x = jnp.transpose(x_nchw, (0, 2, 3, 1))                 # one tiny input transpose, NHWC after
    x = jnp.pad(x, ((0, 0), (0, 0), (0, 0), (0, 5)))        # channels 3 -> 8 (lane-dense K=128)
    x = x.astype(jnp.bfloat16)

    col, Ho, Wo = im2col_nhwc(x, 4, 4, 2, 1)                # (B*256, 128)
    a1 = gemm_bias_elu(col, p["w1"], p["b1"], tile_m=256)   # (B*256, 128) bf16 (ch 64..127 = 0)
    a1 = a1.reshape(B, Ho, Wo, 128)

    col, Ho, Wo = im2col_nhwc(a1, 4, 4, 2, 1)               # (B*64, 2048)
    a2 = gemm_bias_elu(col, p["w2"], p["b2"], tile_m=64)    # (B*64, 128) bf16
    a2 = a2.reshape(B, Ho, Wo, 128)

    col, Ho, Wo = im2col_nhwc(a2, 4, 4, 2, 1)               # (B*16, 2048)
    out = conv3_fc(col, p["w3"], p["b3"], p["wfc"], p["bfc"], B)   # (B, 1) f32
    return out


# ------------------------------------------------------------------------------ reference

def _ref_forward(x, rp):
    def conv(x_, w, b):
        y = jax.lax.conv_general_dilated(
            x_, w, (2, 2), [(1, 1), (1, 1)],
            dimension_numbers=("NCHW", "OIHW", "NCHW"))
        return y + b[None, :, None, None]

    def elu(v):
        return jnp.where(v > 0, v, jnp.exp(jnp.minimum(v, 0.0)) - 1.0)

    x = elu(conv(x, rp["w1"], rp["b1"]))
    x = elu(conv(x, rp["w2"], rp["b2"]))
    x = elu(conv(x, rp["w3"], rp["b3"]))
    x = x.reshape(x.shape[0], -1)
    return x @ rp["wfc"].T + rp["bfc"][None, :]


# ------------------------------------------------------------------------------------ main

if __name__ == "__main__":
    key = jax.random.PRNGKey(0)
    kx, kp = jax.random.split(key)
    # fc expects 4096 = 256*4*4 features => spatial 32x32; batch = 2.
    x = jax.random.normal(kx, (2, 3, 32, 32), jnp.float32)
    kparams, refparams = init_params(kp)

    fwd = jax.jit(discriminator_forward)
    out = jax.block_until_ready(fwd(x, kparams))
    assert out.shape == (2, 1), out.shape

    ref = _ref_forward(x, refparams)
    # bf16 GEMM operands with f32 accumulation vs f32 reference -> loose-ish tolerance.
    assert jnp.allclose(out, ref, rtol=2e-2, atol=2e-2), (out, ref)

    print("KERNEL_OK")
</pallas_src>

<mosaic_0001>
module attributes {stable_mosaic.version = 11 : i64} {
  func.func @_gemm_bias_elu_kernel(%arg0: i32, %arg1: memref<256x128xbf16, #tpu.memory_space<vmem>>, %arg2: memref<128x128xbf16, #tpu.memory_space<vmem>>, %arg3: memref<1x128xf32, #tpu.memory_space<vmem>>, %arg4: memref<256x128xbf16, #tpu.memory_space<vmem>>) attributes {dimension_semantics = [#tpu.dimension_semantics<parallel>], iteration_bounds = array<i64: 2>, scalar_prefetch = 0 : i64, scratch_operands = 0 : i64, tpu.core_type = #tpu.core_type<tc>, window_params = [{transform_indices = @transform_0, window_bounds = array<i64: 256, 128>}, {pipeline_mode = #tpu.pipeline_mode<synchronous>, transform_indices = @transform_1, window_bounds = array<i64: 128, 128>}, {pipeline_mode = #tpu.pipeline_mode<synchronous>, transform_indices = @transform_2, window_bounds = array<i64: 1, 128>}, {transform_indices = @transform_3, window_bounds = array<i64: 256, 128>}]} {
    %c0 = arith.constant 0 : index
    %c0_0 = arith.constant 0 : index
    %0 = vector.load %arg1[%c0, %c0_0] : memref<256x128xbf16, #tpu.memory_space<vmem>>, vector<256x128xbf16>
    %c0_1 = arith.constant 0 : index
    %c0_2 = arith.constant 0 : index
    %1 = vector.load %arg2[%c0_1, %c0_2] : memref<128x128xbf16, #tpu.memory_space<vmem>>, vector<128x128xbf16>
    %cst = arith.constant dense<0.000000e+00> : vector<256x128xf32>
    %2 = tpu.matmul %0, %1, %cst {dimension_numbers = #tpu.dot_dimension_numbers<[1], [0], [0], [1], [0, 0, 1, 1], [], []>} : vector<256x128xbf16>, vector<128x128xbf16>, vector<256x128xf32> -> vector<256x128xf32>
    %c0_3 = arith.constant 0 : index
    %c0_4 = arith.constant 0 : index
    %3 = vector.load %arg3[%c0_3, %c0_4] : memref<1x128xf32, #tpu.memory_space<vmem>>, vector<1x128xf32>
    %4 = vector.broadcast %3 : vector<1x128xf32> to vector<256x128xf32>
    %5 = arith.addf %2, %4 : vector<256x128xf32>
    %cst_5 = arith.constant 0.000000e+00 : f32
    %6 = vector.broadcast %cst_5 : f32 to vector<256x128xf32>
    %7 = arith.cmpf ogt, %5, %6 : vector<256x128xf32>
    %8 = math.exp %5 : vector<256x128xf32>
    %cst_6 = arith.constant 1.000000e+00 : f32
    %9 = vector.broadcast %cst_6 : f32 to vector<256x128xf32>
    %10 = arith.subf %8, %9 : vector<256x128xf32>
    %11 = arith.select %7, %5, %10 : vector<256x128xi1>, vector<256x128xf32>
    %12 = arith.truncf %11 : vector<256x128xf32> to vector<256x128xbf16>
    %c0_7 = arith.constant 0 : index
    %c0_8 = arith.constant 0 : index
    %13 = vector.load %arg4[%c0_7, %c0_8] : memref<256x128xbf16, #tpu.memory_space<vmem>>, vector<256x128xbf16>
    tpu.vector_store %arg4[%c0_7, %c0_8], %12 {strides = array<i32>} : memref<256x128xbf16, #tpu.memory_space<vmem>>, vector<256x128xbf16>,
    return
  }
  func.func @transform_0(%arg0: i32) -> (i32, i32) {
    %c0_i32 = arith.constant 0 : i32
    %c0_i32_0 = arith.constant 0 : i32
    return %arg0, %c0_i32 : i32, i32
  }
  func.func @transform_1(%arg0: i32) -> (i32, i32) {
    %c0_i32 = arith.constant 0 : i32
    %c0_i32_0 = arith.constant 0 : i32
    %c0_i32_1 = arith.constant 0 : i32
    return %c0_i32, %c0_i32_0 : i32, i32
  }
  func.func @transform_2(%arg0: i32) -> (i32, i32) {
    %c0_i32 = arith.constant 0 : i32
    %c0_i32_0 = arith.constant 0 : i32
    %c0_i32_1 = arith.constant 0 : i32
    return %c0_i32, %c0_i32_0 : i32, i32
  }
  func.func @transform_3(%arg0: i32) -> (i32, i32) {
    %c0_i32 = arith.constant 0 : i32
    %c0_i32_0 = arith.constant 0 : i32
    return %arg0, %c0_i32 : i32, i32
  }
}

module attributes {stable_mosaic.version = 11 : i64} {
  func.func @_gemm_bias_elu_kernel(%arg0: i32, %arg1: memref<64x2048xbf16, #tpu.memory_space<vmem>>, %arg2: memref<2048x128xbf16, #tpu.memory_space<vmem>>, %arg3: memref<1x128xf32, #tpu.memory_space<vmem>>, %arg4: memref<64x128xbf16, #tpu.memory_space<vmem>>) attributes {dimension_semantics = [#tpu.dimension_semantics<parallel>], iteration_bounds = array<i64: 2>, scalar_prefetch = 0 : i64, scratch_operands = 0 : i64, tpu.core_type = #tpu.core_type<tc>, window_params = [{transform_indices = @transform_0, window_bounds = array<i64: 64, 2048>}, {pipeline_mode = #tpu.pipeline_mode<synchronous>, transform_indices = @transform_1, window_bounds = array<i64: 2048, 128>}, {pipeline_mode = #tpu.pipeline_mode<synchronous>, transform_indices = @transform_2, window_bounds = array<i64: 1, 128>}, {transform_indices = @transform_3, window_bounds = array<i64: 64, 128>}]} {
    %c0 = arith.constant 0 : index
    %c0_0 = arith.constant 0 : index
    %0 = vector.load %arg1[%c0, %c0_0] : memref<64x2048xbf16, #tpu.memory_space<vmem>>, vector<64x2048xbf16>
    %c0_1 = arith.constant 0 : index
    %c0_2 = arith.constant 0 : index
    %1 = vector.load %arg2[%c0_1, %c0_2] : memref<2048x128xbf16, #tpu.memory_space<vmem>>, vector<2048x128xbf16>
    %cst = arith.constant dense<0.000000e+00> : vector<64x128xf32>
    %2 = tpu.matmul %0, %1, %cst {dimension_numbers = #tpu.dot_dimension_numbers<[1], [0], [0], [1], [0, 0, 1, 1], [], []>} : vector<64x2048xbf16>, vector<2048x128xbf16>, vector<64x128xf32> -> vector<64x128xf32>
    %c0_3 = arith.constant 0 : index
    %c0_4 = arith.constant 0 : index
    %3 = vector.load %arg3[%c0_3, %c0_4] : memref<1x128xf32, #tpu.memory_space<vmem>>, vector<1x128xf32>
    %4 = vector.broadcast %3 : vector<1x128xf32> to vector<64x128xf32>
    %5 = arith.addf %2, %4 : vector<64x128xf32>
    %cst_5 = arith.constant 0.000000e+00 : f32
    %6 = vector.broadcast %cst_5 : f32 to vector<64x128xf32>
    %7 = arith.cmpf ogt, %5, %6 : vector<64x128xf32>
    %8 = math.exp %5 : vector<64x128xf32>
    %cst_6 = arith.constant 1.000000e+00 : f32
    %9 = vector.broadcast %cst_6 : f32 to vector<64x128xf32>
    %10 = arith.subf %8, %9 : vector<64x128xf32>
    %11 = arith.select %7, %5, %10 : vector<64x128xi1>, vector<64x128xf32>
    %12 = arith.truncf %11 : vector<64x128xf32> to vector<64x128xbf16>
    %c0_7 = arith.constant 0 : index
    %c0_8 = arith.constant 0 : index
    %13 = vector.load %arg4[%c0_7, %c0_8] : memref<64x128xbf16, #tpu.memory_space<vmem>>, vector<64x128xbf16>
    tpu.vector_store %arg4[%c0_7, %c0_8], %12 {strides = array<i32>} : memref<64x128xbf16, #tpu.memory_space<vmem>>, vector<64x128xbf16>,
    return
  }
  func.func @transform_0(%arg0: i32) -> (i32, i32) {
    %c0_i32 = arith.constant 0 : i32
    %c0_i32_0 = arith.constant 0 : i32
    return %arg0, %c0_i32 : i32, i32
  }
  func.func @transform_1(%arg0: i32) -> (i32, i32) {
    %c0_i32 = arith.constant 0 : i32
    %c0_i32_0 = arith.constant 0 : i32
    %c0_i32_1 = arith.constant 0 : i32
    return %c0_i32, %c0_i32_0 : i32, i32
  }
  func.func @transform_2(%arg0: i32) -> (i32, i32) {
    %c0_i32 = arith.constant 0 : i32
    %c0_i32_0 = arith.constant 0 : i32
    %c0_i32_1 = arith.constant 0 : i32
    return %c0_i32, %c0_i32_0 : i32, i32
  }
  func.func @transform_3(%arg0: i32) -> (i32, i32) {
    %c0_i32 = arith.constant 0 : i32
    %c0_i32_0 = arith.constant 0 : i32
    return %arg0, %c0_i32 : i32, i32
  }
}

module attributes {stable_mosaic.version = 11 : i64} {
  func.func @_conv3_fc_kernel(%arg0: i32, %arg1: memref<32x2048xbf16, #tpu.memory_space<vmem>>, %arg2: memref<2048x256xbf16, #tpu.memory_space<vmem>>, %arg3: memref<1x256xf32, #tpu.memory_space<vmem>>, %arg4: memref<16x256xf32, #tpu.memory_space<vmem>>, %arg5: memref<1x1xf32, #tpu.memory_space<vmem>>, %arg6: memref<2x1xf32, #tpu.memory_space<vmem>>) attributes {dimension_semantics = [#tpu.dimension_semantics<arbitrary>], iteration_bounds = array<i64: 1>, scalar_prefetch = 0 : i64, scratch_operands = 0 : i64, tpu.core_type = #tpu.core_type<tc>, window_params = [{pipeline_mode = #tpu.pipeline_mode<synchronous>, transform_indices = @transform_0, window_bounds = array<i64: 32, 2048>}, {pipeline_mode = #tpu.pipeline_mode<synchronous>, transform_indices = @transform_1, window_bounds = array<i64: 2048, 256>}, {pipeline_mode = #tpu.pipeline_mode<synchronous>, transform_indices = @transform_2, window_bounds = array<i64: 1, 256>}, {pipeline_mode = #tpu.pipeline_mode<synchronous>, transform_indices = @transform_3, window_bounds = array<i64: 16, 256>}, {pipeline_mode = #tpu.pipeline_mode<synchronous>, transform_indices = @transform_4, window_bounds = array<i64: 1, 1>}, {pipeline_mode = #tpu.pipeline_mode<synchronous>, transform_indices = @transform_5, window_bounds = array<i64: 2, 1>}]} {
    %c0 = arith.constant 0 : index
    %c0_0 = arith.constant 0 : index
    %0 = vector.load %arg1[%c0, %c0_0] : memref<32x2048xbf16, #tpu.memory_space<vmem>>, vector<32x2048xbf16>
    %c0_1 = arith.constant 0 : index
    %c0_2 = arith.constant 0 : index
    %1 = vector.load %arg2[%c0_1, %c0_2] : memref<2048x256xbf16, #tpu.memory_space<vmem>>, vector<2048x256xbf16>
    %cst = arith.constant dense<0.000000e+00> : vector<32x256xf32>
    %2 = tpu.matmul %0, %1, %cst {dimension_numbers = #tpu.dot_dimension_numbers<[1], [0], [0], [1], [0, 0, 1, 1], [], []>} : vector<32x2048xbf16>, vector<2048x256xbf16>, vector<32x256xf32> -> vector<32x256xf32>
    %c0_3 = arith.constant 0 : index
    %c0_4 = arith.constant 0 : index
    %3 = vector.load %arg3[%c0_3, %c0_4] : memref<1x256xf32, #tpu.memory_space<vmem>>, vector<1x256xf32>
    %4 = vector.broadcast %3 : vector<1x256xf32> to vector<32x256xf32>
    %5 = arith.addf %2, %4 : vector<32x256xf32>
    %cst_5 = arith.constant 0.000000e+00 : f32
    %6 = vector.broadcast %cst_5 : f32 to vector<32x256xf32>
    %7 = arith.cmpf ogt, %5, %6 : vector<32x256xf32>
    %8 = math.exp %5 : vector<32x256xf32>
    %cst_6 = arith.constant 1.000000e+00 : f32
    %9 = vector.broadcast %cst_6 : f32 to vector<32x256xf32>
    %10 = arith.subf %8, %9 : vector<32x256xf32>
    %11 = arith.select %7, %5, %10 : vector<32x256xi1>, vector<32x256xf32>
    %12 = vector.shape_cast %11 : vector<32x256xf32> to vector<2x16x256xf32>
    %c0_7 = arith.constant 0 : index
    %c0_8 = arith.constant 0 : index
    %13 = vector.load %arg4[%c0_7, %c0_8] : memref<16x256xf32, #tpu.memory_space<vmem>>, vector<16x256xf32>
    %14 = vector.shape_cast %13 : vector<16x256xf32> to vector<1x16x256xf32>
    %15 = vector.broadcast %14 : vector<1x16x256xf32> to vector<2x16x256xf32>
    %16 = arith.mulf %12, %15 : vector<2x16x256xf32>
    %cst_9 = arith.constant dense<0.000000e+00> : vector<2x16xf32>
    %17 = vector.multi_reduction <add>, %16, %cst_9 [2] : vector<2x16x256xf32> to vector<2x16xf32>
    %cst_10 = arith.constant dense<0.000000e+00> : vector<2xf32>
    %18 = vector.multi_reduction <add>, %17, %cst_10 [1] : vector<2x16xf32> to vector<2xf32>
    %19 = vector.shape_cast %18 : vector<2xf32> to vector<2x1xf32>
    %c0_11 = arith.constant 0 : index
    %c0_12 = arith.constant 0 : index
    %20 = vector.load %arg5[%c0_11, %c0_12] : memref<1x1xf32, #tpu.memory_space<vmem>>, vector<1x1xf32>
    %21 = vector.broadcast %20 : vector<1x1xf32> to vector<2x1xf32>
    %22 = arith.addf %19, %21 : vector<2x1xf32>
    %c0_13 = arith.constant 0 : index
    %c0_14 = arith.constant 0 : index
    %23 = vector.load %arg6[%c0_13, %c0_14] : memref<2x1xf32, #tpu.memory_space<vmem>>, vector<2x1xf32>
    tpu.vector_store %arg6[%c0_13, %c0_14], %22 {strides = array<i32>} : memref<2x1xf32, #tpu.memory_space<vmem>>, vector<2x1xf32>,
    return
  }
  func.func @transform_0(%arg0: i32) -> (i32, i32) {
    %c0_i32 = arith.constant 0 : i32
    %c0_i32_0 = arith.constant 0 : i32
    %c0_i32_1 = arith.constant 0 : i32
    return %c0_i32, %c0_i32_0 : i32, i32
  }
  func.func @transform_1(%arg0: i32) -> (i32, i32) {
    %c0_i32 = arith.constant 0 : i32
    %c0_i32_0 = arith.constant 0 : i32
    %c0_i32_1 = arith.constant 0 : i32
    return %c0_i32, %c0_i32_0 : i32, i32
  }
  func.func @transform_2(%arg0: i32) -> (i32, i32) {
    %c0_i32 = arith.constant 0 : i32
    %c0_i32_0 = arith.constant 0 : i32
    %c0_i32_1 = arith.constant 0 : i32
    return %c0_i32, %c0_i32_0 : i32, i32
  }
  func.func @transform_3(%arg0: i32) -> (i32, i32) {
    %c0_i32 = arith.constant 0 : i32
    %c0_i32_0 = arith.constant 0 : i32
    %c0_i32_1 = arith.constant 0 : i32
    return %c0_i32, %c0_i32_0 : i32, i32
  }
  func.func @transform_4(%arg0: i32) -> (i32, i32) {
    %c0_i32 = arith.constant 0 : i32
    %c0_i32_0 = arith.constant 0 : i32
    %c0_i32_1 = arith.constant 0 : i32
    return %c0_i32, %c0_i32_0 : i32, i32
  }
  func.func @transform_5(%arg0: i32) -> (i32, i32) {
    %c0_i32 = arith.constant 0 : i32
    %c0_i32_0 = arith.constant 0 : i32
    %c0_i32_1 = arith.constant 0 : i32
    return %c0_i32, %c0_i32_0 : i32, i32
  }
}

</mosaic_0001>

<llo_original>
// kernel: discriminator_forward.3
$region0: #{discriminator_forward.3}
  #allocation0 [shape = 'u32[]', space=smem, size = 0x4, offset = 0x4, fixed_abs, tag = 'smem constant byte address 0x4 - core index']
  #allocation1 [shape = 'u32[144,128]{1,0:T(1,128)}', space=vmem, size = 0x12000, scoped, tag = 'internal scratch']
  %s0 = inlined_call_operand.vmem [shape: bf16[512,128], index: 0, kind: input, shape index: {}]
  %s1 = inlined_call_operand.vmem [shape: bf16[128,128], index: 1, kind: input, shape index: {}]
  %s2 = inlined_call_operand.vmem [shape: f32[1,128], index: 2, kind: input, shape index: {}]
  %s3 = inlined_call_operand.vmem [shape: bf16[512,128], index: 3, kind: output, shape index: {}]
  %s4 = sld [smem:[#allocation0]]
  $region45: #{discriminator_forward.3} parent=0
    _
  %s6 = ssub.s32 1, %s4
  %s7 = scalar_select 0, %s6, %s4
  loop: start=0, step=1, limit=4
  $region2: #{discriminator_forward.3} parent=0 // loop_pre_header
    _
  $region3: #{discriminator_forward.3} parent=0 // loop_header
    %s9 = sphi 0, %s13
    %p10 = scmp.ge.s32.totalorder %s9, 4
    %s19 = sphi 0, %s21
    %s22 = sphi 0, %s19
    %s23 = sphi 0, %s22
    %s39 = sphi 0, %s23
    %s43 = sphi 0, %s43
    %s45 = sphi 0, %s43
    %s46 = sphi 0, %s45
    %s60 = sphi 0, %s46
    %s64 = sphi 0, %s64
    %s66 = sphi 0, %s64
    %s67 = sphi 0, %s66
    %s81 = sphi 0, %s67
    %s87 = sphi 0, %s89
    %s90 = sphi 0, %s87
    %s91 = sphi 0, %s90
    %s107 = sphi 0, %s91
  $region4: #{discriminator_forward.3} parent=0 // loop_header_branch
    %12 = sbr.rel (%p10) target = $region8
  $region5: #{discriminator_forward.3} parent=0 // loop_body
    %s14 = ssub.s32 %s9, 1
    %s15 = ssub.s32 %s9, 2
    %s16 = sadd.s32 %s9, 1
    %s17 = ssub.s32 %s9, %s16
    %p18 = scmp.eq.s32.totalorder %s17, 0
    %s20 = sadd.s32 %s19, 1
    %s21 = scalar_select %p18, %s19, %s20
    %p24 = pneg %p18
    %p25 = scmp.eq.s32.totalorder %s9, 1
    %p26 = por %p24, %p25
    %p27 = scmp.ne.s32.totalorder %s19, %s22
    %p28 = scmp.eq.s32.totalorder %s9, 0
    %p29 = por %p27, %p28
    %p30 = scmp.ne.s32.totalorder %s19, %s22
    %p31 = scmp.eq.s32.totalorder %s14, 1
    %p32 = por %p30, %p31
    %p33 = scmp.ne.s32.totalorder %s22, %s23
    %p34 = scmp.eq.s32.totalorder %s14, 0
    %p35 = por %p33, %p34
    %p36 = scmp.ne.s32.totalorder %s22, %s23
    %p37 = scmp.eq.s32.totalorder %s15, 1
    %p38 = por %p36, %p37
    %p40 = scmp.ne.s32.totalorder %s23, %s39
    %p41 = scmp.eq.s32.totalorder %s15, 0
    %p42 = por %p40, %p41
    %s44 = sadd.s32 %s43, 1
    %p47 = scmp.eq.s32.totalorder %s9, 1
    %p48 = scmp.ne.s32.totalorder %s43, %s45
    %p49 = scmp.eq.s32.totalorder %s9, 0
    %p50 = por %p48, %p49
    %p51 = scmp.ne.s32.totalorder %s43, %s45
    %p52 = scmp.eq.s32.totalorder %s14, 1
    %p53 = por %p51, %p52
    %p54 = scmp.ne.s32.totalorder %s45, %s46
    %p55 = scmp.eq.s32.totalorder %s14, 0
    %p56 = por %p54, %p55
    %p57 = scmp.ne.s32.totalorder %s45, %s46
    %p58 = scmp.eq.s32.totalorder %s15, 1
    %p59 = por %p57, %p58
    %p61 = scmp.ne.s32.totalorder %s46, %s60
    %p62 = scmp.eq.s32.totalorder %s15, 0
    %p63 = por %p61, %p62
    %s65 = sadd.s32 %s64, 1
    %p68 = scmp.eq.s32.totalorder %s9, 1
    %p69 = scmp.ne.s32.totalorder %s64, %s66
    %p70 = scmp.eq.s32.totalorder %s9, 0
    %p71 = por %p69, %p70
    %p72 = scmp.ne.s32.totalorder %s64, %s66
    %p73 = scmp.eq.s32.totalorder %s14, 1
    %p74 = por %p72, %p73
    %p75 = scmp.ne.s32.totalorder %s66, %s67
    %p76 = scmp.eq.s32.totalorder %s14, 0
    %p77 = por %p75, %p76
    %p78 = scmp.ne.s32.totalorder %s66, %s67
    %p79 = scmp.eq.s32.totalorder %s15, 1
    %p80 = por %p78, %p79
    %p82 = scmp.ne.s32.totalorder %s67, %s81
    %p83 = scmp.eq.s32.totalorder %s15, 0
    %p84 = por %p82, %p83
    %s85 = ssub.s32 %s9, %s16
    %p86 = scmp.eq.s32.totalorder %s85, 0
    %s88 = sadd.s32 %s87, 1
    %s89 = scalar_select %p86, %s87, %s88
    %p92 = pneg %p86
    %p93 = scmp.eq.s32.totalorder %s9, 1
    %p94 = por %p92, %p93
    %p95 = scmp.ne.s32.totalorder %s87, %s90
    %p96 = scmp.eq.s32.totalorder %s9, 0
    %p97 = por %p95, %p96
    %p98 = scmp.ne.s32.totalorder %s87, %s90
    %p99 = scmp.eq.s32.totalorder %s14, 1
    %p100 = por %p98, %p99
    %p101 = scmp.ne.s32.totalorder %s90, %s91
    %p102 = scmp.eq.s32.totalorder %s14, 0
    %p103 = por %p101, %p102
    %p104 = scmp.ne.s32.totalorder %s90, %s91
    %p105 = scmp.eq.s32.totalorder %s15, 1
    %p106 = por %p104, %p105
    %p108 = scmp.ne.s32.totalorder %s91, %s107
    %p109 = scmp.eq.s32.totalorder %s15, 0
    %p110 = por %p108, %p109
    %p111 = scmp.le.s32.totalorder 1, %s9
    %p112 = scmp.lt.s32.totalorder %s9, 3
    %p113 = pnand %p111, %p112
    %p114 = pneg %p113
    // Predicated region
    $region9: #{discriminator_forward.3} parent=5 // pred_check
      _
    $region10: #{discriminator_forward.3} parent=5 // pred_check_branch
      %116 = sbr.rel (%p113) target = $region12
    $region11: #{discriminator_forward.3} parent=5 // pred_region
      %s117 = ssub.s32 %s9, 1
      // Predicated region
      $region13: #{discriminator_forward.3} parent=11 // pred_check
        %p118 = pneg %p56
      $region14: #{discriminator_forward.3} parent=11 // pred_check_branch
        %120 = sbr.rel (%p118) target = $region16
      $region15: #{discriminator_forward.3} parent=11 // pred_region
        _
      $region16: #{discriminator_forward.3} parent=11 // pred_fallthru
        _
      // Predicated region
      $region17: #{discriminator_forward.3} parent=11 // pred_check
        %p121 = pneg %p77
      $region18: #{discriminator_forward.3} parent=11 // pred_check_branch
        %123 = sbr.rel (%p121) target = $region20
      $region19: #{discriminator_forward.3} parent=11 // pred_region
        _
      $region20: #{discriminator_forward.3} parent=11 // pred_fallthru
        _
    $region12: #{discriminator_forward.3} parent=5 // pred_fallthru
      _
    %p124 = scmp.lt.s32.totalorder %s9, 2
    // Predicated region
    $region21: #{discriminator_forward.3} parent=5 // pred_check
      %p125 = pneg %p124
    $region22: #{discriminator_forward.3} parent=5 // pred_check_branch
      %127 = sbr.rel (%p125) target = $region24
    $region23: #{discriminator_forward.3} parent=5 // pred_region
      // Predicated region
      $region25: #{discriminator_forward.3} parent=23 // pred_check
        %p128 = pneg %p29
      $region26: #{discriminator_forward.3} parent=23 // pred_check_branch
        %130 = sbr.rel (%p128) target = $region28
      $region27: #{discriminator_forward.3} parent=23 // pred_region
        %s131 = smul.u32 32, %s9
        %p132 = scmp.lt.s32.totalorder %s131, 63
        %s133 = scalar_select %p132, %s131, 63
        %s134 = smul.addr %s133, 4
        %s135 = scalar_lea.vmem %s0, %s134
        %s136 = smul.u32 32, %s9
      $region28: #{discriminator_forward.3} parent=23 // pred_fallthru
        _
    $region24: #{discriminator_forward.3} parent=5 // pred_fallthru
      _
    %p137 = scmp.le.s32.totalorder 1, %s9
    %p138 = scmp.lt.s32.totalorder %s9, 3
    %p139 = pnand %p137, %p138
    %p140 = pneg %p139
    // Predicated region
    $region29: #{discriminator_forward.3} parent=5 // pred_check
      _
    $region30: #{discriminator_forward.3} parent=5 // pred_check_branch
      %142 = sbr.rel (%p139) target = $region32
    $region31: #{discriminator_forward.3} parent=5 // pred_region
      %s143 = ssub.s32 %s9, 1
      %s144 = smul.u32 32, %s14
      %p145 = scmp.lt.s32.totalorder %s144, 63
      %s146 = scalar_select %p145, %s144, 63
      %s147 = smul.addr %s146, 4
      %s148 = scalar_lea.vmem %s0, %s147
      %p149 = pneg %p35
      %p150 = pneg %p32
      %p151 = pneg %p56
      %p152 = pneg %p53
      %p153 = pneg %p77
      %p154 = pneg %p74
      %p155 = pneg %p103
      %p156 = pneg %p100
      %s157 = smul.u32 32, %s14
      %p158 = scmp.lt.s32.totalorder %s157, 63
      %s159 = scalar_select %p158, %s157, 63
      %s160 = smul.addr %s159, 4
      %s161 = scalar_lea.vmem %s3, %s160
      %s162 = smul.u32 32, %s14
      %p163 = scmp.lt.s32.totalorder %s162, 63
      %s164 = scalar_select %p163, %s162, 63
      %s165 = smul.addr %s164, 4
      %s166 = scalar_lea.vmem %s0, %s165
      %s167 = smul.u32 32, %s14
      %s168 = smul.u32 32, %s14
      %p169 = scmp.lt.s32.totalorder %s168, 63
      %s170 = scalar_select %p169, %s168, 63
      %s171 = smul.addr %s170, 4
      %s172 = scalar_lea.vmem %s3, %s171
      %s173 = smul.u32 32, %s14
      %v175 = vld [vmem:[%s166] sm:$0xf]
      %v176 = vld [vmem:[%s166 + $0x4] sm:$0xf]
      %v177 = vld [vmem:[%s166 + $0x8] sm:$0xf]
      %v178 = vld [vmem:[%s166 + $0xc] sm:$0xf]
      %v179 = vld [vmem:[%s166 + $0x10] sm:$0xf]
      %v180 = vld [vmem:[%s166 + $0x14] sm:$0xf]
      %v181 = vld [vmem:[%s166 + $0x18] sm:$0xf]
      %v182 = vld [vmem:[%s166 + $0x1c] sm:$0xf]
      %v183 = vld [vmem:[%s166 + $0x20] sm:$0xf]
      %v184 = vld [vmem:[%s166 + $0x24] sm:$0xf]
      %v185 = vld [vmem:[%s166 + $0x28] sm:$0xf]
      %v186 = vld [vmem:[%s166 + $0x2c] sm:$0xf]
      %v187 = vld [vmem:[%s166 + $0x30] sm:$0xf]
      %v188 = vld [vmem:[%s166 + $0x34] sm:$0xf]
      %v189 = vld [vmem:[%s166 + $0x38] sm:$0xf]
      %v190 = vld [vmem:[%s166 + $0x3c] sm:$0xf]
      %v191 = vld [vmem:[%s166 + $0x40] sm:$0xf]
      %v192 = vld [vmem:[%s166 + $0x44] sm:$0xf]
      %v193 = vld [vmem:[%s166 + $0x48] sm:$0xf]
      %v194 = vld [vmem:[%s166 + $0x4c] sm:$0xf]
      %v195 = vld [vmem:[%s166 + $0x50] sm:$0xf]
      %v196 = vld [vmem:[%s166 + $0x54] sm:$0xf]
      %v197 = vld [vmem:[%s166 + $0x58] sm:$0xf]
      %v198 = vld [vmem:[%s166 + $0x5c] sm:$0xf]
      %v199 = vld [vmem:[%s166 + $0x60] sm:$0xf]
      %v200 = vld [vmem:[%s166 + $0x64] sm:$0xf]
      %v201 = vld [vmem:[%s166 + $0x68] sm:$0xf]
      %v202 = vld [vmem:[%s166 + $0x6c] sm:$0xf]
      %v203 = vld [vmem:[%s166 + $0x70] sm:$0xf]
      %v204 = vld [vmem:[%s166 + $0x74] sm:$0xf]
      %v205 = vld [vmem:[%s166 + $0x78] sm:$0xf]
      %v206 = vld [vmem:[%s166 + $0x7c] sm:$0xf]
      %v207 = vld [vmem:[%s1] sm:$0xf]
      %v208 = vld [vmem:[%s1 + $0x4] sm:$0xf]
      %v209 = vld [vmem:[%s1 + $0x8] sm:$0xf]
      %v210 = vld [vmem:[%s1 + $0xc] sm:$0xf]
      %v211 = vld [vmem:[%s1 + $0x10] sm:$0xf]
      %v212 = vld [vmem:[%s1 + $0x14] sm:$0xf]
      %v213 = vld [vmem:[%s1 + $0x18] sm:$0xf]
      %v214 = vld [vmem:[%s1 + $0x1c] sm:$0xf]
      %v215 = vld [vmem:[%s1 + $0x20] sm:$0xf]
      %v216 = vld [vmem:[%s1 + $0x24] sm:$0xf]
      %v217 = vld [vmem:[%s1 + $0x28] sm:$0xf]
      %v218 = vld [vmem:[%s1 + $0x2c] sm:$0xf]
      %v219 = vld [vmem:[%s1 + $0x30] sm:$0xf]
      %v220 = vld [vmem:[%s1 + $0x34] sm:$0xf]
      %v221 = vld [vmem:[%s1 + $0x38] sm:$0xf]
      %v222 = vld [vmem:[%s1 + $0x3c] sm:$0xf]
      %v223 = vld [vmem:[%s2] sm:$0x1]
      %v225 = vlaneseq
      %v226 = vshrl.u32 %v225, 7
      %v227 = vsub.s32 0, %v226
      %v228 = vrot.slane %v223, %v227
      %v262 = vunpack.c.l.b16 %v175
      %v263 = vunpack.c.l.b16 %v176
      %v264 = vunpack.c.l.b16 %v177
      %v265 = vunpack.c.l.b16 %v178
      %v266 = vunpack.c.l.b16 %v179
      %v267 = vunpack.c.l.b16 %v180
      %v268 = vunpack.c.l.b16 %v181
      %v269 = vunpack.c.l.b16 %v182
      %v270 = vunpack.c.l.b16 %v183
      %v271 = vunpack.c.l.b16 %v184
      %v272 = vunpack.c.l.b16 %v185
      %v273 = vunpack.c.l.b16 %v186
      %v274 = vunpack.c.l.b16 %v187
      %v275 = vunpack.c.l.b16 %v188
      %v276 = vunpack.c.l.b16 %v189
      %v277 = vunpack.c.l.b16 %v190
      %v278 = vunpack.c.l.b16 %v191
      %v279 = vunpack.c.l.b16 %v192
      %v280 = vunpack.c.l.b16 %v193
      %v281 = vunpack.c.l.b16 %v194
      %v282 = vunpack.c.l.b16 %v195
      %v283 = vunpack.c.l.b16 %v196
      %v284 = vunpack.c.l.b16 %v197
      %v285 = vunpack.c.l.b16 %v198
      %v286 = vunpack.c.l.b16 %v199
      %v287 = vunpack.c.l.b16 %v200
      %v288 = vunpack.c.l.b16 %v201
      %v289 = vunpack.c.l.b16 %v202
      %v290 = vunpack.c.l.b16 %v203
      %v291 = vunpack.c.l.b16 %v204
      %v292 = vunpack.c.l.b16 %v205
      %v293 = vunpack.c.l.b16 %v206
      %v294 = vpack.c.b16 %v263, %v262
      %v295 = vpack.c.b16 %v265, %v264
      %v296 = vpack.c.b16 %v267, %v266
      %v297 = vpack.c.b16 %v269, %v268
      %v298 = vpack.c.b16 %v271, %v270
      %v299 = vpack.c.b16 %v273, %v272
      %v300 = vpack.c.b16 %v275, %v274
      %v301 = vpack.c.b16 %v277, %v276
      %v302 = vpack.c.b16 %v279, %v278
      %v303 = vpack.c.b16 %v281, %v280
      %v304 = vpack.c.b16 %v283, %v282
      %v305 = vpack.c.b16 %v285, %v284
      %v306 = vpack.c.b16 %v287, %v286
      %v307 = vpack.c.b16 %v289, %v288
      %v308 = vpack.c.b16 %v291, %v290
      %v309 = vpack.c.b16 %v293, %v292
      %v342 = vunpack.c.l.b16 %v207
      %v343 = vunpack.c.l.b16 %v208
      %v344 = vunpack.c.l.b16 %v209
      %v345 = vunpack.c.l.b16 %v210
      %v346 = vunpack.c.l.b16 %v211
      %v347 = vunpack.c.l.b16 %v212
      %v348 = vunpack.c.l.b16 %v213
      %v349 = vunpack.c.l.b16 %v214
      %v350 = vunpack.c.l.b16 %v215
      %v351 = vunpack.c.l.b16 %v216
      %v352 = vunpack.c.l.b16 %v217
      %v353 = vunpack.c.l.b16 %v218
      %v354 = vunpack.c.l.b16 %v219
      %v355 = vunpack.c.l.b16 %v220
      %v356 = vunpack.c.l.b16 %v221
      %v357 = vunpack.c.l.b16 %v222
      %v358 = vpack.c.b16 %v343, %v342
      %v359 = vpack.c.b16 %v345, %v344
      %v360 = vpack.c.b16 %v347, %v346
      %v361 = vpack.c.b16 %v349, %v348
      %v362 = vpack.c.b16 %v351, %v350
      %v363 = vpack.c.b16 %v353, %v352
      %v364 = vpack.c.b16 %v355, %v354
      %v365 = vpack.c.b16 %v357, %v356
      %374 = vmatprep.subr.bf16.mxu0 0
      %375 = vmatpush1.bf16.msra.mxu0 %v358
      %376 = vmatprep.subr.bf16.mxu0 0
      %377 = vmatpush1.bf16.msra.mxu0 %v359
      %378 = vmatprep.subr.bf16.mxu0 0
      %379 = vmatpush1.bf16.msra.mxu0 %v360
      %380 = vmatprep.subr.bf16.mxu0 0
      %381 = vmatpush1.bf16.msra.mxu0 %v361
      %382 = vmatprep.subr.bf16.mxu0 0
      %383 = vmatpush1.bf16.msra.mxu0 %v362
      %384 = vmatprep.subr.bf16.mxu0 0
      %385 = vmatpush1.bf16.msra.mxu0 %v363
      %386 = vmatprep.subr.bf16.mxu0 0
      %387 = vmatpush1.bf16.msra.mxu0 %v364
      %388 = vmatprep.subr.bf16.mxu0 0
      %389 = vmatpush1.bf16.msra.mxu0 %v365
      %390 = vmatprep.subr.bf16.mxu0 0
      %391 = vmatpush1.bf16.msra.mxu0 0
      %392 = vmatprep.subr.bf16.mxu0 0
      %393 = vmatpush1.bf16.msra.mxu0 0
      %394 = vmatprep.subr.bf16.mxu0 0
      %395 = vmatpush1.bf16.msra.mxu0 0
      %396 = vmatprep.subr.bf16.mxu0 0
      %397 = vmatpush1.bf16.msra.mxu0 0
      %398 = vmatprep.subr.bf16.mxu0 0
      %399 = vmatpush1.bf16.msra.mxu0 0
      %400 = vmatprep.subr.bf16.mxu0 0
      %401 = vmatpush1.bf16.msra.mxu0 0
      %402 = vmatprep.subr.bf16.mxu0 0
      %403 = vmatpush1.bf16.msra.mxu0 0
      %404 = vmatprep.subr.bf16.mxu0 0
      %405 = vmatpush1.bf16.msra.mxu0 0
      %406 = vmatprep.mubr.bf16.mxu0 0
      %407 = vmatmul.mubr.bf16.gmra.mrb[0].mxu0 %v294
      %v408 = vpop.f32.mrb[0].mxu0
      %v409 = vadd.f32 %v228, %v408
      %v410 = vpop.f32.mrb[0].mxu0
      %v411 = vpop.f32.mrb[0].mxu0
      %v412 = vadd.f32 %v228, %v411
      %v413 = vpop.f32.mrb[0].mxu0
      %414 = vmatprep.mubr.bf16.mxu0 0
      %415 = vmatmul.mubr.bf16.gmra.mrb[0].mxu0 %v295
      %v416 = vpop.f32.mrb[0].mxu0
      %v417 = vadd.f32 %v228, %v416
      %v418 = vpop.f32.mrb[0].mxu0
      %v419 = vpop.f32.mrb[0].mxu0
      %v420 = vadd.f32 %v228, %v419
      %v421 = vpop.f32.mrb[0].mxu0
      %422 = vmatprep.mubr.bf16.mxu0 0
      %423 = vmatmul.mubr.bf16.gmra.mrb[0].mxu0 %v296
      %v424 = vpop.f32.mrb[0].mxu0
      %v425 = vadd.f32 %v228, %v424
      %v426 = vpop.f32.mrb[0].mxu0
      %v427 = vpop.f32.mrb[0].mxu0
      %v428 = vadd.f32 %v228, %v427
      %v429 = vpop.f32.mrb[0].mxu0
      %430 = vmatprep.mubr.bf16.mxu0 0
      %431 = vmatmul.mubr.bf16.gmra.mrb[0].mxu0 %v297
      %v432 = vpop.f32.mrb[0].mxu0
      %v433 = vadd.f32 %v228, %v432
      %v434 = vpop.f32.mrb[0].mxu0
      %v435 = vpop.f32.mrb[0].mxu0
      %v436 = vadd.f32 %v228, %v435
      %v437 = vpop.f32.mrb[0].mxu0
      %438 = vmatprep.mubr.bf16.mxu0 0
      %439 = vmatmul.mubr.bf16.gmra.mrb[0].mxu0 %v298
      %v440 = vpop.f32.mrb[0].mxu0
      %v441 = vadd.f32 %v228, %v440
      %v442 = vpop.f32.mrb[0].mxu0
      %v443 = vpop.f32.mrb[0].mxu0
      %v444 = vadd.f32 %v228, %v443
      %v445 = vpop.f32.mrb[0].mxu0
      %446 = vmatprep.mubr.bf16.mxu0 0
      %447 = vmatmul.mubr.bf16.gmra.mrb[0].mxu0 %v299
      %v448 = vpop.f32.mrb[0].mxu0
      %v449 = vadd.f32 %v228, %v448
      %v450 = vpop.f32.mrb[0].mxu0
      %v451 = vpop.f32.mrb[0].mxu0
      %v452 = vadd.f32 %v228, %v451
      %v453 = vpop.f32.mrb[0].mxu0
      %454 = vmatprep.mubr.bf16.mxu0 0
      %455 = vmatmul.mubr.bf16.gmra.mrb[0].mxu0 %v300
      %v456 = vpop.f32.mrb[0].mxu0
      %v457 = vadd.f32 %v228, %v456
      %v458 = vpop.f32.mrb[0].mxu0
      %v459 = vpop.f32.mrb[0].mxu0
      %v460 = vadd.f32 %v228, %v459
      %v461 = vpop.f32.mrb[0].mxu0
      %462 = vmatprep.mubr.bf16.mxu0 0
      %463 = vmatmul.mubr.bf16.gmra.mrb[0].mxu0 %v301
      %v464 = vpop.f32.mrb[0].mxu0
      %v465 = vadd.f32 %v228, %v464
      %v466 = vpop.f32.mrb[0].mxu0
      %v467 = vpop.f32.mrb[0].mxu0
      %v468 = vadd.f32 %v228, %v467
      %v469 = vpop.f32.mrb[0].mxu0
      %470 = vmatprep.mubr.bf16.mxu0 0
      %471 = vmatmul.mubr.bf16.gmra.mrb[0].mxu0 %v302
      %v472 = vpop.f32.mrb[0].mxu0
      %v473 = vadd.f32 %v228, %v472
      %v474 = vpop.f32.mrb[0].mxu0
      %v475 = vpop.f32.mrb[0].mxu0
      %v476 = vadd.f32 %v228, %v475
      %v477 = vpop.f32.mrb[0].mxu0
      %478 = vmatprep.mubr.bf16.mxu0 0
      %479 = vmatmul.mubr.bf16.gmra.mrb[0].mxu0 %v303
      %v480 = vpop.f32.mrb[0].mxu0
      %v481 = vadd.f32 %v228, %v480
      %v482 = vpop.f32.mrb[0].mxu0
      %v483 = vpop.f32.mrb[0].mxu0
      %v484 = vadd.f32 %v228, %v483
      %v485 = vpop.f32.mrb[0].mxu0
      %486 = vmatprep.mubr.bf16.mxu0 0
      %487 = vmatmul.mubr.bf16.gmra.mrb[0].mxu0 %v304
      %v488 = vpop.f32.mrb[0].mxu0
      %v489 = vadd.f32 %v228, %v488
      %v490 = vpop.f32.mrb[0].mxu0
      %v491 = vpop.f32.mrb[0].mxu0
      %v492 = vadd.f32 %v228, %v491
      %v493 = vpop.f32.mrb[0].mxu0
      %494 = vmatprep.mubr.bf16.mxu0 0
      %495 = vmatmul.mubr.bf16.gmra.mrb[0].mxu0 %v305
      %v496 = vpop.f32.mrb[0].mxu0
      %v497 = vadd.f32 %v228, %v496
      %v498 = vpop.f32.mrb[0].mxu0
      %v499 = vpop.f32.mrb[0].mxu0
      %v500 = vadd.f32 %v228, %v499
      %v501 = vpop.f32.mrb[0].mxu0
      %502 = vmatprep.mubr.bf16.mxu0 0
      %503 = vmatmul.mubr.bf16.gmra.mrb[0].mxu0 %v306
      %v504 = vpop.f32.mrb[0].mxu0
      %v505 = vadd.f32 %v228, %v504
      %v506 = vpop.f32.mrb[0].mxu0
      %v507 = vpop.f32.mrb[0].mxu0
      %v508 = vadd.f32 %v228, %v507
      %v509 = vpop.f32.mrb[0].mxu0
      %510 = vmatprep.mubr.bf16.mxu0 0
      %511 = vmatmul.mubr.bf16.gmra.mrb[0].mxu0 %v307
      %v512 = vpop.f32.mrb[0].mxu0
      %v513 = vadd.f32 %v228, %v512
      %v514 = vpop.f32.mrb[0].mxu0
      %v515 = vpop.f32.mrb[0].mxu0
      %v516 = vadd.f32 %v228, %v515
      %v517 = vpop.f32.mrb[0].mxu0
      %518 = vmatprep.mubr.bf16.mxu0 0
      %519 = vmatmul.mubr.bf16.gmra.mrb[0].mxu0 %v308
      %v520 = vpop.f32.mrb[0].mxu0
      %v521 = vadd.f32 %v228, %v520
      %v522 = vpop.f32.mrb[0].mxu0
      %v523 = vpop.f32.mrb[0].mxu0
      %v524 = vadd.f32 %v228, %v523
      %v525 = vpop.f32.mrb[0].mxu0
      %526 = vmatprep.mubr.bf16.mxu0 0
      %527 = vmatmul.mubr.bf16.gmra.mrb[0].mxu0 %v309
      %v528 = vpop.f32.mrb[0].mxu0
      %v529 = vadd.f32 %v228, %v528
      %v530 = vpop.f32.mrb[0].mxu0
      %v531 = vpop.f32.mrb[0].mxu0
      %v532 = vadd.f32 %v228, %v531
      %v533 = vpop.f32.mrb[0].mxu0
      %534 = vdwg.mxu0
      %vm535 = vcmp.gt.f32.partialorder %v409, 0.0
      %vm536 = vcmp.gt.f32.partialorder %v412, 0.0
      %vm537 = vcmp.gt.f32.partialorder %v417, 0.0
      %vm538 = vcmp.gt.f32.partialorder %v420, 0.0
      %vm539 = vcmp.gt.f32.partialorder %v425, 0.0
      %vm540 = vcmp.gt.f32.partialorder %v428, 0.0
      %vm541 = vcmp.gt.f32.partialorder %v433, 0.0
      %vm542 = vcmp.gt.f32.partialorder %v436, 0.0
      %vm543 = vcmp.gt.f32.partialorder %v441, 0.0
      %vm544 = vcmp.gt.f32.partialorder %v444, 0.0
      %vm545 = vcmp.gt.f32.partialorder %v449, 0.0
      %vm546 = vcmp.gt.f32.partialorder %v452, 0.0
      %vm547 = vcmp.gt.f32.partialorder %v457, 0.0
      %vm548 = vcmp.gt.f32.partialorder %v460, 0.0
      %vm549 = vcmp.gt.f32.partialorder %v465, 0.0
      %vm550 = vcmp.gt.f32.partialorder %v468, 0.0
      %vm551 = vcmp.gt.f32.partialorder %v473, 0.0
      %vm552 = vcmp.gt.f32.partialorder %v476, 0.0
      %vm553 = vcmp.gt.f32.partialorder %v481, 0.0
      %vm554 = vcmp.gt.f32.partialorder %v484, 0.0
      %vm555 = vcmp.gt.f32.partialorder %v489, 0.0
      %vm556 = vcmp.gt.f32.partialorder %v492, 0.0
      %vm557 = vcmp.gt.f32.partialorder %v497, 0.0
      %vm558 = vcmp.gt.f32.partialorder %v500, 0.0
      %vm559 = vcmp.gt.f32.partialorder %v505, 0.0
      %vm560 = vcmp.gt.f32.partialorder %v508, 0.0
      %vm561 = vcmp.gt.f32.partialorder %v513, 0.0
      %vm562 = vcmp.gt.f32.partialorder %v516, 0.0
      %vm563 = vcmp.gt.f32.partialorder %v521, 0.0
      %vm564 = vcmp.gt.f32.partialorder %v524, 0.0
      %vm565 = vcmp.gt.f32.partialorder %v529, 0.0
      %vm566 = vcmp.gt.f32.partialorder %v532, 0.0
      %v567 = vmul.f32 %v409, 1.442695
      %v568 = vpow.pop %v567
      %v569 = vmul.f32 %v412, 1.442695
      %v570 = vpow.pop %v569
      %v571 = vmul.f32 %v417, 1.442695
      %v572 = vpow.pop %v571
      %v573 = vmul.f32 %v420, 1.442695
      %v574 = vpow.pop %v573
      %v575 = vmul.f32 %v425, 1.442695
      %v576 = vpow.pop %v575
      %v577 = vmul.f32 %v428, 1.442695
      %v578 = vpow.pop %v577
      %v579 = vmul.f32 %v433, 1.442695
      %v580 = vpow.pop %v579
      %v581 = vmul.f32 %v436, 1.442695
      %v582 = vpow.pop %v581
      %v583 = vmul.f32 %v441, 1.442695
      %v584 = vpow.pop %v583
      %v585 = vmul.f32 %v444, 1.442695
      %v586 = vpow.pop %v585
      %v587 = vmul.f32 %v449, 1.442695
      %v588 = vpow.pop %v587
      %v589 = vmul.f32 %v452, 1.442695
      %v590 = vpow.pop %v589
      %v591 = vmul.f32 %v457, 1.442695
      %v592 = vpow.pop %v591
      %v593 = vmul.f32 %v460, 1.442695
      %v594 = vpow.pop %v593
      %v595 = vmul.f32 %v465, 1.442695
      %v596 = vpow.pop %v595
      %v597 = vmul.f32 %v468, 1.442695
      %v598 = vpow.pop %v597
      %v599 = vmul.f32 %v473, 1.442695
      %v600 = vpow.pop %v599
      %v601 = vmul.f32 %v476, 1.442695
      %v602 = vpow.pop %v601
      %v603 = vmul.f32 %v481, 1.442695
      %v604 = vpow.pop %v603
      %v605 = vmul.f32 %v484, 1.442695
      %v606 = vpow.pop %v605
      %v607 = vmul.f32 %v489, 1.442695
      %v608 = vpow.pop %v607
      %v609 = vmul.f32 %v492, 1.442695
      %v610 = vpow.pop %v609
      %v611 = vmul.f32 %v497, 1.442695
      %v612 = vpow.pop %v611
      %v613 = vmul.f32 %v500, 1.442695
      %v614 = vpow.pop %v613
      %v615 = vmul.f32 %v505, 1.442695
      %v616 = vpow.pop %v615
      %v617 = vmul.f32 %v508, 1.442695
      %v618 = vpow.pop %v617
      %v619 = vmul.f32 %v513, 1.442695
      %v620 = vpow.pop %v619
      %v621 = vmul.f32 %v516, 1.442695
      %v622 = vpow.pop %v621
      %v623 = vmul.f32 %v521, 1.442695
      %v624 = vpow.pop %v623
      %v625 = vmul.f32 %v524, 1.442695
      %v626 = vpow.pop %v625
      %v627 = vmul.f32 %v529, 1.442695
      %v628 = vpow.pop %v627
      %v629 = vmul.f32 %v532, 1.442695
      %v630 = vpow.pop %v629
      %v631 = vsub.f32 %v568, 1.0
      %v632 = vsub.f32 %v570, 1.0
      %v633 = vsub.f32 %v572, 1.0
      %v634 = vsub.f32 %v574, 1.0
      %v635 = vsub.f32 %v576, 1.0
      %v636 = vsub.f32 %v578, 1.0
      %v637 = vsub.f32 %v580, 1.0
      %v638 = vsub.f32 %v582, 1.0
      %v639 = vsub.f32 %v584, 1.0
      %v640 = vsub.f32 %v586, 1.0
      %v641 = vsub.f32 %v588, 1.0
      %v642 = vsub.f32 %v590, 1.0
      %v643 = vsub.f32 %v592, 1.0
      %v644 = vsub.f32 %v594, 1.0
      %v645 = vsub.f32 %v596, 1.0
      %v646 = vsub.f32 %v598, 1.0
      %v647 = vsub.f32 %v600, 1.0
      %v648 = vsub.f32 %v602, 1.0
      %v649 = vsub.f32 %v604, 1.0
      %v650 = vsub.f32 %v606, 1.0
      %v651 = vsub.f32 %v608, 1.0
      %v652 = vsub.f32 %v610, 1.0
      %v653 = vsub.f32 %v612, 1.0
      %v654 = vsub.f32 %v614, 1.0
      %v655 = vsub.f32 %v616, 1.0
      %v656 = vsub.f32 %v618, 1.0
      %v657 = vsub.f32 %v620, 1.0
      %v658 = vsub.f32 %v622, 1.0
      %v659 = vsub.f32 %v624, 1.0
      %v660 = vsub.f32 %v626, 1.0
      %v661 = vsub.f32 %v628, 1.0
      %v662 = vsub.f32 %v630, 1.0
      %v663 = vsel %vm535, %v409, %v631
      %v664 = vsel %vm536, %v412, %v632
      %v665 = vsel %vm537, %v417, %v633
      %v666 = vsel %vm538, %v420, %v634
      %v667 = vsel %vm539, %v425, %v635
      %v668 = vsel %vm540, %v428, %v636
      %v669 = vsel %vm541, %v433, %v637
      %v670 = vsel %vm542, %v436, %v638
      %v671 = vsel %vm543, %v441, %v639
      %v672 = vsel %vm544, %v444, %v640
      %v673 = vsel %vm545, %v449, %v641
      %v674 = vsel %vm546, %v452, %v642
      %v675 = vsel %vm547, %v457, %v643
      %v676 = vsel %vm548, %v460, %v644
      %v677 = vsel %vm549, %v465, %v645
      %v678 = vsel %vm550, %v468, %v646
      %v679 = vsel %vm551, %v473, %v647
      %v680 = vsel %vm552, %v476, %v648
      %v681 = vsel %vm553, %v481, %v649
      %v682 = vsel %vm554, %v484, %v650
      %v683 = vsel %vm555, %v489, %v651
      %v684 = vsel %vm556, %v492, %v652
      %v685 = vsel %vm557, %v497, %v653
      %v686 = vsel %vm558, %v500, %v654
      %v687 = vsel %vm559, %v505, %v655
      %v688 = vsel %vm560, %v508, %v656
      %v689 = vsel %vm561, %v513, %v657
      %v690 = vsel %vm562, %v516, %v658
      %v691 = vsel %vm563, %v521, %v659
      %v692 = vsel %vm564, %v524, %v660
      %v693 = vsel %vm565, %v529, %v661
      %v694 = vsel %vm566, %v532, %v662
      %v695 = vpack.c.bf16 %v664, %v663
      %v696 = vpack.c.bf16 %v666, %v665
      %v697 = vpack.c.bf16 %v668, %v667
      %v698 = vpack.c.bf16 %v670, %v669
      %v699 = vpack.c.bf16 %v672, %v671
      %v700 = vpack.c.bf16 %v674, %v673
      %v701 = vpack.c.bf16 %v676, %v675
      %v702 = vpack.c.bf16 %v678, %v677
      %v703 = vpack.c.bf16 %v680, %v679
      %v704 = vpack.c.bf16 %v682, %v681
      %v705 = vpack.c.bf16 %v684, %v683
      %v706 = vpack.c.bf16 %v686, %v685
      %v707 = vpack.c.bf16 %v688, %v687
      %v708 = vpack.c.bf16 %v690, %v689
      %v709 = vpack.c.bf16 %v692, %v691
      %v710 = vpack.c.bf16 %v694, %v693
      %v727 = vunpack.c.l.b16 %v695
      %v728 = vunpack.c.h.b16 %v695
      %v729 = vunpack.c.l.b16 %v696
      %v730 = vunpack.c.h.b16 %v696
      %v731 = vunpack.c.l.b16 %v697
      %v732 = vunpack.c.h.b16 %v697
      %v733 = vunpack.c.l.b16 %v698
      %v734 = vunpack.c.h.b16 %v698
      %v735 = vunpack.c.l.b16 %v699
      %v736 = vunpack.c.h.b16 %v699
      %v737 = vunpack.c.l.b16 %v700
      %v738 = vunpack.c.h.b16 %v700
      %v739 = vunpack.c.l.b16 %v701
      %v740 = vunpack.c.h.b16 %v701
      %v741 = vunpack.c.l.b16 %v702
      %v742 = vunpack.c.h.b16 %v702
      %v743 = vunpack.c.l.b16 %v703
      %v744 = vunpack.c.h.b16 %v703
      %v745 = vunpack.c.l.b16 %v704
      %v746 = vunpack.c.h.b16 %v704
      %v747 = vunpack.c.l.b16 %v705
      %v748 = vunpack.c.h.b16 %v705
      %v749 = vunpack.c.l.b16 %v706
      %v750 = vunpack.c.h.b16 %v706
      %v751 = vunpack.c.l.b16 %v707
      %v752 = vunpack.c.h.b16 %v707
      %v753 = vunpack.c.l.b16 %v708
      %v754 = vunpack.c.h.b16 %v708
      %v755 = vunpack.c.l.b16 %v709
      %v756 = vunpack.c.h.b16 %v709
      %v757 = vunpack.c.l.b16 %v710
      %v758 = vunpack.c.h.b16 %v710
      %v759 = vpack.c.b16 %v727, %v727
      %v760 = vpack.c.b16 %v728, %v728
      %v761 = vpack.c.b16 %v729, %v729
      %v762 = vpack.c.b16 %v730, %v730
      %v763 = vpack.c.b16 %v731, %v731
      %v764 = vpack.c.b16 %v732, %v732
      %v765 = vpack.c.b16 %v733, %v733
      %v766 = vpack.c.b16 %v734, %v734
      %v767 = vpack.c.b16 %v735, %v735
      %v768 = vpack.c.b16 %v736, %v736
      %v769 = vpack.c.b16 %v737, %v737
      %v770 = vpack.c.b16 %v738, %v738
      %v771 = vpack.c.b16 %v739, %v739
      %v772 = vpack.c.b16 %v740, %v740
      %v773 = vpack.c.b16 %v741, %v741
      %v774 = vpack.c.b16 %v742, %v742
      %v775 = vpack.c.b16 %v743, %v743
      %v776 = vpack.c.b16 %v744, %v744
      %v777 = vpack.c.b16 %v745, %v745
      %v778 = vpack.c.b16 %v746, %v746
      %v779 = vpack.c.b16 %v747, %v747
      %v780 = vpack.c.b16 %v748, %v748
      %v781 = vpack.c.b16 %v749, %v749
      %v782 = vpack.c.b16 %v750, %v750
      %v783 = vpack.c.b16 %v751, %v751
      %v784 = vpack.c.b16 %v752, %v752
      %v785 = vpack.c.b16 %v753, %v753
      %v786 = vpack.c.b16 %v754, %v754
      %v787 = vpack.c.b16 %v755, %v755
      %v788 = vpack.c.b16 %v756, %v756
      %v789 = vpack.c.b16 %v757, %v757
      %v790 = vpack.c.b16 %v758, %v758
      %823 = vst [vmem:[%s172] sm:$0xf] %v759
      %824 = vst [vmem:[%s172 + $0x4] sm:$0xf] %v760
      %825 = vst [vmem:[%s172 + $0x8] sm:$0xf] %v761
      %826 = vst [vmem:[%s172 + $0xc] sm:$0xf] %v762
      %827 = vst [vmem:[%s172 + $0x10] sm:$0xf] %v763
      %828 = vst [vmem:[%s172 + $0x14] sm:$0xf] %v764
      %829 = vst [vmem:[%s172 + $0x18] sm:$0xf] %v765
      %830 = vst [vmem:[%s172 + $0x1c] sm:$0xf] %v766
      %831 = vst [vmem:[%s172 + $0x20] sm:$0xf] %v767
      %832 = vst [vmem:[%s172 + $0x24] sm:$0xf] %v768
      %833 = vst [vmem:[%s172 + $0x28] sm:$0xf] %v769
      %834 = vst [vmem:[%s172 + $0x2c] sm:$0xf] %v770
      %835 = vst [vmem:[%s172 + $0x30] sm:$0xf] %v771
      %836 = vst [vmem:[%s172 + $0x34] sm:$0xf] %v772
      %837 = vst [vmem:[%s172 + $0x38] sm:$0xf] %v773
      %838 = vst [vmem:[%s172 + $0x3c] sm:$0xf] %v774
      %839 = vst [vmem:[%s172 + $0x40] sm:$0xf] %v775
      %840 = vst [vmem:[%s172 + $0x44] sm:$0xf] %v776
      %841 = vst [vmem:[%s172 + $0x48] sm:$0xf] %v777
      %842 = vst [vmem:[%s172 + $0x4c] sm:$0xf] %v778
      %843 = vst [vmem:[%s172 + $0x50] sm:$0xf] %v779
      %844 = vst [vmem:[%s172 + $0x54] sm:$0xf] %v780
      %845 = vst [vmem:[%s172 + $0x58] sm:$0xf] %v781
      %846 = vst [vmem:[%s172 + $0x5c] sm:$0xf] %v782
      %847 = vst [vmem:[%s172 + $0x60] sm:$0xf] %v783
      %848 = vst [vmem:[%s172 + $0x64] sm:$0xf] %v784
      %849 = vst [vmem:[%s172 + $0x68] sm:$0xf] %v785
      %850 = vst [vmem:[%s172 + $0x6c] sm:$0xf] %v786
      %851 = vst [vmem:[%s172 + $0x70] sm:$0xf] %v787
      %852 = vst [vmem:[%s172 + $0x74] sm:$0xf] %v788
      %853 = vst [vmem:[%s172 + $0x78] sm:$0xf] %v789
      %854 = vst [vmem:[%s172 + $0x7c] sm:$0xf] %v790
      %s855 = smul.u32 32, %s14
      %p856 = scmp.lt.s32.totalorder %s855, 63
      %s857 = scalar_select %p856, %s855, 63
      %s858 = smul.addr %s857, 4
      %s859 = scalar_lea.vmem %s3, %s858
      // Predicated region
      $region33: #{discriminator_forward.3} parent=31 // pred_check
        %p860 = pneg %p100
      $region34: #{discriminator_forward.3} parent=31 // pred_check_branch
        %862 = sbr.rel (%p860) target = $region36
      $region35: #{discriminator_forward.3} parent=31 // pred_region
        %s863 = smul.u32 32, %s14
      $region36: #{discriminator_forward.3} parent=31 // pred_fallthru
        _
    $region32: #{discriminator_forward.3} parent=5 // pred_fallthru
      _
    %p864 = scmp.le.s32.totalorder 2, %s9
    // Predicated region
    $region37: #{discriminator_forward.3} parent=5 // pred_check
      %p865 = pneg %p864
    $region38: #{discriminator_forward.3} parent=5 // pred_check_branch
      %867 = sbr.rel (%p865) target = $region40
    $region39: #{discriminator_forward.3} parent=5 // pred_region
      %s868 = ssub.s32 %s9, 2
      // Predicated region
      $region41: #{discriminator_forward.3} parent=39 // pred_check
        %p869 = pneg %p106
      $region42: #{discriminator_forward.3} parent=39 // pred_check_branch
        %871 = sbr.rel (%p869) target = $region44
      $region43: #{discriminator_forward.3} parent=39 // pred_region
        %s872 = smul.u32 32, %s15
        %p873 = scmp.lt.s32.totalorder %s872, 63
        %s874 = scalar_select %p873, %s872, 63
        %s875 = smul.addr %s874, 4
        %s876 = scalar_lea.vmem %s3, %s875
      $region44: #{discriminator_forward.3} parent=39 // pred_fallthru
        _
    $region40: #{discriminator_forward.3} parent=5 // pred_fallthru
      _
  $region6: #{discriminator_forward.3} parent=0 // loop_footer
    %s13 = sadd.s32 1, %s9
  $region7: #{discriminator_forward.3} parent=0 // loop_footer_branch
    %8 = sbr.rel target = $region3
  $region8: #{discriminator_forward.3} parent=0 // loop_exit
    _

// kernel: discriminator_forward.4
$region0: #{discriminator_forward.4}
  #allocation0 [shape = 'u32[]', space=smem, size = 0x4, offset = 0x4, fixed_abs, tag = 'smem constant byte address 0x4 - core index']
  #allocation1 [shape = 'u32[144,128]{1,0:T(1,128)}', space=vmem, size = 0x12000, scoped, tag = 'internal scratch']
  %s0 = inlined_call_operand.vmem [shape: bf16[128,2048], index: 0, kind: input, shape index: {}]
  %s1 = inlined_call_operand.vmem [shape: bf16[2048,128], index: 1, kind: input, shape index: {}]
  %s2 = inlined_call_operand.vmem [shape: f32[1,128], index: 2, kind: input, shape index: {}]
  %s3 = inlined_call_operand.vmem [shape: bf16[128,128], index: 3, kind: output, shape index: {}]
  %s4 = sld [smem:[#allocation0]]
  $region45: #{discriminator_forward.4} parent=0
    _
  %s6 = ssub.s32 1, %s4
  %s7 = scalar_select 0, %s6, %s4
  loop: start=0, step=1, limit=4
  $region2: #{discriminator_forward.4} parent=0 // loop_pre_header
    _
  $region3: #{discriminator_forward.4} parent=0 // loop_header
    %s9 = sphi 0, %s13
    %p10 = scmp.ge.s32.totalorder %s9, 4
    %s19 = sphi 0, %s21
    %s22 = sphi 0, %s19
    %s23 = sphi 0, %s22
    %s39 = sphi 0, %s23
    %s43 = sphi 0, %s43
    %s45 = sphi 0, %s43
    %s46 = sphi 0, %s45
    %s60 = sphi 0, %s46
    %s64 = sphi 0, %s64
    %s66 = sphi 0, %s64
    %s67 = sphi 0, %s66
    %s81 = sphi 0, %s67
    %s87 = sphi 0, %s89
    %s90 = sphi 0, %s87
    %s91 = sphi 0, %s90
    %s107 = sphi 0, %s91
  $region4: #{discriminator_forward.4} parent=0 // loop_header_branch
    %12 = sbr.rel (%p10) target = $region8
  $region5: #{discriminator_forward.4} parent=0 // loop_body
    %s14 = ssub.s32 %s9, 1
    %s15 = ssub.s32 %s9, 2
    %s16 = sadd.s32 %s9, 1
    %s17 = ssub.s32 %s9, %s16
    %p18 = scmp.eq.s32.totalorder %s17, 0
    %s20 = sadd.s32 %s19, 1
    %s21 = scalar_select %p18, %s19, %s20
    %p24 = pneg %p18
    %p25 = scmp.eq.s32.totalorder %s9, 1
    %p26 = por %p24, %p25
    %p27 = scmp.ne.s32.totalorder %s19, %s22
    %p28 = scmp.eq.s32.totalorder %s9, 0
    %p29 = por %p27, %p28
    %p30 = scmp.ne.s32.totalorder %s19, %s22
    %p31 = scmp.eq.s32.totalorder %s14, 1
    %p32 = por %p30, %p31
    %p33 = scmp.ne.s32.totalorder %s22, %s23
    %p34 = scmp.eq.s32.totalorder %s14, 0
    %p35 = por %p33, %p34
    %p36 = scmp.ne.s32.totalorder %s22, %s23
    %p37 = scmp.eq.s32.totalorder %s15, 1
    %p38 = por %p36, %p37
    %p40 = scmp.ne.s32.totalorder %s23, %s39
    %p41 = scmp.eq.s32.totalorder %s15, 0
    %p42 = por %p40, %p41
    %s44 = sadd.s32 %s43, 1
    %p47 = scmp.eq.s32.totalorder %s9, 1
    %p48 = scmp.ne.s32.totalorder %s43, %s45
    %p49 = scmp.eq.s32.totalorder %s9, 0
    %p50 = por %p48, %p49
    %p51 = scmp.ne.s32.totalorder %s43, %s45
    %p52 = scmp.eq.s32.totalorder %s14, 1
    %p53 = por %p51, %p52
    %p54 = scmp.ne.s32.totalorder %s45, %s46
    %p55 = scmp.eq.s32.totalorder %s14, 0
    %p56 = por %p54, %p55
    %p57 = scmp.ne.s32.totalorder %s45, %s46
    %p58 = scmp.eq.s32.totalorder %s15, 1
    %p59 = por %p57, %p58
    %p61 = scmp.ne.s32.totalorder %s46, %s60
    %p62 = scmp.eq.s32.totalorder %s15, 0
    %p63 = por %p61, %p62
    %s65 = sadd.s32 %s64, 1
    %p68 = scmp.eq.s32.totalorder %s9, 1
    %p69 = scmp.ne.s32.totalorder %s64, %s66
    %p70 = scmp.eq.s32.totalorder %s9, 0
    %p71 = por %p69, %p70
    %p72 = scmp.ne.s32.totalorder %s64, %s66
    %p73 = scmp.eq.s32.totalorder %s14, 1
    %p74 = por %p72, %p73
    %p75 = scmp.ne.s32.totalorder %s66, %s67
    %p76 = scmp.eq.s32.totalorder %s14, 0
    %p77 = por %p75, %p76
    %p78 = scmp.ne.s32.totalorder %s66, %s67
    %p79 = scmp.eq.s32.totalorder %s15, 1
    %p80 = por %p78, %p79
    %p82 = scmp.ne.s32.totalorder %s67, %s81
    %p83 = scmp.eq.s32.totalorder %s15, 0
    %p84 = por %p82, %p83
    %s85 = ssub.s32 %s9, %s16
    %p86 = scmp.eq.s32.totalorder %s85, 0
    %s88 = sadd.s32 %s87, 1
    %s89 = scalar_select %p86, %s87, %s88
    %p92 = pneg %p86
    %p93 = scmp.eq.s32.totalorder %s9, 1
    %p94 = por %p92, %p93
    %p95 = scmp.ne.s32.totalorder %s87, %s90
    %p96 = scmp.eq.s32.totalorder %s9, 0
    %p97 = por %p95, %p96
    %p98 = scmp.ne.s32.totalorder %s87, %s90
    %p99 = scmp.eq.s32.totalorder %s14, 1
    %p100 = por %p98, %p99
    %p101 = scmp.ne.s32.totalorder %s90, %s91
    %p102 = scmp.eq.s32.totalorder %s14, 0
    %p103 = por %p101, %p102
    %p104 = scmp.ne.s32.totalorder %s90, %s91
    %p105 = scmp.eq.s32.totalorder %s15, 1
    %p106 = por %p104, %p105
    %p108 = scmp.ne.s32.totalorder %s91, %s107
    %p109 = scmp.eq.s32.totalorder %s15, 0
    %p110 = por %p108, %p109
    %p111 = scmp.le.s32.totalorder 1, %s9
    %p112 = scmp.lt.s32.totalorder %s9, 3
    %p113 = pnand %p111, %p112
    %p114 = pneg %p113
    // Predicated region
    $region9: #{discriminator_forward.4} parent=5 // pred_check
      _
    $region10: #{discriminator_forward.4} parent=5 // pred_check_branch
      %116 = sbr.rel (%p113) target = $region12
    $region11: #{discriminator_forward.4} parent=5 // pred_region
      %s117 = ssub.s32 %s9, 1
      // Predicated region
      $region13: #{discriminator_forward.4} parent=11 // pred_check
        %p118 = pneg %p56
      $region14: #{discriminator_forward.4} parent=11 // pred_check_branch
        %120 = sbr.rel (%p118) target = $region16
      $region15: #{discriminator_forward.4} parent=11 // pred_region
        _
      $region16: #{discriminator_forward.4} parent=11 // pred_fallthru
        _
      // Predicated region
      $region17: #{discriminator_forward.4} parent=11 // pred_check
        %p121 = pneg %p77
      $region18: #{discriminator_forward.4} parent=11 // pred_check_branch
        %123 = sbr.rel (%p121) target = $region20
      $region19: #{discriminator_forward.4} parent=11 // pred_region
        _
      $region20: #{discriminator_forward.4} parent=11 // pred_fallthru
        _
    $region12: #{discriminator_forward.4} parent=5 // pred_fallthru
      _
    %p124 = scmp.lt.s32.totalorder %s9, 2
    // Predicated region
    $region21: #{discriminator_forward.4} parent=5 // pred_check
      %p125 = pneg %p124
    $region22: #{discriminator_forward.4} parent=5 // pred_check_branch
      %127 = sbr.rel (%p125) target = $region24
    $region23: #{discriminator_forward.4} parent=5 // pred_region
      // Predicated region
      $region25: #{discriminator_forward.4} parent=23 // pred_check
        %p128 = pneg %p29
      $region26: #{discriminator_forward.4} parent=23 // pred_check_branch
        %130 = sbr.rel (%p128) target = $region28
      $region27: #{discriminator_forward.4} parent=23 // pred_region
        %s131 = smul.u32 8, %s9
        %p132 = scmp.lt.s32.totalorder %s131, 15
        %s133 = scalar_select %p132, %s131, 15
        %s134 = smul.addr %s133, 16
        %s135 = smul.addr %s134, 4
        %s136 = scalar_lea.vmem %s0, %s135
        %s137 = smul.u32 8, %s9
      $region28: #{discriminator_forward.4} parent=23 // pred_fallthru
        _
    $region24: #{discriminator_forward.4} parent=5 // pred_fallthru
      _
    %p138 = scmp.le.s32.totalorder 1, %s9
    %p139 = scmp.lt.s32.totalorder %s9, 3
    %p140 = pnand %p138, %p139
    %p141 = pneg %p140
    // Predicated region
    $region29: #{discriminator_forward.4} parent=5 // pred_check
      _
    $region30: #{discriminator_forward.4} parent=5 // pred_check_branch
      %143 = sbr.rel (%p140) target = $region32
    $region31: #{discriminator_forward.4} parent=5 // pred_region
      %s144 = ssub.s32 %s9, 1
      %s145 = smul.u32 8, %s14
      %p146 = scmp.lt.s32.totalorder %s145, 15
      %s147 = scalar_select %p146, %s145, 15
      %s148 = smul.addr %s147, 16
      %s149 = smul.addr %s148, 4
      %s150 = scalar_lea.vmem %s0, %s149
      %p151 = pneg %p35
      %p152 = pneg %p32
      %p153 = pneg %p56
      %p154 = pneg %p53
      %p155 = pneg %p77
      %p156 = pneg %p74
      %p157 = pneg %p103
      %p158 = pneg %p100
      %s159 = smul.u32 8, %s14
      %p160 = scmp.lt.s32.totalorder %s159, 15
      %s161 = scalar_select %p160, %s159, 15
      %s162 = smul.addr %s161, 4
      %s163 = scalar_lea.vmem %s3, %s162
      %s164 = smul.u32 8, %s14
      %p165 = scmp.lt.s32.totalorder %s164, 15
      %s166 = scalar_select %p165, %s164, 15
      %s167 = smul.addr %s166, 16
      %s168 = smul.addr %s167, 4
      %s169 = scalar_lea.vmem %s0, %s168
      %s170 = smul.u32 8, %s14
      %s171 = smul.u32 8, %s14
      %p172 = scmp.lt.s32.totalorder %s171, 15
      %s173 = scalar_select %p172, %s171, 15
      %s174 = smul.addr %s173, 4
      %s175 = scalar_lea.vmem %s3, %s174
      %s176 = smul.u32 8, %s14
      %v178 = vld [vmem:[%s169] sm:$0xff]
      %v179 = vld [vmem:[%s169 + $0x8] sm:$0xff]
      %v180 = vld [vmem:[%s169 + $0x10] sm:$0xff]
      %v181 = vld [vmem:[%s169 + $0x18] sm:$0xff]
      %v182 = vld [vmem:[%s169 + $0x20] sm:$0xff]
      %v183 = vld [vmem:[%s169 + $0x28] sm:$0xff]
      %v184 = vld [vmem:[%s169 + $0x30] sm:$0xff]
      %v185 = vld [vmem:[%s169 + $0x38] sm:$0xff]
      %v186 = vld [vmem:[%s169 + $0x40] sm:$0xff]
      %v187 = vld [vmem:[%s169 + $0x48] sm:$0xff]
      %v188 = vld [vmem:[%s169 + $0x50] sm:$0xff]
      %v189 = vld [vmem:[%s169 + $0x58] sm:$0xff]
      %v190 = vld [vmem:[%s169 + $0x60] sm:$0xff]
      %v191 = vld [vmem:[%s169 + $0x68] sm:$0xff]
      %v192 = vld [vmem:[%s169 + $0x70] sm:$0xff]
      %v193 = vld [vmem:[%s169 + $0x78] sm:$0xff]
      %v194 = vld [vmem:[%s169 + $0x80] sm:$0xff]
      %v195 = vld [vmem:[%s169 + $0x88] sm:$0xff]
      %v196 = vld [vmem:[%s169 + $0x90] sm:$0xff]
      %v197 = vld [vmem:[%s169 + $0x98] sm:$0xff]
      %v198 = vld [vmem:[%s169 + $0xa0] sm:$0xff]
      %v199 = vld [vmem:[%s169 + $0xa8] sm:$0xff]
      %v200 = vld [vmem:[%s169 + $0xb0] sm:$0xff]
      %v201 = vld [vmem:[%s169 + $0xb8] sm:$0xff]
      %v202 = vld [vmem:[%s169 + $0xc0] sm:$0xff]
      %v203 = vld [vmem:[%s169 + $0xc8] sm:$0xff]
      %v204 = vld [vmem:[%s169 + $0xd0] sm:$0xff]
      %v205 = vld [vmem:[%s169 + $0xd8] sm:$0xff]
      %v206 = vld [vmem:[%s169 + $0xe0] sm:$0xff]
      %v207 = vld [vmem:[%s169 + $0xe8] sm:$0xff]
      %v208 = vld [vmem:[%s169 + $0xf0] sm:$0xff]
      %v209 = vld [vmem:[%s169 + $0xf8] sm:$0xff]
      %v210 = vld [vmem:[%s169 + $0x100] sm:$0xff]
      %v211 = vld [vmem:[%s169 + $0x108] sm:$0xff]
      %v212 = vld [vmem:[%s169 + $0x110] sm:$0xff]
      %v213 = vld [vmem:[%s169 + $0x118] sm:$0xff]
      %v214 = vld [vmem:[%s169 + $0x120] sm:$0xff]
      %v215 = vld [vmem:[%s169 + $0x128] sm:$0xff]
      %v216 = vld [vmem:[%s169 + $0x130] sm:$0xff]
      %v217 = vld [vmem:[%s169 + $0x138] sm:$0xff]
      %v218 = vld [vmem:[%s169 + $0x140] sm:$0xff]
      %v219 = vld [vmem:[%s169 + $0x148] sm:$0xff]
      %v220 = vld [vmem:[%s169 + $0x150] sm:$0xff]
      %v221 = vld [vmem:[%s169 + $0x158] sm:$0xff]
      %v222 = vld [vmem:[%s169 + $0x160] sm:$0xff]
      %v223 = vld [vmem:[%s169 + $0x168] sm:$0xff]
      %v224 = vld [vmem:[%s169 + $0x170] sm:$0xff]
      %v225 = vld [vmem:[%s169 + $0x178] sm:$0xff]
      %v226 = vld [vmem:[%s169 + $0x180] sm:$0xff]
      %v227 = vld [vmem:[%s169 + $0x188] sm:$0xff]
      %v228 = vld [vmem:[%s169 + $0x190] sm:$0xff]
      %v229 = vld [vmem:[%s169 + $0x198] sm:$0xff]
      %v230 = vld [vmem:[%s169 + $0x1a0] sm:$0xff]
      %v231 = vld [vmem:[%s169 + $0x1a8] sm:$0xff]
      %v232 = vld [vmem:[%s169 + $0x1b0] sm:$0xff]
      %v233 = vld [vmem:[%s169 + $0x1b8] sm:$0xff]
      %v234 = vld [vmem:[%s169 + $0x1c0] sm:$0xff]
      %v235 = vld [vmem:[%s169 + $0x1c8] sm:$0xff]
      %v236 = vld [vmem:[%s169 + $0x1d0] sm:$0xff]
      %v237 = vld [vmem:[%s169 + $0x1d8] sm:$0xff]
      %v238 = vld [vmem:[%s169 + $0x1e0] sm:$0xff]
      %v239 = vld [vmem:[%s169 + $0x1e8] sm:$0xff]
      %v240 = vld [vmem:[%s169 + $0x1f0] sm:$0xff]
      %v241 = vld [vmem:[%s169 + $0x1f8] sm:$0xff]
      %v242 = vld [vmem:[%s1] sm:$0xf]
      %v243 = vld [vmem:[%s1 + $0x4] sm:$0xf]
      %v244 = vld [vmem:[%s1 + $0x8] sm:$0xf]
      %v245 = vld [vmem:[%s1 + $0xc] sm:$0xf]
      %v246 = vld [vmem:[%s1 + $0x10] sm:$0xf]
      %v247 = vld [vmem:[%s1 + $0x14] sm:$0xf]
      %v248 = vld [vmem:[%s1 + $0x18] sm:$0xf]
      %v249 = vld [vmem:[%s1 + $0x1c] sm:$0xf]
      %v250 = vld [vmem:[%s1 + $0x20] sm:$0xf]
      %v251 = vld [vmem:[%s1 + $0x24] sm:$0xf]
      %v252 = vld [vmem:[%s1 + $0x28] sm:$0xf]
      %v253 = vld [vmem:[%s1 + $0x2c] sm:$0xf]
      %v254 = vld [vmem:[%s1 + $0x30] sm:$0xf]
      %v255 = vld [vmem:[%s1 + $0x34] sm:$0xf]
      %v256 = vld [vmem:[%s1 + $0x38] sm:$0xf]
      %v257 = vld [vmem:[%s1 + $0x3c] sm:$0xf]
      %v258 = vld [vmem:[%s1 + $0x40] sm:$0xf]
      %v259 = vld [vmem:[%s1 + $0x44] sm:$0xf]
      %v260 = vld [vmem:[%s1 + $0x48] sm:$0xf]
      %v261 = vld [vmem:[%s1 + $0x4c] sm:$0xf]
      %v262 = vld [vmem:[%s1 + $0x50] sm:$0xf]
      %v263 = vld [vmem:[%s1 + $0x54] sm:$0xf]
      %v264 = vld [vmem:[%s1 + $0x58] sm:$0xf]
      %v265 = vld [vmem:[%s1 + $0x5c] sm:$0xf]
      %v266 = vld [vmem:[%s1 + $0x60] sm:$0xf]
      %v267 = vld [vmem:[%s1 + $0x64] sm:$0xf]
      %v268 = vld [vmem:[%s1 + $0x68] sm:$0xf]
      %v269 = vld [vmem:[%s1 + $0x6c] sm:$0xf]
      %v270 = vld [vmem:[%s1 + $0x70] sm:$0xf]
      %v271 = vld [vmem:[%s1 + $0x74] sm:$0xf]
      %v272 = vld [vmem:[%s1 + $0x78] sm:$0xf]
      %v273 = vld [vmem:[%s1 + $0x7c] sm:$0xf]
      %v274 = vld [vmem:[%s1 + $0x80] sm:$0xf]
      %v275 = vld [vmem:[%s1 + $0x84] sm:$0xf]
      %v276 = vld [vmem:[%s1 + $0x88] sm:$0xf]
      %v277 = vld [vmem:[%s1 + $0x8c] sm:$0xf]
      %v278 = vld [vmem:[%s1 + $0x90] sm:$0xf]
      %v279 = vld [vmem:[%s1 + $0x94] sm:$0xf]
      %v280 = vld [vmem:[%s1 + $0x98] sm:$0xf]
      %v281 = vld [vmem:[%s1 + $0x9c] sm:$0xf]
      %v282 = vld [vmem:[%s1 + $0xa0] sm:$0xf]
      %v283 = vld [vmem:[%s1 + $0xa4] sm:$0xf]
      %v284 = vld [vmem:[%s1 + $0xa8] sm:$0xf]
      %v285 = vld [vmem:[%s1 + $0xac] sm:$0xf]
      %v286 = vld [vmem:[%s1 + $0xb0] sm:$0xf]
      %v287 = vld [vmem:[%s1 + $0xb4] sm:$0xf]
      %v288 = vld [vmem:[%s1 + $0xb8] sm:$0xf]
      %v289 = vld [vmem:[%s1 + $0xbc] sm:$0xf]
      %v290 = vld [vmem:[%s1 + $0xc0] sm:$0xf]
      %v291 = vld [vmem:[%s1 + $0xc4] sm:$0xf]
      %v292 = vld [vmem:[%s1 + $0xc8] sm:$0xf]
      %v293 = vld [vmem:[%s1 + $0xcc] sm:$0xf]
      %v294 = vld [vmem:[%s1 + $0xd0] sm:$0xf]
      %v295 = vld [vmem:[%s1 + $0xd4] sm:$0xf]
      %v296 = vld [vmem:[%s1 + $0xd8] sm:$0xf]
      %v297 = vld [vmem:[%s1 + $0xdc] sm:$0xf]
      %v298 = vld [vmem:[%s1 + $0xe0] sm:$0xf]
      %v299 = vld [vmem:[%s1 + $0xe4] sm:$0xf]
      %v300 = vld [vmem:[%s1 + $0xe8] sm:$0xf]
      %v301 = vld [vmem:[%s1 + $0xec] sm:$0xf]
      %v302 = vld [vmem:[%s1 + $0xf0] sm:$0xf]
      %v303 = vld [vmem:[%s1 + $0xf4] sm:$0xf]
      %v304 = vld [vmem:[%s1 + $0xf8] sm:$0xf]
      %v305 = vld [vmem:[%s1 + $0xfc] sm:$0xf]
      %v306 = vld [vmem:[%s1 + $0x100] sm:$0xf]
      %v307 = vld [vmem:[%s1 + $0x104] sm:$0xf]
      %v308 = vld [vmem:[%s1 + $0x108] sm:$0xf]
      %v309 = vld [vmem:[%s1 + $0x10c] sm:$0xf]
      %v310 = vld [vmem:[%s1 + $0x110] sm:$0xf]
      %v311 = vld [vmem:[%s1 + $0x114] sm:$0xf]
      %v312 = vld [vmem:[%s1 + $0x118] sm:$0xf]
      %v313 = vld [vmem:[%s1 + $0x11c] sm:$0xf]
      %v314 = vld [vmem:[%s1 + $0x120] sm:$0xf]
      %v315 = vld [vmem:[%s1 + $0x124] sm:$0xf]
      %v316 = vld [vmem:[%s1 + $0x128] sm:$0xf]
      %v317 = vld [vmem:[%s1 + $0x12c] sm:$0xf]
      %v318 = vld [vmem:[%s1 + $0x130] sm:$0xf]
      %v319 = vld [vmem:[%s1 + $0x134] sm:$0xf]
      %v320 = vld [vmem:[%s1 + $0x138] sm:$0xf]
      %v321 = vld [vmem:[%s1 + $0x13c] sm:$0xf]
      %v322 = vld [vmem:[%s1 + $0x140] sm:$0xf]
      %v323 = vld [vmem:[%s1 + $0x144] sm:$0xf]
      %v324 = vld [vmem:[%s1 + $0x148] sm:$0xf]
      %v325 = vld [vmem:[%s1 + $0x14c] sm:$0xf]
      %v326 = vld [vmem:[%s1 + $0x150] sm:$0xf]
      %v327 = vld [vmem:[%s1 + $0x154] sm:$0xf]
      %v328 = vld [vmem:[%s1 + $0x158] sm:$0xf]
      %v329 = vld [vmem:[%s1 + $0x15c] sm:$0xf]
      %v330 = vld [vmem:[%s1 + $0x160] sm:$0xf]
      %v331 = vld [vmem:[%s1 + $0x164] sm:$0xf]
      %v332 = vld [vmem:[%s1 + $0x168] sm:$0xf]
      %v333 = vld [vmem:[%s1 + $0x16c] sm:$0xf]
      %v334 = vld [vmem:[%s1 + $0x170] sm:$0xf]
      %v335 = vld [vmem:[%s1 + $0x174] sm:$0xf]
      %v336 = vld [vmem:[%s1 + $0x178] sm:$0xf]
      %v337 = vld [vmem:[%s1 + $0x17c] sm:$0xf]
      %v338 = vld [vmem:[%s1 + $0x180] sm:$0xf]
      %v339 = vld [vmem:[%s1 + $0x184] sm:$0xf]
      %v340 = vld [vmem:[%s1 + $0x188] sm:$0xf]
      %v341 = vld [vmem:[%s1 + $0x18c] sm:$0xf]
      %v342 = vld [vmem:[%s1 + $0x190] sm:$0xf]
      %v343 = vld [vmem:[%s1 + $0x194] sm:$0xf]
      %v344 = vld [vmem:[%s1 + $0x198] sm:$0xf]
      %v345 = vld [vmem:[%s1 + $0x19c] sm:$0xf]
      %v346 = vld [vmem:[%s1 + $0x1a0] sm:$0xf]
      %v347 = vld [vmem:[%s1 + $0x1a4] sm:$0xf]
      %v348 = vld [vmem:[%s1 + $0x1a8] sm:$0xf]
      %v349 = vld [vmem:[%s1 + $0x1ac] sm:$0xf]
      %v350 = vld [vmem:[%s1 + $0x1b0] sm:$0xf]
      %v351 = vld [vmem:[%s1 + $0x1b4] sm:$0xf]
      %v352 = vld [vmem:[%s1 + $0x1b8] sm:$0xf]
      %v353 = vld [vmem:[%s1 + $0x1bc] sm:$0xf]
      %v354 = vld [vmem:[%s1 + $0x1c0] sm:$0xf]
      %v355 = vld [vmem:[%s1 + $0x1c4] sm:$0xf]
      %v356 = vld [vmem:[%s1 + $0x1c8] sm:$0xf]
      %v357 = vld [vmem:[%s1 + $0x1cc] sm:$0xf]
      %v358 = vld [vmem:[%s1 + $0x1d0] sm:$0xf]
      %v359 = vld [vmem:[%s1 + $0x1d4] sm:$0xf]
      %v360 = vld [vmem:[%s1 + $0x1d8] sm:$0xf]
      %v361 = vld [vmem:[%s1 + $0x1dc] sm:$0xf]
      %v362 = vld [vmem:[%s1 + $0x1e0] sm:$0xf]
      %v363 = vld [vmem:[%s1 + $0x1e4] sm:$0xf]
      %v364 = vld [vmem:[%s1 + $0x1e8] sm:$0xf]
      %v365 = vld [vmem:[%s1 + $0x1ec] sm:$0xf]
      %v366 = vld [vmem:[%s1 + $0x1f0] sm:$0xf]
      %v367 = vld [vmem:[%s1 + $0x1f4] sm:$0xf]
      %v368 = vld [vmem:[%s1 + $0x1f8] sm:$0xf]
      %v369 = vld [vmem:[%s1 + $0x1fc] sm:$0xf]
      %v370 = vld [vmem:[%s1 + $0x200] sm:$0xf]
      %v371 = vld [vmem:[%s1 + $0x204] sm:$0xf]
      %v372 = vld [vmem:[%s1 + $0x208] sm:$0xf]
      %v373 = vld [vmem:[%s1 + $0x20c] sm:$0xf]
      %v374 = vld [vmem:[%s1 + $0x210] sm:$0xf]
      %v375 = vld [vmem:[%s1 + $0x214] sm:$0xf]
      %v376 = vld [vmem:[%s1 + $0x218] sm:$0xf]
      %v377 = vld [vmem:[%s1 + $0x21c] sm:$0xf]
      %v378 = vld [vmem:[%s1 + $0x220] sm:$0xf]
      %v379 = vld [vmem:[%s1 + $0x224] sm:$0xf]
      %v380 = vld [vmem:[%s1 + $0x228] sm:$0xf]
      %v381 = vld [vmem:[%s1 + $0x22c] sm:$0xf]
      %v382 = vld [vmem:[%s1 + $0x230] sm:$0xf]
      %v383 = vld [vmem:[%s1 + $0x234] sm:$0xf]
      %v384 = vld [vmem:[%s1 + $0x238] sm:$0xf]
      %v385 = vld [vmem:[%s1 + $0x23c] sm:$0xf]
      %v386 = vld [vmem:[%s1 + $0x240] sm:$0xf]
      %v387 = vld [vmem:[%s1 + $0x244] sm:$0xf]
      %v388 = vld [vmem:[%s1 + $0x248] sm:$0xf]
      %v389 = vld [vmem:[%s1 + $0x24c] sm:$0xf]
      %v390 = vld [vmem:[%s1 + $0x250] sm:$0xf]
      %v391 = vld [vmem:[%s1 + $0x254] sm:$0xf]
      %v392 = vld [vmem:[%s1 + $0x258] sm:$0xf]
      %v393 = vld [vmem:[%s1 + $0x25c] sm:$0xf]
      %v394 = vld [vmem:[%s1 + $0x260] sm:$0xf]
      %v395 = vld [vmem:[%s1 + $0x264] sm:$0xf]
      %v396 = vld [vmem:[%s1 + $0x268] sm:$0xf]
      %v397 = vld [vmem:[%s1 + $0x26c] sm:$0xf]
      %v398 = vld [vmem:[%s1 + $0x270] sm:$0xf]
      %v399 = vld [vmem:[%s1 + $0x274] sm:$0xf]
      %v400 = vld [vmem:[%s1 + $0x278] sm:$0xf]
      %v401 = vld [vmem:[%s1 + $0x27c] sm:$0xf]
      %v402 = vld [vmem:[%s1 + $0x280] sm:$0xf]
      %v403 = vld [vmem:[%s1 + $0x284] sm:$0xf]
      %v404 = vld [vmem:[%s1 + $0x288] sm:$0xf]
      %v405 = vld [vmem:[%s1 + $0x28c] sm:$0xf]
      %v406 = vld [vmem:[%s1 + $0x290] sm:$0xf]
      %v407 = vld [vmem:[%s1 + $0x294] sm:$0xf]
      %v408 = vld [vmem:[%s1 + $0x298] sm:$0xf]
      %v409 = vld [vmem:[%s1 + $0x29c] sm:$0xf]
      %v410 = vld [vmem:[%s1 + $0x2a0] sm:$0xf]
      %v411 = vld [vmem:[%s1 + $0x2a4] sm:$0xf]
      %v412 = vld [vmem:[%s1 + $0x2a8] sm:$0xf]
      %v413 = vld [vmem:[%s1 + $0x2ac] sm:$0xf]
      %v414 = vld [vmem:[%s1 + $0x2b0] sm:$0xf]
      %v415 = vld [vmem:[%s1 + $0x2b4] sm:$0xf]
      %v416 = vld [vmem:[%s1 + $0x2b8] sm:$0xf]
      %v417 = vld [vmem:[%s1 + $0x2bc] sm:$0xf]
      %v418 = vld [vmem:[%s1 + $0x2c0] sm:$0xf]
      %v419 = vld [vmem:[%s1 + $0x2c4] sm:$0xf]
      %v420 = vld [vmem:[%s1 + $0x2c8] sm:$0xf]
      %v421 = vld [vmem:[%s1 + $0x2cc] sm:$0xf]
      %v422 = vld [vmem:[%s1 + $0x2d0] sm:$0xf]
      %v423 = vld [vmem:[%s1 + $0x2d4] sm:$0xf]
      %v424 = vld [vmem:[%s1 + $0x2d8] sm:$0xf]
      %v425 = vld [vmem:[%s1 + $0x2dc] sm:$0xf]
      %v426 = vld [vmem:[%s1 + $0x2e0] sm:$0xf]
      %v427 = vld [vmem:[%s1 + $0x2e4] sm:$0xf]
      %v428 = vld [vmem:[%s1 + $0x2e8] sm:$0xf]
      %v429 = vld [vmem:[%s1 + $0x2ec] sm:$0xf]
      %v430 = vld [vmem:[%s1 + $0x2f0] sm:$0xf]
      %v431 = vld [vmem:[%s1 + $0x2f4] sm:$0xf]
      %v432 = vld [vmem:[%s1 + $0x2f8] sm:$0xf]
      %v433 = vld [vmem:[%s1 + $0x2fc] sm:$0xf]
      %v434 = vld [vmem:[%s1 + $0x300] sm:$0xf]
      %v435 = vld [vmem:[%s1 + $0x304] sm:$0xf]
      %v436 = vld [vmem:[%s1 + $0x308] sm:$0xf]
      %v437 = vld [vmem:[%s1 + $0x30c] sm:$0xf]
      %v438 = vld [vmem:[%s1 + $0x310] sm:$0xf]
      %v439 = vld [vmem:[%s1 + $0x314] sm:$0xf]
      %v440 = vld [vmem:[%s1 + $0x318] sm:$0xf]
      %v441 = vld [vmem:[%s1 + $0x31c] sm:$0xf]
      %v442 = vld [vmem:[%s1 + $0x320] sm:$0xf]
      %v443 = vld [vmem:[%s1 + $0x324] sm:$0xf]
      %v444 = vld [vmem:[%s1 + $0x328] sm:$0xf]
      %v445 = vld [vmem:[%s1 + $0x32c] sm:$0xf]
      %v446 = vld [vmem:[%s1 + $0x330] sm:$0xf]
      %v447 = vld [vmem:[%s1 + $0x334] sm:$0xf]
      %v448 = vld [vmem:[%s1 + $0x338] sm:$0xf]
      %v449 = vld [vmem:[%s1 + $0x33c] sm:$0xf]
      %v450 = vld [vmem:[%s1 + $0x340] sm:$0xf]
      %v451 = vld [vmem:[%s1 + $0x344] sm:$0xf]
      %v452 = vld [vmem:[%s1 + $0x348] sm:$0xf]
      %v453 = vld [vmem:[%s1 + $0x34c] sm:$0xf]
      %v454 = vld [vmem:[%s1 + $0x350] sm:$0xf]
      %v455 = vld [vmem:[%s1 + $0x354] sm:$0xf]
      %v456 = vld [vmem:[%s1 + $0x358] sm:$0xf]
      %v457 = vld [vmem:[%s1 + $0x35c] sm:$0xf]
      %v458 = vld [vmem:[%s1 + $0x360] sm:$0xf]
      %v459 = vld [vmem:[%s1 + $0x364] sm:$0xf]
      %v460 = vld [vmem:[%s1 + $0x368] sm:$0xf]
      %v461 = vld [vmem:[%s1 + $0x36c] sm:$0xf]
      %v462 = vld [vmem:[%s1 + $0x370] sm:$0xf]
      %v463 = vld [vmem:[%s1 + $0x374] sm:$0xf]
      %v464 = vld [vmem:[%s1 + $0x378] sm:$0xf]
      %v465 = vld [vmem:[%s1 + $0x37c] sm:$0xf]
      %v466 = vld [vmem:[%s1 + $0x380] sm:$0xf]
      %v467 = vld [vmem:[%s1 + $0x384] sm:$0xf]
      %v468 = vld [vmem:[%s1 + $0x388] sm:$0xf]
      %v469 = vld [vmem:[%s1 + $0x38c] sm:$0xf]
      %v470 = vld [vmem:[%s1 + $0x390] sm:$0xf]
      %v471 = vld [vmem:[%s1 + $0x394] sm:$0xf]
      %v472 = vld [vmem:[%s1 + $0x398] sm:$0xf]
      %v473 = vld [vmem:[%s1 + $0x39c] sm:$0xf]
      %v474 = vld [vmem:[%s1 + $0x3a0] sm:$0xf]
      %v475 = vld [vmem:[%s1 + $0x3a4] sm:$0xf]
      %v476 = vld [vmem:[%s1 + $0x3a8] sm:$0xf]
      %v477 = vld [vmem:[%s1 + $0x3ac] sm:$0xf]
      %v478 = vld [vmem:[%s1 + $0x3b0] sm:$0xf]
      %v479 = vld [vmem:[%s1 + $0x3b4] sm:$0xf]
      %v480 = vld [vmem:[%s1 + $0x3b8] sm:$0xf]
      %v481 = vld [vmem:[%s1 + $0x3bc] sm:$0xf]
      %v482 = vld [vmem:[%s1 + $0x3c0] sm:$0xf]
      %v483 = vld [vmem:[%s1 + $0x3c4] sm:$0xf]
      %v484 = vld [vmem:[%s1 + $0x3c8] sm:$0xf]
      %v485 = vld [vmem:[%s1 + $0x3cc] sm:$0xf]
      %v486 = vld [vmem:[%s1 + $0x3d0] sm:$0xf]
      %v487 = vld [vmem:[%s1 + $0x3d4] sm:$0xf]
      %v488 = vld [vmem:[%s1 + $0x3d8] sm:$0xf]
      %v489 = vld [vmem:[%s1 + $0x3dc] sm:$0xf]
      %v490 = vld [vmem:[%s1 + $0x3e0] sm:$0xf]
      %v491 = vld [vmem:[%s1 + $0x3e4] sm:$0xf]
      %v492 = vld [vmem:[%s1 + $0x3e8] sm:$0xf]
      %v493 = vld [vmem:[%s1 + $0x3ec] sm:$0xf]
      %v494 = vld [vmem:[%s1 + $0x3f0] sm:$0xf]
      %v495 = vld [vmem:[%s1 + $0x3f4] sm:$0xf]
      %v496 = vld [vmem:[%s1 + $0x3f8] sm:$0xf]
      %v497 = vld [vmem:[%s1 + $0x3fc] sm:$0xf]
      %v498 = vld [vmem:[%s2] sm:$0x1]
      %v500 = vlaneseq
      %v501 = vshrl.u32 %v500, 7
      %v502 = vsub.s32 0, %v501
      %v503 = vrot.slane %v498, %v502
      %v569 = vunpack.c.l.b16 %v178
      %v570 = vunpack.c.h.b16 %v178
      %v571 = vunpack.c.l.b16 %v179
      %v572 = vunpack.c.h.b16 %v179
      %v573 = vunpack.c.l.b16 %v180
      %v574 = vunpack.c.h.b16 %v180
      %v575 = vunpack.c.l.b16 %v181
      %v576 = vunpack.c.h.b16 %v181
      %v577 = vunpack.c.l.b16 %v182
      %v578 = vunpack.c.h.b16 %v182
      %v579 = vunpack.c.l.b16 %v183
      %v580 = vunpack.c.h.b16 %v183
      %v581 = vunpack.c.l.b16 %v184
      %v582 = vunpack.c.h.b16 %v184
      %v583 = vunpack.c.l.b16 %v185
      %v584 = vunpack.c.h.b16 %v185
      %v585 = vunpack.c.l.b16 %v186
      %v586 = vunpack.c.h.b16 %v186
      %v587 = vunpack.c.l.b16 %v187
      %v588 = vunpack.c.h.b16 %v187
      %v589 = vunpack.c.l.b16 %v188
      %v590 = vunpack.c.h.b16 %v188
      %v591 = vunpack.c.l.b16 %v189
      %v592 = vunpack.c.h.b16 %v189
      %v593 = vunpack.c.l.b16 %v190
      %v594 = vunpack.c.h.b16 %v190
      %v595 = vunpack.c.l.b16 %v191
      %v596 = vunpack.c.h.b16 %v191
      %v597 = vunpack.c.l.b16 %v192
      %v598 = vunpack.c.h.b16 %v192
      %v599 = vunpack.c.l.b16 %v193
      %v600 = vunpack.c.h.b16 %v193
      %v601 = vunpack.c.l.b16 %v194
      %v602 = vunpack.c.h.b16 %v194
      %v603 = vunpack.c.l.b16 %v195
      %v604 = vunpack.c.h.b16 %v195
      %v605 = vunpack.c.l.b16 %v196
      %v606 = vunpack.c.h.b16 %v196
      %v607 = vunpack.c.l.b16 %v197
      %v608 = vunpack.c.h.b16 %v197
      %v609 = vunpack.c.l.b16 %v198
      %v610 = vunpack.c.h.b16 %v198
      %v611 = vunpack.c.l.b16 %v199
      %v612 = vunpack.c.h.b16 %v199
      %v613 = vunpack.c.l.b16 %v200
      %v614 = vunpack.c.h.b16 %v200
      %v615 = vunpack.c.l.b16 %v201
      %v616 = vunpack.c.h.b16 %v201
      %v617 = vunpack.c.l.b16 %v202
      %v618 = vunpack.c.h.b16 %v202
      %v619 = vunpack.c.l.b16 %v203
      %v620 = vunpack.c.h.b16 %v203
      %v621 = vunpack.c.l.b16 %v204
      %v622 = vunpack.c.h.b16 %v204
      %v623 = vunpack.c.l.b16 %v205
      %v624 = vunpack.c.h.b16 %v205
      %v625 = vunpack.c.l.b16 %v206
      %v626 = vunpack.c.h.b16 %v206
      %v627 = vunpack.c.l.b16 %v207
      %v628 = vunpack.c.h.b16 %v207
      %v629 = vunpack.c.l.b16 %v208
      %v630 = vunpack.c.h.b16 %v208
      %v631 = vunpack.c.l.b16 %v209
      %v632 = vunpack.c.h.b16 %v209
      %v633 = vunpack.c.l.b16 %v210
      %v634 = vunpack.c.h.b16 %v210
      %v635 = vunpack.c.l.b16 %v211
      %v636 = vunpack.c.h.b16 %v211
      %v637 = vunpack.c.l.b16 %v212
      %v638 = vunpack.c.h.b16 %v212
      %v639 = vunpack.c.l.b16 %v213
      %v640 = vunpack.c.h.b16 %v213
      %v641 = vunpack.c.l.b16 %v214
      %v642 = vunpack.c.h.b16 %v214
      %v643 = vunpack.c.l.b16 %v215
      %v644 = vunpack.c.h.b16 %v215
      %v645 = vunpack.c.l.b16 %v216
      %v646 = vunpack.c.h.b16 %v216
      %v647 = vunpack.c.l.b16 %v217
      %v648 = vunpack.c.h.b16 %v217
      %v649 = vunpack.c.l.b16 %v218
      %v650 = vunpack.c.h.b16 %v218
      %v651 = vunpack.c.l.b16 %v219
      %v652 = vunpack.c.h.b16 %v219
      %v653 = vunpack.c.l.b16 %v220
      %v654 = vunpack.c.h.b16 %v220
      %v655 = vunpack.c.l.b16 %v221
      %v656 = vunpack.c.h.b16 %v221
      %v657 = vunpack.c.l.b16 %v222
      %v658 = vunpack.c.h.b16 %v222
      %v659 = vunpack.c.l.b16 %v223
      %v660 = vunpack.c.h.b16 %v223
      %v661 = vunpack.c.l.b16 %v224
      %v662 = vunpack.c.h.b16 %v224
      %v663 = vunpack.c.l.b16 %v225
      %v664 = vunpack.c.h.b16 %v225
      %v665 = vunpack.c.l.b16 %v226
      %v666 = vunpack.c.h.b16 %v226
      %v667 = vunpack.c.l.b16 %v227
      %v668 = vunpack.c.h.b16 %v227
      %v669 = vunpack.c.l.b16 %v228
      %v670 = vunpack.c.h.b16 %v228
      %v671 = vunpack.c.l.b16 %v229
      %v672 = vunpack.c.h.b16 %v229
      %v673 = vunpack.c.l.b16 %v230
      %v674 = vunpack.c.h.b16 %v230
      %v675 = vunpack.c.l.b16 %v231
      %v676 = vunpack.c.h.b16 %v231
      %v677 = vunpack.c.l.b16 %v232
      %v678 = vunpack.c.h.b16 %v232
      %v679 = vunpack.c.l.b16 %v233
      %v680 = vunpack.c.h.b16 %v233
      %v681 = vunpack.c.l.b16 %v234
      %v682 = vunpack.c.h.b16 %v234
      %v683 = vunpack.c.l.b16 %v235
      %v684 = vunpack.c.h.b16 %v235
      %v685 = vunpack.c.l.b16 %v236
      %v686 = vunpack.c.h.b16 %v236
      %v687 = vunpack.c.l.b16 %v237
      %v688 = vunpack.c.h.b16 %v237
      %v689 = vunpack.c.l.b16 %v238
      %v690 = vunpack.c.h.b16 %v238
      %v691 = vunpack.c.l.b16 %v239
      %v692 = vunpack.c.h.b16 %v239
      %v693 = vunpack.c.l.b16 %v240
      %v694 = vunpack.c.h.b16 %v240
      %v695 = vunpack.c.l.b16 %v241
      %v696 = vunpack.c.h.b16 %v241
      %v697 = vpack.c.b16 %v585, %v569
      %v698 = vpack.c.b16 %v586, %v570
      %v699 = vpack.c.b16 %v587, %v571
      %v700 = vpack.c.b16 %v588, %v572
      %v701 = vpack.c.b16 %v589, %v573
      %v702 = vpack.c.b16 %v590, %v574
      %v703 = vpack.c.b16 %v591, %v575
      %v704 = vpack.c.b16 %v592, %v576
      %v705 = vpack.c.b16 %v593, %v577
      %v706 = vpack.c.b16 %v594, %v578
      %v707 = vpack.c.b16 %v595, %v579
      %v708 = vpack.c.b16 %v596, %v580
      %v709 = vpack.c.b16 %v597, %v581
      %v710 = vpack.c.b16 %v598, %v582
      %v711 = vpack.c.b16 %v599, %v583
      %v712 = vpack.c.b16 %v600, %v584
      %v713 = vpack.c.b16 %v617, %v601
      %v714 = vpack.c.b16 %v618, %v602
      %v715 = vpack.c.b16 %v619, %v603
      %v716 = vpack.c.b16 %v620, %v604
      %v717 = vpack.c.b16 %v621, %v605
      %v718 = vpack.c.b16 %v622, %v606
      %v719 = vpack.c.b16 %v623, %v607
      %v720 = vpack.c.b16 %v624, %v608
      %v721 = vpack.c.b16 %v625, %v609
      %v722 = vpack.c.b16 %v626, %v610
      %v723 = vpack.c.b16 %v627, %v611
      %v724 = vpack.c.b16 %v628, %v612
      %v725 = vpack.c.b16 %v629, %v613
      %v726 = vpack.c.b16 %v630, %v614
      %v727 = vpack.c.b16 %v631, %v615
      %v728 = vpack.c.b16 %v632, %v616
      %v729 = vpack.c.b16 %v649, %v633
      %v730 = vpack.c.b16 %v650, %v634
      %v731 = vpack.c.b16 %v651, %v635
      %v732 = vpack.c.b16 %v652, %v636
      %v733 = vpack.c.b16 %v653, %v637
      %v734 = vpack.c.b16 %v654, %v638
      %v735 = vpack.c.b16 %v655, %v639
      %v736 = vpack.c.b16 %v656, %v640
      %v737 = vpack.c.b16 %v657, %v641
      %v738 = vpack.c.b16 %v658, %v642
      %v739 = vpack.c.b16 %v659, %v643
      %v740 = vpack.c.b16 %v660, %v644
      %v741 = vpack.c.b16 %v661, %v645
      %v742 = vpack.c.b16 %v662, %v646
      %v743 = vpack.c.b16 %v663, %v647
      %v744 = vpack.c.b16 %v664, %v648
      %v745 = vpack.c.b16 %v681, %v665
      %v746 = vpack.c.b16 %v682, %v666
      %v747 = vpack.c.b16 %v683, %v667
      %v748 = vpack.c.b16 %v684, %v668
      %v749 = vpack.c.b16 %v685, %v669
      %v750 = vpack.c.b16 %v686, %v670
      %v751 = vpack.c.b16 %v687, %v671
      %v752 = vpack.c.b16 %v688, %v672
      %v753 = vpack.c.b16 %v689, %v673
      %v754 = vpack.c.b16 %v690, %v674
      %v755 = vpack.c.b16 %v691, %v675
      %v756 = vpack.c.b16 %v692, %v676
      %v757 = vpack.c.b16 %v693, %v677
      %v758 = vpack.c.b16 %v694, %v678
      %v759 = vpack.c.b16 %v695, %v679
      %v760 = vpack.c.b16 %v696, %v680
      %v1081 = vunpack.c.l.b16 %v242
      %v1082 = vunpack.c.l.b16 %v243
      %v1083 = vunpack.c.l.b16 %v244
      %v1084 = vunpack.c.l.b16 %v245
      %v1085 = vunpack.c.l.b16 %v246
      %v1086 = vunpack.c.l.b16 %v247
      %v1087 = vunpack.c.l.b16 %v248
      %v1088 = vunpack.c.l.b16 %v249
      %v1089 = vunpack.c.l.b16 %v250
      %v1090 = vunpack.c.l.b16 %v251
      %v1091 = vunpack.c.l.b16 %v252
      %v1092 = vunpack.c.l.b16 %v253
      %v1093 = vunpack.c.l.b16 %v254
      %v1094 = vunpack.c.l.b16 %v255
      %v1095 = vunpack.c.l.b16 %v256
      %v1096 = vunpack.c.l.b16 %v257
      %v1097 = vunpack.c.l.b16 %v258
      %v1098 = vunpack.c.l.b16 %v259
      %v1099 = vunpack.c.l.b16 %v260
      %v1100 = vunpack.c.l.b16 %v261
      %v1101 = vunpack.c.l.b16 %v262
      %v1102 = vunpack.c.l.b16 %v263
      %v1103 = vunpack.c.l.b16 %v264
      %v1104 = vunpack.c.l.b16 %v265
      %v1105 = vunpack.c.l.b16 %v266
      %v1106 = vunpack.c.l.b16 %v267
      %v1107 = vunpack.c.l.b16 %v268
      %v1108 = vunpack.c.l.b16 %v269
      %v1109 = vunpack.c.l.b16 %v270
      %v1110 = vunpack.c.l.b16 %v271
      %v1111 = vunpack.c.l.b16 %v272
      %v1112 = vunpack.c.l.b16 %v273
      %v1113 = vunpack.c.l.b16 %v274
      %v1114 = vunpack.c.l.b16 %v275
      %v1115 = vunpack.c.l.b16 %v276
      %v1116 = vunpack.c.l.b16 %v277
      %v1117 = vunpack.c.l.b16 %v278
      %v1118 = vunpack.c.l.b16 %v279
      %v1119 = vunpack.c.l.b16 %v280
      %v1120 = vunpack.c.l.b16 %v281
      %v1121 = vunpack.c.l.b16 %v282
      %v1122 = vunpack.c.l.b16 %v283
      %v1123 = vunpack.c.l.b16 %v284
      %v1124 = vunpack.c.l.b16 %v285
      %v1125 = vunpack.c.l.b16 %v286
      %v1126 = vunpack.c.l.b16 %v287
      %v1127 = vunpack.c.l.b16 %v288
      %v1128 = vunpack.c.l.b16 %v289
      %v1129 = vunpack.c.l.b16 %v290
      %v1130 = vunpack.c.l.b16 %v291
      %v1131 = vunpack.c.l.b16 %v292
      %v1132 = vunpack.c.l.b16 %v293
      %v1133 = vunpack.c.l.b16 %v294
      %v1134 = vunpack.c.l.b16 %v295
      %v1135 = vunpack.c.l.b16 %v296
      %v1136 = vunpack.c.l.b16 %v297
      %v1137 = vunpack.c.l.b16 %v298
      %v1138 = vunpack.c.l.b16 %v299
      %v1139 = vunpack.c.l.b16 %v300
      %v1140 = vunpack.c.l.b16 %v301
      %v1141 = vunpack.c.l.b16 %v302
      %v1142 = vunpack.c.l.b16 %v303
      %v1143 = vunpack.c.l.b16 %v304
      %v1144 = vunpack.c.l.b16 %v305
      %v1145 = vunpack.c.l.b16 %v306
      %v1146 = vunpack.c.l.b16 %v307
      %v1147 = vunpack.c.l.b16 %v308
      %v1148 = vunpack.c.l.b16 %v309
      %v1149 = vunpack.c.l.b16 %v310
      %v1150 = vunpack.c.l.b16 %v311
      %v1151 = vunpack.c.l.b16 %v312
      %v1152 = vunpack.c.l.b16 %v313
      %v1153 = vunpack.c.l.b16 %v314
      %v1154 = vunpack.c.l.b16 %v315
      %v1155 = vunpack.c.l.b16 %v316
      %v1156 = vunpack.c.l.b16 %v317
      %v1157 = vunpack.c.l.b16 %v318
      %v1158 = vunpack.c.l.b16 %v319
      %v1159 = vunpack.c.l.b16 %v320
      %v1160 = vunpack.c.l.b16 %v321
      %v1161 = vunpack.c.l.b16 %v322
      %v1162 = vunpack.c.l.b16 %v323
      %v1163 = vunpack.c.l.b16 %v324
      %v1164 = vunpack.c.l.b16 %v325
      %v1165 = vunpack.c.l.b16 %v326
      %v1166 = vunpack.c.l.b16 %v327
      %v1167 = vunpack.c.l.b16 %v328
      %v1168 = vunpack.c.l.b16 %v329
      %v1169 = vunpack.c.l.b16 %v330
      %v1170 = vunpack.c.l.b16 %v331
      %v1171 = vunpack.c.l.b16 %v332
      %v1172 = vunpack.c.l.b16 %v333
      %v1173 = vunpack.c.l.b16 %v334
      %v1174 = vunpack.c.l.b16 %v335
      %v1175 = vunpack.c.l.b16 %v336
      %v1176 = vunpack.c.l.b16 %v337
      %v1177 = vunpack.c.l.b16 %v338
      %v1178 = vunpack.c.l.b16 %v339
      %v1179 = vunpack.c.l.b16 %v340
      %v1180 = vunpack.c.l.b16 %v341
      %v1181 = vunpack.c.l.b16 %v342
      %v1182 = vunpack.c.l.b16 %v343
      %v1183 = vunpack.c.l.b16 %v344
      %v1184 = vunpack.c.l.b16 %v345
      %v1185 = vunpack.c.l.b16 %v346
      %v1186 = vunpack.c.l.b16 %v347
      %v1187 = vunpack.c.l.b16 %v348
      %v1188 = vunpack.c.l.b16 %v349
      %v1189 = vunpack.c.l.b16 %v350
      %v1190 = vunpack.c.l.b16 %v351
      %v1191 = vunpack.c.l.b16 %v352
      %v1192 = vunpack.c.l.b16 %v353
      %v1193 = vunpack.c.l.b16 %v354
      %v1194 = vunpack.c.l.b16 %v355
      %v1195 = vunpack.c.l.b16 %v356
      %v1196 = vunpack.c.l.b16 %v357
      %v1197 = vunpack.c.l.b16 %v358
      %v1198 = vunpack.c.l.b16 %v359
      %v1199 = vunpack.c.l.b16 %v360
      %v1200 = vunpack.c.l.b16 %v361
      %v1201 = vunpack.c.l.b16 %v362
      %v1202 = vunpack.c.l.b16 %v363
      %v1203 = vunpack.c.l.b16 %v364
      %v1204 = vunpack.c.l.b16 %v365
      %v1205 = vunpack.c.l.b16 %v366
      %v1206 = vunpack.c.l.b16 %v367
      %v1207 = vunpack.c.l.b16 %v368
      %v1208 = vunpack.c.l.b16 %v369
      %v1209 = vunpack.c.l.b16 %v370
      %v1210 = vunpack.c.l.b16 %v371
      %v1211 = vunpack.c.l.b16 %v372
      %v1212 = vunpack.c.l.b16 %v373
      %v1213 = vunpack.c.l.b16 %v374
      %v1214 = vunpack.c.l.b16 %v375
      %v1215 = vunpack.c.l.b16 %v376
      %v1216 = vunpack.c.l.b16 %v377
      %v1217 = vunpack.c.l.b16 %v378
      %v1218 = vunpack.c.l.b16 %v379
      %v1219 = vunpack.c.l.b16 %v380
      %v1220 = vunpack.c.l.b16 %v381
      %v1221 = vunpack.c.l.b16 %v382
      %v1222 = vunpack.c.l.b16 %v383
      %v1223 = vunpack.c.l.b16 %v384
      %v1224 = vunpack.c.l.b16 %v385
      %v1225 = vunpack.c.l.b16 %v386
      %v1226 = vunpack.c.l.b16 %v387
      %v1227 = vunpack.c.l.b16 %v388
      %v1228 = vunpack.c.l.b16 %v389
      %v1229 = vunpack.c.l.b16 %v390
      %v1230 = vunpack.c.l.b16 %v391
      %v1231 = vunpack.c.l.b16 %v392
      %v1232 = vunpack.c.l.b16 %v393
      %v1233 = vunpack.c.l.b16 %v394
      %v1234 = vunpack.c.l.b16 %v395
      %v1235 = vunpack.c.l.b16 %v396
      %v1236 = vunpack.c.l.b16 %v397
      %v1237 = vunpack.c.l.b16 %v398
      %v1238 = vunpack.c.l.b16 %v399
      %v1239 = vunpack.c.l.b16 %v400
      %v1240 = vunpack.c.l.b16 %v401
      %v1241 = vunpack.c.l.b16 %v402
      %v1242 = vunpack.c.l.b16 %v403
      %v1243 = vunpack.c.l.b16 %v404
      %v1244 = vunpack.c.l.b16 %v405
      %v1245 = vunpack.c.l.b16 %v406
      %v1246 = vunpack.c.l.b16 %v407
      %v1247 = vunpack.c.l.b16 %v408
      %v1248 = vunpack.c.l.b16 %v409
      %v1249 = vunpack.c.l.b16 %v410
      %v1250 = vunpack.c.l.b16 %v411
      %v1251 = vunpack.c.l.b16 %v412
      %v1252 = vunpack.c.l.b16 %v413
      %v1253 = vunpack.c.l.b16 %v414
      %v1254 = vunpack.c.l.b16 %v415
      %v1255 = vunpack.c.l.b16 %v416
      %v1256 = vunpack.c.l.b16 %v417
      %v1257 = vunpack.c.l.b16 %v418
      %v1258 = vunpack.c.l.b16 %v419
      %v1259 = vunpack.c.l.b16 %v420
      %v1260 = vunpack.c.l.b16 %v421
      %v1261 = vunpack.c.l.b16 %v422
      %v1262 = vunpack.c.l.b16 %v423
      %v1263 = vunpack.c.l.b16 %v424
      %v1264 = vunpack.c.l.b16 %v425
      %v1265 = vunpack.c.l.b16 %v426
      %v1266 = vunpack.c.l.b16 %v427
      %v1267 = vunpack.c.l.b16 %v428
      %v1268 = vunpack.c.l.b16 %v429
      %v1269 = vunpack.c.l.b16 %v430
      %v1270 = vunpack.c.l.b16 %v431
      %v1271 = vunpack.c.l.b16 %v432
      %v1272 = vunpack.c.l.b16 %v433
      %v1273 = vunpack.c.l.b16 %v434
      %v1274 = vunpack.c.l.b16 %v435
      %v1275 = vunpack.c.l.b16 %v436
      %v1276 = vunpack.c.l.b16 %v437
      %v1277 = vunpack.c.l.b16 %v438
      %v1278 = vunpack.c.l.b16 %v439
      %v1279 = vunpack.c.l.b16 %v440
      %v1280 = vunpack.c.l.b16 %v441
      %v1281 = vunpack.c.l.b16 %v442
      %v1282 = vunpack.c.l.b16 %v443
      %v1283 = vunpack.c.l.b16 %v444
      %v1284 = vunpack.c.l.b16 %v445
      %v1285 = vunpack.c.l.b16 %v446
      %v1286 = vunpack.c.l.b16 %v447
      %v1287 = vunpack.c.l.b16 %v448
      %v1288 = vunpack.c.l.b16 %v449
      %v1289 = vunpack.c.l.b16 %v450
      %v1290 = vunpack.c.l.b16 %v451
      %v1291 = vunpack.c.l.b16 %v452
      %v1292 = vunpack.c.l.b16 %v453
      %v1293 = vunpack.c.l.b16 %v454
      %v1294 = vunpack.c.l.b16 %v455
      %v1295 = vunpack.c.l.b16 %v456
      %v1296 = vunpack.c.l.b16 %v457
      %v1297 = vunpack.c.l.b16 %v458
      %v1298 = vunpack.c.l.b16 %v459
      %v1299 = vunpack.c.l.b16 %v460
      %v1300 = vunpack.c.l.b16 %v461
      %v1301 = vunpack.c.l.b16 %v462
      %v1302 = vunpack.c.l.b16 %v463
      %v1303 = vunpack.c.l.b16 %v464
      %v1304 = vunpack.c.l.b16 %v465
      %v1305 = vunpack.c.l.b16 %v466
      %v1306 = vunpack.c.l.b16 %v467
      %v1307 = vunpack.c.l.b16 %v468
      %v1308 = vunpack.c.l.b16 %v469
      %v1309 = vunpack.c.l.b16 %v470
      %v1310 = vunpack.c.l.b16 %v471
      %v1311 = vunpack.c.l.b16 %v472
      %v1312 = vunpack.c.l.b16 %v473
      %v1313 = vunpack.c.l.b16 %v474
      %v1314 = vunpack.c.l.b16 %v475
      %v1315 = vunpack.c.l.b16 %v476
      %v1316 = vunpack.c.l.b16 %v477
      %v1317 = vunpack.c.l.b16 %v478
      %v1318 = vunpack.c.l.b16 %v479
      %v1319 = vunpack.c.l.b16 %v480
      %v1320 = vunpack.c.l.b16 %v481
      %v1321 = vunpack.c.l.b16 %v482
      %v1322 = vunpack.c.l.b16 %v483
      %v1323 = vunpack.c.l.b16 %v484
      %v1324 = vunpack.c.l.b16 %v485
      %v1325 = vunpack.c.l.b16 %v486
      %v1326 = vunpack.c.l.b16 %v487
      %v1327 = vunpack.c.l.b16 %v488
      %v1328 = vunpack.c.l.b16 %v489
      %v1329 = vunpack.c.l.b16 %v490
      %v1330 = vunpack.c.l.b16 %v491
      %v1331 = vunpack.c.l.b16 %v492
      %v1332 = vunpack.c.l.b16 %v493
      %v1333 = vunpack.c.l.b16 %v494
      %v1334 = vunpack.c.l.b16 %v495
      %v1335 = vunpack.c.l.b16 %v496
      %v1336 = vunpack.c.l.b16 %v497
      %v1337 = vpack.c.b16 %v1082, %v1081
      %v1338 = vpack.c.b16 %v1084, %v1083
      %v1339 = vpack.c.b16 %v1086, %v1085
      %v1340 = vpack.c.b16 %v1088, %v1087
      %v1341 = vpack.c.b16 %v1090, %v1089
      %v1342 = vpack.c.b16 %v1092, %v1091
      %v1343 = vpack.c.b16 %v1094, %v1093
      %v1344 = vpack.c.b16 %v1096, %v1095
      %v1345 = vpack.c.b16 %v1098, %v1097
      %v1346 = vpack.c.b16 %v1100, %v1099
      %v1347 = vpack.c.b16 %v1102, %v1101
      %v1348 = vpack.c.b16 %v1104, %v1103
      %v1349 = vpack.c.b16 %v1106, %v1105
      %v1350 = vpack.c.b16 %v1108, %v1107
      %v1351 = vpack.c.b16 %v1110, %v1109
      %v1352 = vpack.c.b16 %v1112, %v1111
      %v1353 = vpack.c.b16 %v1114, %v1113
      %v1354 = vpack.c.b16 %v1116, %v1115
      %v1355 = vpack.c.b16 %v1118, %v1117
      %v1356 = vpack.c.b16 %v1120, %v1119
      %v1357 = vpack.c.b16 %v1122, %v1121
      %v1358 = vpack.c.b16 %v1124, %v1123
      %v1359 = vpack.c.b16 %v1126, %v1125
      %v1360 = vpack.c.b16 %v1128, %v1127
      %v1361 = vpack.c.b16 %v1130, %v1129
      %v1362 = vpack.c.b16 %v1132, %v1131
      %v1363 = vpack.c.b16 %v1134, %v1133
      %v1364 = vpack.c.b16 %v1136, %v1135
      %v1365 = vpack.c.b16 %v1138, %v1137
      %v1366 = vpack.c.b16 %v1140, %v1139
      %v1367 = vpack.c.b16 %v1142, %v1141
      %v1368 = vpack.c.b16 %v1144, %v1143
      %v1369 = vpack.c.b16 %v1146, %v1145
      %v1370 = vpack.c.b16 %v1148, %v1147
      %v1371 = vpack.c.b16 %v1150, %v1149
      %v1372 = vpack.c.b16 %v1152, %v1151
      %v1373 = vpack.c.b16 %v1154, %v1153
      %v1374 = vpack.c.b16 %v1156, %v1155
      %v1375 = vpack.c.b16 %v1158, %v1157
      %v1376 = vpack.c.b16 %v1160, %v1159
      %v1377 = vpack.c.b16 %v1162, %v1161
      %v1378 = vpack.c.b16 %v1164, %v1163
      %v1379 = vpack.c.b16 %v1166, %v1165
      %v1380 = vpack.c.b16 %v1168, %v1167
      %v1381 = vpack.c.b16 %v1170, %v1169
      %v1382 = vpack.c.b16 %v1172, %v1171
      %v1383 = vpack.c.b16 %v1174, %v1173
      %v1384 = vpack.c.b16 %v1176, %v1175
      %v1385 = vpack.c.b16 %v1178, %v1177
      %v1386 = vpack.c.b16 %v1180, %v1179
      %v1387 = vpack.c.b16 %v1182, %v1181
      %v1388 = vpack.c.b16 %v1184, %v1183
      %v1389 = vpack.c.b16 %v1186, %v1185
      %v1390 = vpack.c.b16 %v1188, %v1187
      %v1391 = vpack.c.b16 %v1190, %v1189
      %v1392 = vpack.c.b16 %v1192, %v1191
      %v1393 = vpack.c.b16 %v1194, %v1193
      %v1394 = vpack.c.b16 %v1196, %v1195
      %v1395 = vpack.c.b16 %v1198, %v1197
      %v1396 = vpack.c.b16 %v1200, %v1199
      %v1397 = vpack.c.b16 %v1202, %v1201
      %v1398 = vpack.c.b16 %v1204, %v1203
      %v1399 = vpack.c.b16 %v1206, %v1205
      %v1400 = vpack.c.b16 %v1208, %v1207
      %v1401 = vpack.c.b16 %v1210, %v1209
      %v1402 = vpack.c.b16 %v1212, %v1211
      %v1403 = vpack.c.b16 %v1214, %v1213
      %v1404 = vpack.c.b16 %v1216, %v1215
      %v1405 = vpack.c.b16 %v1218, %v1217
      %v1406 = vpack.c.b16 %v1220, %v1219
      %v1407 = vpack.c.b16 %v1222, %v1221
      %v1408 = vpack.c.b16 %v1224, %v1223
      %v1409 = vpack.c.b16 %v1226, %v1225
      %v1410 = vpack.c.b16 %v1228, %v1227
      %v1411 = vpack.c.b16 %v1230, %v1229
      %v1412 = vpack.c.b16 %v1232, %v1231
      %v1413 = vpack.c.b16 %v1234, %v1233
      %v1414 = vpack.c.b16 %v1236, %v1235
      %v1415 = vpack.c.b16 %v1238, %v1237
      %v1416 = vpack.c.b16 %v1240, %v1239
      %v1417 = vpack.c.b16 %v1242, %v1241
      %v1418 = vpack.c.b16 %v1244, %v1243
      %v1419 = vpack.c.b16 %v1246, %v1245
      %v1420 = vpack.c.b16 %v1248, %v1247
      %v1421 = vpack.c.b16 %v1250, %v1249
      %v1422 = vpack.c.b16 %v1252, %v1251
      %v1423 = vpack.c.b16 %v1254, %v1253
      %v1424 = vpack.c.b16 %v1256, %v1255
      %v1425 = vpack.c.b16 %v1258, %v1257
      %v1426 = vpack.c.b16 %v1260, %v1259
      %v1427 = vpack.c.b16 %v1262, %v1261
      %v1428 = vpack.c.b16 %v1264, %v1263
      %v1429 = vpack.c.b16 %v1266, %v1265
      %v1430 = vpack.c.b16 %v1268, %v1267
      %v1431 = vpack.c.b16 %v1270, %v1269
      %v1432 = vpack.c.b16 %v1272, %v1271
      %v1433 = vpack.c.b16 %v1274, %v1273
      %v1434 = vpack.c.b16 %v1276, %v1275
      %v1435 = vpack.c.b16 %v1278, %v1277
      %v1436 = vpack.c.b16 %v1280, %v1279
      %v1437 = vpack.c.b16 %v1282, %v1281
      %v1438 = vpack.c.b16 %v1284, %v1283
      %v1439 = vpack.c.b16 %v1286, %v1285
      %v1440 = vpack.c.b16 %v1288, %v1287
      %v1441 = vpack.c.b16 %v1290, %v1289
      %v1442 = vpack.c.b16 %v1292, %v1291
      %v1443 = vpack.c.b16 %v1294, %v1293
      %v1444 = vpack.c.b16 %v1296, %v1295
      %v1445 = vpack.c.b16 %v1298, %v1297
      %v1446 = vpack.c.b16 %v1300, %v1299
      %v1447 = vpack.c.b16 %v1302, %v1301
      %v1448 = vpack.c.b16 %v1304, %v1303
      %v1449 = vpack.c.b16 %v1306, %v1305
      %v1450 = vpack.c.b16 %v1308, %v1307
      %v1451 = vpack.c.b16 %v1310, %v1309
      %v1452 = vpack.c.b16 %v1312, %v1311
      %v1453 = vpack.c.b16 %v1314, %v1313
      %v1454 = vpack.c.b16 %v1316, %v1315
      %v1455 = vpack.c.b16 %v1318, %v1317
      %v1456 = vpack.c.b16 %v1320, %v1319
      %v1457 = vpack.c.b16 %v1322, %v1321
      %v1458 = vpack.c.b16 %v1324, %v1323
      %v1459 = vpack.c.b16 %v1326, %v1325
      %v1460 = vpack.c.b16 %v1328, %v1327
      %v1461 = vpack.c.b16 %v1330, %v1329
      %v1462 = vpack.c.b16 %v1332, %v1331
      %v1463 = vpack.c.b16 %v1334, %v1333
      %v1464 = vpack.c.b16 %v1336, %v1335
      %1593 = vmatprep.subr.bf16.mxu0 0
      %1594 = vmatpush1.bf16.msra.mxu0 %v1337
      %1595 = vmatprep.subr.bf16.mxu0 0
      %1596 = vmatpush1.bf16.msra.mxu0 %v1338
      %1597 = vmatprep.subr.bf16.mxu0 0
      %1598 = vmatpush1.bf16.msra.mxu0 %v1339
      %1599 = vmatprep.subr.bf16.mxu0 0
      %1600 = vmatpush1.bf16.msra.mxu0 %v1340
      %1601 = vmatprep.subr.bf16.mxu0 0
      %1602 = vmatpush1.bf16.msra.mxu0 %v1341
      %1603 = vmatprep.subr.bf16.mxu0 0
      %1604 = vmatpush1.bf16.msra.mxu0 %v1342
      %1605 = vmatprep.subr.bf16.mxu0 0
      %1606 = vmatpush1.bf16.msra.mxu0 %v1343
      %1607 = vmatprep.subr.bf16.mxu0 0
      %1608 = vmatpush1.bf16.msra.mxu0 %v1344
      %1609 = vmatprep.subr.bf16.mxu0 0
      %1610 = vmatpush1.bf16.msra.mxu0 %v1345
      %1611 = vmatprep.subr.bf16.mxu0 0
      %1612 = vmatpush1.bf16.msra.mxu0 %v1346
      %1613 = vmatprep.subr.bf16.mxu0 0
      %1614 = vmatpush1.bf16.msra.mxu0 %v1347
      %1615 = vmatprep.subr.bf16.mxu0 0
      %1616 = vmatpush1.bf16.msra.mxu0 %v1348
      %1617 = vmatprep.subr.bf16.mxu0 0
      %1618 = vmatpush1.bf16.msra.mxu0 %v1349
      %1619 = vmatprep.subr.bf16.mxu0 0
      %1620 = vmatpush1.bf16.msra.mxu0 %v1350
      %1621 = vmatprep.subr.bf16.mxu0 0
      %1622 = vmatpush1.bf16.msra.mxu0 %v1351
      %1623 = vmatprep.subr.bf16.mxu0 0
      %1624 = vmatpush1.bf16.msra.mxu0 %v1352
      %1625 = vmatprep.mubr.bf16.mxu0 %v698
      %1626 = vmatmul.mubr.bf16.gmra.mrb[0].mxu0 %v697
      %v1627 = vpop.f32.mrb[0].mxu0
      %v1628 = vadd.f32 %v503, %v1627
      %v1629 = vpop.f32.mrb[0].mxu0
      %v1630 = vpop.f32.mrb[0].mxu0
      %v1631 = vadd.f32 %v503, %v1630
      %v1632 = vpop.f32.mrb[0].mxu0
      %1633 = vmatprep.mubr.bf16.mxu0 %v714
      %1634 = vmatmul.mubr.bf16.gmra.mrb[0].mxu0 %v713
      %v1635 = vpop.f32.mrb[0].mxu0
      %v1636 = vadd.f32 %v503, %v1635
      %v1637 = vpop.f32.mrb[0].mxu0
      %v1638 = vpop.f32.mrb[0].mxu0
      %v1639 = vadd.f32 %v503, %v1638
      %v1640 = vpop.f32.mrb[0].mxu0
      %1641 = vmatprep.mubr.bf16.mxu0 %v730
      %1642 = vmatmul.mubr.bf16.gmra.mrb[0].mxu0 %v729
      %v1643 = vpop.f32.mrb[0].mxu0
      %v1644 = vadd.f32 %v503, %v1643
      %v1645 = vpop.f32.mrb[0].mxu0
      %v1646 = vpop.f32.mrb[0].mxu0
      %v1647 = vadd.f32 %v503, %v1646
      %v1648 = vpop.f32.mrb[0].mxu0
      %1649 = vmatprep.mubr.bf16.mxu0 %v746
      %1650 = vmatmul.mubr.bf16.gmra.mrb[0].mxu0 %v745
      %v1651 = vpop.f32.mrb[0].mxu0
      %v1652 = vadd.f32 %v503, %v1651
      %v1653 = vpop.f32.mrb[0].mxu0
      %v1654 = vpop.f32.mrb[0].mxu0
      %v1655 = vadd.f32 %v503, %v1654
      %v1656 = vpop.f32.mrb[0].mxu0
      %1657 = vdwg.mxu0
      %1658 = vmatprep.subr.bf16.mxu0 0
      %1659 = vmatpush1.bf16.msra.mxu0 %v1353
      %1660 = vmatprep.subr.bf16.mxu0 0
      %1661 = vmatpush1.bf16.msra.mxu0 %v1354
      %1662 = vmatprep.subr.bf16.mxu0 0
      %1663 = vmatpush1.bf16.msra.mxu0 %v1355
      %1664 = vmatprep.subr.bf16.mxu0 0
      %1665 = vmatpush1.bf16.msra.mxu0 %v1356
      %1666 = vmatprep.subr.bf16.mxu0 0
      %1667 = vmatpush1.bf16.msra.mxu0 %v1357
      %1668 = vmatprep.subr.bf16.mxu0 0
      %1669 = vmatpush1.bf16.msra.mxu0 %v1358
      %1670 = vmatprep.subr.bf16.mxu0 0
      %1671 = vmatpush1.bf16.msra.mxu0 %v1359
      %1672 = vmatprep.subr.bf16.mxu0 0
      %1673 = vmatpush1.bf16.msra.mxu0 %v1360
      %1674 = vmatprep.subr.bf16.mxu0 0
      %1675 = vmatpush1.bf16.msra.mxu0 %v1361
      %1676 = vmatprep.subr.bf16.mxu0 0
      %1677 = vmatpush1.bf16.msra.mxu0 %v1362
      %1678 = vmatprep.subr.bf16.mxu0 0
      %1679 = vmatpush1.bf16.msra.mxu0 %v1363
      %1680 = vmatprep.subr.bf16.mxu0 0
      %1681 = vmatpush1.bf16.msra.mxu0 %v1364
      %1682 = vmatprep.subr.bf16.mxu0 0
      %1683 = vmatpush1.bf16.msra.mxu0 %v1365
      %1684 = vmatprep.subr.bf16.mxu0 0
      %1685 = vmatpush1.bf16.msra.mxu0 %v1366
      %1686 = vmatprep.subr.bf16.mxu0 0
      %1687 = vmatpush1.bf16.msra.mxu0 %v1367
      %1688 = vmatprep.subr.bf16.mxu0 0
      %1689 = vmatpush1.bf16.msra.mxu0 %v1368
      %1690 = vmatprep.mubr.bf16.mxu0 %v700
      %1691 = vmatmul.mubr.bf16.gmra.mrb[0].mxu0 %v699
      %v1692 = vpop.f32.mrb[0].mxu0
      %v1693 = vadd.f32 %v1628, %v1692
      %v1694 = vpop.f32.mrb[0].mxu0
      %v1695 = vpop.f32.mrb[0].mxu0
      %v1696 = vadd.f32 %v1631, %v1695
      %v1697 = vpop.f32.mrb[0].mxu0
      %1698 = vmatprep.mubr.bf16.mxu0 %v716
      %1699 = vmatmul.mubr.bf16.gmra.mrb[0].mxu0 %v715
      %v1700 = vpop.f32.mrb[0].mxu0
      %v1701 = vadd.f32 %v1636, %v1700
      %v1702 = vpop.f32.mrb[0].mxu0
      %v1703 = vpop.f32.mrb[0].mxu0
      %v1704 = vadd.f32 %v1639, %v1703
      %v1705 = vpop.f32.mrb[0].mxu0
      %1706 = vmatprep.mubr.bf16.mxu0 %v732
      %1707 = vmatmul.mubr.bf16.gmra.mrb[0].mxu0 %v731
      %v1708 = vpop.f32.mrb[0].mxu0
      %v1709 = vadd.f32 %v1644, %v1708
      %v1710 = vpop.f32.mrb[0].mxu0
      %v1711 = vpop.f32.mrb[0].mxu0
      %v1712 = vadd.f32 %v1647, %v1711
      %v1713 = vpop.f32.mrb[0].mxu0
      %1714 = vmatprep.mubr.bf16.mxu0 %v748
      %1715 = vmatmul.mubr.bf16.gmra.mrb[0].mxu0 %v747
      %v1716 = vpop.f32.mrb[0].mxu0
      %v1717 = vadd.f32 %v1652, %v1716
      %v1718 = vpop.f32.mrb[0].mxu0
      %v1719 = vpop.f32.mrb[0].mxu0
      %v1720 = vadd.f32 %v1655, %v1719
      %v1721 = vpop.f32.mrb[0].mxu0
      %1722 = vdwg.mxu0
      %1723 = vmatprep.subr.bf16.mxu0 0
      %1724 = vmatpush1.bf16.msra.mxu0 %v1369
      %1725 = vmatprep.subr.bf16.mxu0 0
      %1726 = vmatpush1.bf16.msra.mxu0 %v1370
      %1727 = vmatprep.subr.bf16.mxu0 0
      %1728 = vmatpush1.bf16.msra.mxu0 %v1371
      %1729 = vmatprep.subr.bf16.mxu0 0
      %1730 = vmatpush1.bf16.msra.mxu0 %v1372
      %1731 = vmatprep.subr.bf16.mxu0 0
      %1732 = vmatpush1.bf16.msra.mxu0 %v1373
      %1733 = vmatprep.subr.bf16.mxu0 0
      %1734 = vmatpush1.bf16.msra.mxu0 %v1374
      %1735 = vmatprep.subr.bf16.mxu0 0
      %1736 = vmatpush1.bf16.msra.mxu0 %v1375
      %1737 = vmatprep.subr.bf16.mxu0 0
      %1738 = vmatpush1.bf16.msra.mxu0 %v1376
      %1739 = vmatprep.subr.bf16.mxu0 0
      %1740 = vmatpush1.bf16.msra.mxu0 %v1377
      %1741 = vmatprep.subr.bf16.mxu0 0
      %1742 = vmatpush1.bf16.msra.mxu0 %v1378
      %1743 = vmatprep.subr.bf16.mxu0 0
      %1744 = vmatpush1.bf16.msra.mxu0 %v1379
      %1745 = vmatprep.subr.bf16.mxu0 0
      %1746 = vmatpush1.bf16.msra.mxu0 %v1380
      %1747 = vmatprep.subr.bf16.mxu0 0
      %1748 = vmatpush1.bf16.msra.mxu0 %v1381
      %1749 = vmatprep.subr.bf16.mxu0 0
      %1750 = vmatpush1.bf16.msra.mxu0 %v1382
      %1751 = vmatprep.subr.bf16.mxu0 0
      %1752 = vmatpush1.bf16.msra.mxu0 %v1383
      %1753 = vmatprep.subr.bf16.mxu0 0
      %1754 = vmatpush1.bf16.msra.mxu0 %v1384
      %1755 = vmatprep.mubr.bf16.mxu0 %v702
      %1756 = vmatmul.mubr.bf16.gmra.mrb[0].mxu0 %v701
      %v1757 = vpop.f32.mrb[0].mxu0
      %v1758 = vadd.f32 %v1693, %v1757
      %v1759 = vpop.f32.mrb[0].mxu0
      %v1760 = vpop.f32.mrb[0].mxu0
      %v1761 = vadd.f32 %v1696, %v1760
      %v1762 = vpop.f32.mrb[0].mxu0
      %1763 = vmatprep.mubr.bf16.mxu0 %v718
      %1764 = vmatmul.mubr.bf16.gmra.mrb[0].mxu0 %v717
      %v1765 = vpop.f32.mrb[0].mxu0
      %v1766 = vadd.f32 %v1701, %v1765
      %v1767 = vpop.f32.mrb[0].mxu0
      %v1768 = vpop.f32.mrb[0].mxu0
      %v1769 = vadd.f32 %v1704, %v1768
      %v1770 = vpop.f32.mrb[0].mxu0
      %1771 = vmatprep.mubr.bf16.mxu0 %v734
      %1772 = vmatmul.mubr.bf16.gmra.mrb[0].mxu0 %v733
      %v1773 = vpop.f32.mrb[0].mxu0
      %v1774 = vadd.f32 %v1709, %v1773
      %v1775 = vpop.f32.mrb[0].mxu0
      %v1776 = vpop.f32.mrb[0].mxu0
      %v1777 = vadd.f32 %v1712, %v1776
      %v1778 = vpop.f32.mrb[0].mxu0
      %1779 = vmatprep.mubr.bf16.mxu0 %v750
      %1780 = vmatmul.mubr.bf16.gmra.mrb[0].mxu0 %v749
      %v1781 = vpop.f32.mrb[0].mxu0
      %v1782 = vadd.f32 %v1717, %v1781
      %v1783 = vpop.f32.mrb[0].mxu0
      %v1784 = vpop.f32.mrb[0].mxu0
      %v1785 = vadd.f32 %v1720, %v1784
      %v1786 = vpop.f32.mrb[0].mxu0
      %1787 = vdwg.mxu0
      %1788 = vmatprep.subr.bf16.mxu0 0
      %1789 = vmatpush1.bf16.msra.mxu0 %v1385
      %1790 = vmatprep.subr.bf16.mxu0 0
      %1791 = vmatpush1.bf16.msra.mxu0 %v1386
      %1792 = vmatprep.subr.bf16.mxu0 0
      %1793 = vmatpush1.bf16.msra.mxu0 %v1387
      %1794 = vmatprep.subr.bf16.mxu0 0
      %1795 = vmatpush1.bf16.msra.mxu0 %v1388
      %1796 = vmatprep.subr.bf16.mxu0 0
      %1797 = vmatpush1.bf16.msra.mxu0 %v1389
      %1798 = vmatprep.subr.bf16.mxu0 0
      %1799 = vmatpush1.bf16.msra.mxu0 %v1390
      %1800 = vmatprep.subr.bf16.mxu0 0
      %1801 = vmatpush1.bf16.msra.mxu0 %v1391
      %1802 = vmatprep.subr.bf16.mxu0 0
      %1803 = vmatpush1.bf16.msra.mxu0 %v1392
      %1804 = vmatprep.subr.bf16.mxu0 0
      %1805 = vmatpush1.bf16.msra.mxu0 %v1393
      %1806 = vmatprep.subr.bf16.mxu0 0
      %1807 = vmatpush1.bf16.msra.mxu0 %v1394
      %1808 = vmatprep.subr.bf16.mxu0 0
      %1809 = vmatpush1.bf16.msra.mxu0 %v1395
      %1810 = vmatprep.subr.bf16.mxu0 0
      %1811 = vmatpush1.bf16.msra.mxu0 %v1396
      %1812 = vmatprep.subr.bf16.mxu0 0
      %1813 = vmatpush1.bf16.msra.mxu0 %v1397
      %1814 = vmatprep.subr.bf16.mxu0 0
      %1815 = vmatpush1.bf16.msra.mxu0 %v1398
      %1816 = vmatprep.subr.bf16.mxu0 0
      %1817 = vmatpush1.bf16.msra.mxu0 %v1399
      %1818 = vmatprep.subr.bf16.mxu0 0
      %1819 = vmatpush1.bf16.msra.mxu0 %v1400
      %1820 = vmatprep.mubr.bf16.mxu0 %v704
      %1821 = vmatmul.mubr.bf16.gmra.mrb[0].mxu0 %v703
      %v1822 = vpop.f32.mrb[0].mxu0
      %v1823 = vadd.f32 %v1758, %v1822
      %v1824 = vpop.f32.mrb[0].mxu0
      %v1825 = vpop.f32.mrb[0].mxu0
      %v1826 = vadd.f32 %v1761, %v1825
      %v1827 = vpop.f32.mrb[0].mxu0
      %1828 = vmatprep.mubr.bf16.mxu0 %v720
      %1829 = vmatmul.mubr.bf16.gmra.mrb[0].mxu0 %v719
      %v1830 = vpop.f32.mrb[0].mxu0
      %v1831 = vadd.f32 %v1766, %v1830
      %v1832 = vpop.f32.mrb[0].mxu0
      %v1833 = vpop.f32.mrb[0].mxu0
      %v1834 = vadd.f32 %v1769, %v1833
      %v1835 = vpop.f32.mrb[0].mxu0
      %1836 = vmatprep.mubr.bf16.mxu0 %v736
      %1837 = vmatmul.mubr.bf16.gmra.mrb[0].mxu0 %v735
      %v1838 = vpop.f32.mrb[0].mxu0
      %v1839 = vadd.f32 %v1774, %v1838
      %v1840 = vpop.f32.mrb[0].mxu0
      %v1841 = vpop.f32.mrb[0].mxu0
      %v1842 = vadd.f32 %v1777, %v1841
      %v1843 = vpop.f32.mrb[0].mxu0
      %1844 = vmatprep.mubr.bf16.mxu0 %v752
      %1845 = vmatmul.mubr.bf16.gmra.mrb[0].mxu0 %v751
      %v1846 = vpop.f32.mrb[0].mxu0
      %v1847 = vadd.f32 %v1782, %v1846
      %v1848 = vpop.f32.mrb[0].mxu0
      %v1849 = vpop.f32.mrb[0].mxu0
      %v1850 = vadd.f32 %v1785, %v1849
      %v1851 = vpop.f32.mrb[0].mxu0
      %1852 = vdwg.mxu0
      %1853 = vmatprep.subr.bf16.mxu0 0
      %1854 = vmatpush1.bf16.msra.mxu0 %v1401
      %1855 = vmatprep.subr.bf16.mxu0 0
      %1856 = vmatpush1.bf16.msra.mxu0 %v1402
      %1857 = vmatprep.subr.bf16.mxu0 0
      %1858 = vmatpush1.bf16.msra.mxu0 %v1403
      %1859 = vmatprep.subr.bf16.mxu0 0
      %1860 = vmatpush1.bf16.msra.mxu0 %v1404
      %1861 = vmatprep.subr.bf16.mxu0 0
      %1862 = vmatpush1.bf16.msra.mxu0 %v1405
      %1863 = vmatprep.subr.bf16.mxu0 0
      %1864 = vmatpush1.bf16.msra.mxu0 %v1406
      %1865 = vmatprep.subr.bf16.mxu0 0
      %1866 = vmatpush1.bf16.msra.mxu0 %v1407
      %1867 = vmatprep.subr.bf16.mxu0 0
      %1868 = vmatpush1.bf16.msra.mxu0 %v1408
      %1869 = vmatprep.subr.bf16.mxu0 0
      %1870 = vmatpush1.bf16.msra.mxu0 %v1409
      %1871 = vmatprep.subr.bf16.mxu0 0
      %1872 = vmatpush1.bf16.msra.mxu0 %v1410
      %1873 = vmatprep.subr.bf16.mxu0 0
      %1874 = vmatpush1.bf16.msra.mxu0 %v1411
      %1875 = vmatprep.subr.bf16.mxu0 0
      %1876 = vmatpush1.bf16.msra.mxu0 %v1412
      %1877 = vmatprep.subr.bf16.mxu0 0
      %1878 = vmatpush1.bf16.msra.mxu0 %v1413
      %1879 = vmatprep.subr.bf16.mxu0 0
      %1880 = vmatpush1.bf16.msra.mxu0 %v1414
      %1881 = vmatprep.subr.bf16.mxu0 0
      %1882 = vmatpush1.bf16.msra.mxu0 %v1415
      %1883 = vmatprep.subr.bf16.mxu0 0
      %1884 = vmatpush1.bf16.msra.mxu0 %v1416
      %1885 = vmatprep.mubr.bf16.mxu0 %v706
      %1886 = vmatmul.mubr.bf16.gmra.mrb[0].mxu0 %v705
      %v1887 = vpop.f32.mrb[0].mxu0
      %v1888 = vadd.f32 %v1823, %v1887
      %v1889 = vpop.f32.mrb[0].mxu0
      %v1890 = vpop.f32.mrb[0].mxu0
      %v1891 = vadd.f32 %v1826, %v1890
      %v1892 = vpop.f32.mrb[0].mxu0
      %1893 = vmatprep.mubr.bf16.mxu0 %v722
      %1894 = vmatmul.mubr.bf16.gmra.mrb[0].mxu0 %v721
      %v1895 = vpop.f32.mrb[0].mxu0
      %v1896 = vadd.f32 %v1831, %v1895
      %v1897 = vpop.f32.mrb[0].mxu0
      %v1898 = vpop.f32.mrb[0].mxu0
      %v1899 = vadd.f32 %v1834, %v1898
      %v1900 = vpop.f32.mrb[0].mxu0
      %1901 = vmatprep.mubr.bf16.mxu0 %v738
      %1902 = vmatmul.mubr.bf16.gmra.mrb[0].mxu0 %v737
      %v1903 = vpop.f32.mrb[0].mxu0
      %v1904 = vadd.f32 %v1839, %v1903
      %v1905 = vpop.f32.mrb[0].mxu0
      %v1906 = vpop.f32.mrb[0].mxu0
      %v1907 = vadd.f32 %v1842, %v1906
      %v1908 = vpop.f32.mrb[0].mxu0
      %1909 = vmatprep.mubr.bf16.mxu0 %v754
      %1910 = vmatmul.mubr.bf16.gmra.mrb[0].mxu0 %v753
      %v1911 = vpop.f32.mrb[0].mxu0
      %v1912 = vadd.f32 %v1847, %v1911
      %v1913 = vpop.f32.mrb[0].mxu0
      %v1914 = vpop.f32.mrb[0].mxu0
      %v1915 = vadd.f32 %v1850, %v1914
      %v1916 = vpop.f32.mrb[0].mxu0
      %1917 = vdwg.mxu0
      %1918 = vmatprep.subr.bf16.mxu0 0
      %1919 = vmatpush1.bf16.msra.mxu0 %v1417
      %1920 = vmatprep.subr.bf16.mxu0 0
      %1921 = vmatpush1.bf16.msra.mxu0 %v1418
      %1922 = vmatprep.subr.bf16.mxu0 0
      %1923 = vmatpush1.bf16.msra.mxu0 %v1419
      %1924 = vmatprep.subr.bf16.mxu0 0
      %1925 = vmatpush1.bf16.msra.mxu0 %v1420
      %1926 = vmatprep.subr.bf16.mxu0 0
      %1927 = vmatpush1.bf16.msra.mxu0 %v1421
      %1928 = vmatprep.subr.bf16.mxu0 0
      %1929 = vmatpush1.bf16.msra.mxu0 %v1422
      %1930 = vmatprep.subr.bf16.mxu0 0
      %1931 = vmatpush1.bf16.msra.mxu0 %v1423
      %1932 = vmatprep.subr.bf16.mxu0 0
      %1933 = vmatpush1.bf16.msra.mxu0 %v1424
      %1934 = vmatprep.subr.bf16.mxu0 0
      %1935 = vmatpush1.bf16.msra.mxu0 %v1425
      %1936 = vmatprep.subr.bf16.mxu0 0
      %1937 = vmatpush1.bf16.msra.mxu0 %v1426
      %1938 = vmatprep.subr.bf16.mxu0 0
      %1939 = vmatpush1.bf16.msra.mxu0 %v1427
      %1940 = vmatprep.subr.bf16.mxu0 0
      %1941 = vmatpush1.bf16.msra.mxu0 %v1428
      %1942 = vmatprep.subr.bf16.mxu0 0
      %1943 = vmatpush1.bf16.msra.mxu0 %v1429
      %1944 = vmatprep.subr.bf16.mxu0 0
      %1945 = vmatpush1.bf16.msra.mxu0 %v1430
      %1946 = vmatprep.subr.bf16.mxu0 0
      %1947 = vmatpush1.bf16.msra.mxu0 %v1431
      %1948 = vmatprep.subr.bf16.mxu0 0
      %1949 = vmatpush1.bf16.msra.mxu0 %v1432
      %1950 = vmatprep.mubr.bf16.mxu0 %v708
      %1951 = vmatmul.mubr.bf16.gmra.mrb[0].mxu0 %v707
      %v1952 = vpop.f32.mrb[0].mxu0
      %v1953 = vadd.f32 %v1888, %v1952
      %v1954 = vpop.f32.mrb[0].mxu0
      %v1955 = vpop.f32.mrb[0].mxu0
      %v1956 = vadd.f32 %v1891, %v1955
      %v1957 = vpop.f32.mrb[0].mxu0
      %1958 = vmatprep.mubr.bf16.mxu0 %v724
      %1959 = vmatmul.mubr.bf16.gmra.mrb[0].mxu0 %v723
      %v1960 = vpop.f32.mrb[0].mxu0
      %v1961 = vadd.f32 %v1896, %v1960
      %v1962 = vpop.f32.mrb[0].mxu0
      %v1963 = vpop.f32.mrb[0].mxu0
      %v1964 = vadd.f32 %v1899, %v1963
      %v1965 = vpop.f32.mrb[0].mxu0
      %1966 = vmatprep.mubr.bf16.mxu0 %v740
      %1967 = vmatmul.mubr.bf16.gmra.mrb[0].mxu0 %v739
      %v1968 = vpop.f32.mrb[0].mxu0
      %v1969 = vadd.f32 %v1904, %v1968
      %v1970 = vpop.f32.mrb[0].mxu0
      %v1971 = vpop.f32.mrb[0].mxu0
      %v1972 = vadd.f32 %v1907, %v1971
      %v1973 = vpop.f32.mrb[0].mxu0
      %1974 = vmatprep.mubr.bf16.mxu0 %v756
      %1975 = vmatmul.mubr.bf16.gmra.mrb[0].mxu0 %v755
      %v1976 = vpop.f32.mrb[0].mxu0
      %v1977 = vadd.f32 %v1912, %v1976
      %v1978 = vpop.f32.mrb[0].mxu0
      %v1979 = vpop.f32.mrb[0].mxu0
      %v1980 = vadd.f32 %v1915, %v1979
      %v1981 = vpop.f32.mrb[0].mxu0
      %1982 = vdwg.mxu0
      %1983 = vmatprep.subr.bf16.mxu0 0
      %1984 = vmatpush1.bf16.msra.mxu0 %v1433
      %1985 = vmatprep.subr.bf16.mxu0 0
      %1986 = vmatpush1.bf16.msra.mxu0 %v1434
      %1987 = vmatprep.subr.bf16.mxu0 0
      %1988 = vmatpush1.bf16.msra.mxu0 %v1435
      %1989 = vmatprep.subr.bf16.mxu0 0
      %1990 = vmatpush1.bf16.msra.mxu0 %v1436
      %1991 = vmatprep.subr.bf16.mxu0 0
      %1992 = vmatpush1.bf16.msra.mxu0 %v1437
      %1993 = vmatprep.subr.bf16.mxu0 0
      %1994 = vmatpush1.bf16.msra.mxu0 %v1438
      %1995 = vmatprep.subr.bf16.mxu0 0
      %1996 = vmatpush1.bf16.msra.mxu0 %v1439
      %1997 = vmatprep.subr.bf16.mxu0 0
      %1998 = vmatpush1.bf16.msra.mxu0 %v1440
      %1999 = vmatprep.subr.bf16.mxu0 0
      %2000 = vmatpush1.bf16.msra.mxu0 %v1441
      %2001 = vmatprep.subr.bf16.mxu0 0
      %2002 = vmatpush1.bf16.msra.mxu0 %v1442
      %2003 = vmatprep.subr.bf16.mxu0 0
      %2004 = vmatpush1.bf16.msra.mxu0 %v1443
      %2005 = vmatprep.subr.bf16.mxu0 0
      %2006 = vmatpush1.bf16.msra.mxu0 %v1444
      %2007 = vmatprep.subr.bf16.mxu0 0
      %2008 = vmatpush1.bf16.msra.mxu0 %v1445
      %2009 = vmatprep.subr.bf16.mxu0 0
      %2010 = vmatpush1.bf16.msra.mxu0 %v1446
      %2011 = vmatprep.subr.bf16.mxu0 0
      %2012 = vmatpush1.bf16.msra.mxu0 %v1447
      %2013 = vmatprep.subr.bf16.mxu0 0
      %2014 = vmatpush1.bf16.msra.mxu0 %v1448
      %2015 = vmatprep.mubr.bf16.mxu0 %v710
      %2016 = vmatmul.mubr.bf16.gmra.mrb[0].mxu0 %v709
      %v2017 = vpop.f32.mrb[0].mxu0
      %v2018 = vadd.f32 %v1953, %v2017
      %v2019 = vpop.f32.mrb[0].mxu0
      %v2020 = vpop.f32.mrb[0].mxu0
      %v2021 = vadd.f32 %v1956, %v2020
      %v2022 = vpop.f32.mrb[0].mxu0
      %2023 = vmatprep.mubr.bf16.mxu0 %v726
      %2024 = vmatmul.mubr.bf16.gmra.mrb[0].mxu0 %v725
      %v2025 = vpop.f32.mrb[0].mxu0
      %v2026 = vadd.f32 %v1961, %v2025
      %v2027 = vpop.f32.mrb[0].mxu0
      %v2028 = vpop.f32.mrb[0].mxu0
      %v2029 = vadd.f32 %v1964, %v2028
      %v2030 = vpop.f32.mrb[0].mxu0
      %2031 = vmatprep.mubr.bf16.mxu0 %v742
      %2032 = vmatmul.mubr.bf16.gmra.mrb[0].mxu0 %v741
      %v2033 = vpop.f32.mrb[0].mxu0
      %v2034 = vadd.f32 %v1969, %v2033
      %v2035 = vpop.f32.mrb[0].mxu0
      %v2036 = vpop.f32.mrb[0].mxu0
      %v2037 = vadd.f32 %v1972, %v2036
      %v2038 = vpop.f32.mrb[0].mxu0
      %2039 = vmatprep.mubr.bf16.mxu0 %v758
      %2040 = vmatmul.mubr.bf16.gmra.mrb[0].mxu0 %v757
      %v2041 = vpop.f32.mrb[0].mxu0
      %v2042 = vadd.f32 %v1977, %v2041
      %v2043 = vpop.f32.mrb[0].mxu0
      %v2044 = vpop.f32.mrb[0].mxu0
      %v2045 = vadd.f32 %v1980, %v2044
      %v2046 = vpop.f32.mrb[0].mxu0
      %2047 = vdwg.mxu0
      %2048 = vmatprep.subr.bf16.mxu0 0
      %2049 = vmatpush1.bf16.msra.mxu0 %v1449
      %2050 = vmatprep.subr.bf16.mxu0 0
      %2051 = vmatpush1.bf16.msra.mxu0 %v1450
      %2052 = vmatprep.subr.bf16.mxu0 0
      %2053 = vmatpush1.bf16.msra.mxu0 %v1451
      %2054 = vmatprep.subr.bf16.mxu0 0
      %2055 = vmatpush1.bf16.msra.mxu0 %v1452
      %2056 = vmatprep.subr.bf16.mxu0 0
      %2057 = vmatpush1.bf16.msra.mxu0 %v1453
      %2058 = vmatprep.subr.bf16.mxu0 0
      %2059 = vmatpush1.bf16.msra.mxu0 %v1454
      %2060 = vmatprep.subr.bf16.mxu0 0
      %2061 = vmatpush1.bf16.msra.mxu0 %v1455
      %2062 = vmatprep.subr.bf16.mxu0 0
      %2063 = vmatpush1.bf16.msra.mxu0 %v1456
      %2064 = vmatprep.subr.bf16.mxu0 0
      %2065 = vmatpush1.bf16.msra.mxu0 %v1457
      %2066 = vmatprep.subr.bf16.mxu0 0
      %2067 = vmatpush1.bf16.msra.mxu0 %v1458
      %2068 = vmatprep.subr.bf16.mxu0 0
      %2069 = vmatpush1.bf16.msra.mxu0 %v1459
      %2070 = vmatprep.subr.bf16.mxu0 0
      %2071 = vmatpush1.bf16.msra.mxu0 %v1460
      %2072 = vmatprep.subr.bf16.mxu0 0
      %2073 = vmatpush1.bf16.msra.mxu0 %v1461
      %2074 = vmatprep.subr.bf16.mxu0 0
      %2075 = vmatpush1.bf16.msra.mxu0 %v1462
      %2076 = vmatprep.subr.bf16.mxu0 0
      %2077 = vmatpush1.bf16.msra.mxu0 %v1463
      %2078 = vmatprep.subr.bf16.mxu0 0
      %2079 = vmatpush1.bf16.msra.mxu0 %v1464
      %2080 = vmatprep.mubr.bf16.mxu0 %v712
      %2081 = vmatmul.mubr.bf16.gmra.mrb[0].mxu0 %v711
      %v2082 = vpop.f32.mrb[0].mxu0
      %v2083 = vadd.f32 %v2018, %v2082
      %v2084 = vpop.f32.mrb[0].mxu0
      %v2085 = vpop.f32.mrb[0].mxu0
      %v2086 = vadd.f32 %v2021, %v2085
      %v2087 = vpop.f32.mrb[0].mxu0
      %2088 = vmatprep.mubr.bf16.mxu0 %v728
      %2089 = vmatmul.mubr.bf16.gmra.mrb[0].mxu0 %v727
      %v2090 = vpop.f32.mrb[0].mxu0
      %v2091 = vadd.f32 %v2026, %v2090
      %v2092 = vpop.f32.mrb[0].mxu0
      %v2093 = vpop.f32.mrb[0].mxu0
      %v2094 = vadd.f32 %v2029, %v2093
      %v2095 = vpop.f32.mrb[0].mxu0
      %2096 = vmatprep.mubr.bf16.mxu0 %v744
      %2097 = vmatmul.mubr.bf16.gmra.mrb[0].mxu0 %v743
      %v2098 = vpop.f32.mrb[0].mxu0
      %v2099 = vadd.f32 %v2034, %v2098
      %v2100 = vpop.f32.mrb[0].mxu0
      %v2101 = vpop.f32.mrb[0].mxu0
      %v2102 = vadd.f32 %v2037, %v2101
      %v2103 = vpop.f32.mrb[0].mxu0
      %2104 = vmatprep.mubr.bf16.mxu0 %v760
      %2105 = vmatmul.mubr.bf16.gmra.mrb[0].mxu0 %v759
      %v2106 = vpop.f32.mrb[0].mxu0
      %v2107 = vadd.f32 %v2042, %v2106
      %v2108 = vpop.f32.mrb[0].mxu0
      %v2109 = vpop.f32.mrb[0].mxu0
      %v2110 = vadd.f32 %v2045, %v2109
      %v2111 = vpop.f32.mrb[0].mxu0
      %2112 = vdwg.mxu0
      %vm2113 = vcmp.gt.f32.partialorder %v2083, 0.0
      %vm2114 = vcmp.gt.f32.partialorder %v2086, 0.0
      %vm2115 = vcmp.gt.f32.partialorder %v2091, 0.0
      %vm2116 = vcmp.gt.f32.partialorder %v2094, 0.0
      %vm2117 = vcmp.gt.f32.partialorder %v2099, 0.0
      %vm2118 = vcmp.gt.f32.partialorder %v2102, 0.0
      %vm2119 = vcmp.gt.f32.partialorder %v2107, 0.0
      %vm2120 = vcmp.gt.f32.partialorder %v2110, 0.0
      %v2121 = vmul.f32 %v2083, 1.442695
      %v2122 = vpow.pop %v2121
      %v2123 = vmul.f32 %v2086, 1.442695
      %v2124 = vpow.pop %v2123
      %v2125 = vmul.f32 %v2091, 1.442695
      %v2126 = vpow.pop %v2125
      %v2127 = vmul.f32 %v2094, 1.442695
      %v2128 = vpow.pop %v2127
      %v2129 = vmul.f32 %v2099, 1.442695
      %v2130 = vpow.pop %v2129
      %v2131 = vmul.f32 %v2102, 1.442695
      %v2132 = vpow.pop %v2131
      %v2133 = vmul.f32 %v2107, 1.442695
      %v2134 = vpow.pop %v2133
      %v2135 = vmul.f32 %v2110, 1.442695
      %v2136 = vpow.pop %v2135
      %v2137 = vsub.f32 %v2122, 1.0
      %v2138 = vsub.f32 %v2124, 1.0
      %v2139 = vsub.f32 %v2126, 1.0
      %v2140 = vsub.f32 %v2128, 1.0
      %v2141 = vsub.f32 %v2130, 1.0
      %v2142 = vsub.f32 %v2132, 1.0
      %v2143 = vsub.f32 %v2134, 1.0
      %v2144 = vsub.f32 %v2136, 1.0
      %v2145 = vsel %vm2113, %v2083, %v2137
      %v2146 = vsel %vm2114, %v2086, %v2138
      %v2147 = vsel %vm2115, %v2091, %v2139
      %v2148 = vsel %vm2116, %v2094, %v2140
      %v2149 = vsel %vm2117, %v2099, %v2141
      %v2150 = vsel %vm2118, %v2102, %v2142
      %v2151 = vsel %vm2119, %v2107, %v2143
      %v2152 = vsel %vm2120, %v2110, %v2144
      %v2153 = vpack.c.bf16 %v2146, %v2145
      %v2154 = vpack.c.bf16 %v2148, %v2147
      %v2155 = vpack.c.bf16 %v2150, %v2149
      %v2156 = vpack.c.bf16 %v2152, %v2151
      %v2161 = vunpack.c.l.b16 %v2153
      %v2162 = vunpack.c.h.b16 %v2153
      %v2163 = vunpack.c.l.b16 %v2154
      %v2164 = vunpack.c.h.b16 %v2154
      %v2165 = vunpack.c.l.b16 %v2155
      %v2166 = vunpack.c.h.b16 %v2155
      %v2167 = vunpack.c.l.b16 %v2156
      %v2168 = vunpack.c.h.b16 %v2156
      %v2169 = vpack.c.b16 %v2161, %v2161
      %v2170 = vpack.c.b16 %v2162, %v2162
      %v2171 = vpack.c.b16 %v2163, %v2163
      %v2172 = vpack.c.b16 %v2164, %v2164
      %v2173 = vpack.c.b16 %v2165, %v2165
      %v2174 = vpack.c.b16 %v2166, %v2166
      %v2175 = vpack.c.b16 %v2167, %v2167
      %v2176 = vpack.c.b16 %v2168, %v2168
      %2185 = vst [vmem:[%s175] sm:$0xf] %v2169
      %2186 = vst [vmem:[%s175 + $0x4] sm:$0xf] %v2170
      %2187 = vst [vmem:[%s175 + $0x8] sm:$0xf] %v2171
      %2188 = vst [vmem:[%s175 + $0xc] sm:$0xf] %v2172
      %2189 = vst [vmem:[%s175 + $0x10] sm:$0xf] %v2173
      %2190 = vst [vmem:[%s175 + $0x14] sm:$0xf] %v2174
      %2191 = vst [vmem:[%s175 + $0x18] sm:$0xf] %v2175
      %2192 = vst [vmem:[%s175 + $0x1c] sm:$0xf] %v2176
      %s2193 = smul.u32 8, %s14
      %p2194 = scmp.lt.s32.totalorder %s2193, 15
      %s2195 = scalar_select %p2194, %s2193, 15
      %s2196 = smul.addr %s2195, 4
      %s2197 = scalar_lea.vmem %s3, %s2196
      // Predicated region
      $region33: #{discriminator_forward.4} parent=31 // pred_check
        %p2198 = pneg %p100
      $region34: #{discriminator_forward.4} parent=31 // pred_check_branch
        %2200 = sbr.rel (%p2198) target = $region36
      $region35: #{discriminator_forward.4} parent=31 // pred_region
        %s2201 = smul.u32 8, %s14
      $region36: #{discriminator_forward.4} parent=31 // pred_fallthru
        _
    $region32: #{discriminator_forward.4} parent=5 // pred_fallthru
      _
    %p2202 = scmp.le.s32.totalorder 2, %s9
    // Predicated region
    $region37: #{discriminator_forward.4} parent=5 // pred_check
      %p2203 = pneg %p2202
    $region38: #{discriminator_forward.4} parent=5 // pred_check_branch
      %2205 = sbr.rel (%p2203) target = $region40
    $region39: #{discriminator_forward.4} parent=5 // pred_region
      %s2206 = ssub.s32 %s9, 2
      // Predicated region
      $region41: #{discriminator_forward.4} parent=39 // pred_check
        %p2207 = pneg %p106
      $region42: #{discriminator_forward.4} parent=39 // pred_check_branch
        %2209 = sbr.rel (%p2207) target = $region44
      $region43: #{discriminator_forward.4} parent=39 // pred_region
        %s2210 = smul.u32 8, %s15
        %p2211 = scmp.lt.s32.totalorder %s2210, 15
        %s2212 = scalar_select %p2211, %s2210, 15
        %s2213 = smul.addr %s2212, 4
        %s2214 = scalar_lea.vmem %s3, %s2213
      $region44: #{discriminator_forward.4} parent=39 // pred_fallthru
        _
    $region40: #{discriminator_forward.4} parent=5 // pred_fallthru
      _
  $region6: #{discriminator_forward.4} parent=0 // loop_footer
    %s13 = sadd.s32 1, %s9
  $region7: #{discriminator_forward.4} parent=0 // loop_footer_branch
    %8 = sbr.rel target = $region3
  $region8: #{discriminator_forward.4} parent=0 // loop_exit
    _

// kernel: discriminator_forward.5
$region0: #{discriminator_forward.5}
  #allocation0 [shape = 'u32[]', space=smem, size = 0x4, offset = 0x4, fixed_abs, tag = 'smem constant byte address 0x4 - core index']
  #allocation1 [shape = 'u32[144,128]{1,0:T(1,128)}', space=vmem, size = 0x12000, scoped, tag = 'internal scratch']
  #allocation2 [shape = 'f32[1,1]{1,0:T(1,128)S(1)}', space=vmem, size = 0x200, scoped, tag = 'scoped memory for discriminator_forward.5']
  %s0 = inlined_call_operand.vmem [shape: bf16[32,2048], index: 0, kind: input, shape index: {}]
  %s1 = inlined_call_operand.vmem [shape: bf16[2048,256], index: 1, kind: input, shape index: {}]
  %s2 = inlined_call_operand.vmem [shape: f32[1,256], index: 2, kind: input, shape index: {}]
  %s3 = inlined_call_operand.vmem [shape: f32[16,256], index: 3, kind: input, shape index: {}]
  %s4 = inlined_call_operand.<no memory space> [shape: f32[1,1], index: 4, kind: input, shape index: {}]
  %s5 = inlined_call_operand.vmem [shape: f32[2,1], index: 5, kind: output, shape index: {}]
  %s6 = sld [smem:[#allocation0]]
  $region30: #{discriminator_forward.5} parent=0
    _
  %s8 = ssub.s32 1, %s6
  %s9 = scalar_select 0, %s8, %s6
  %v10 = vstv %s4
  %11 = vst [vmem:[#allocation2] sm:$0x1] %v10
  // Predicated region
  $region2: #{discriminator_forward.5} parent=0 // pred_check
    _
  $region3: #{discriminator_forward.5} parent=0 // pred_check_branch
    %13 = sbr.rel (0) target = $region5
  $region4: #{discriminator_forward.5} parent=0 // pred_region
    _
  $region5: #{discriminator_forward.5} parent=0 // pred_fallthru
    _
  // Predicated region
  $region6: #{discriminator_forward.5} parent=0 // pred_check
    _
  $region7: #{discriminator_forward.5} parent=0 // pred_check_branch
    %15 = sbr.rel (0) target = $region9
  $region8: #{discriminator_forward.5} parent=0 // pred_region
    _
  $region9: #{discriminator_forward.5} parent=0 // pred_fallthru
    _
  // Predicated region
  $region10: #{discriminator_forward.5} parent=0 // pred_check
    _
  $region11: #{discriminator_forward.5} parent=0 // pred_check_branch
    %17 = sbr.rel (0) target = $region13
  $region12: #{discriminator_forward.5} parent=0 // pred_region
    _
  $region13: #{discriminator_forward.5} parent=0 // pred_fallthru
    _
  // Predicated region
  $region14: #{discriminator_forward.5} parent=0 // pred_check
    _
  $region15: #{discriminator_forward.5} parent=0 // pred_check_branch
    %19 = sbr.rel (0) target = $region17
  $region16: #{discriminator_forward.5} parent=0 // pred_region
    _
  $region17: #{discriminator_forward.5} parent=0 // pred_fallthru
    _
  // Predicated region
  $region18: #{discriminator_forward.5} parent=0 // pred_check
    _
  $region19: #{discriminator_forward.5} parent=0 // pred_check_branch
    %21 = sbr.rel (0) target = $region21
  $region20: #{discriminator_forward.5} parent=0 // pred_region
    _
  $region21: #{discriminator_forward.5} parent=0 // pred_fallthru
    _
  %v22 = vld [vmem:[%s0] sm:$0xff]
  %v23 = vld [vmem:[%s0 + $0x8] sm:$0xff]
  %v24 = vld [vmem:[%s0 + $0x10] sm:$0xff]
  %v25 = vld [vmem:[%s0 + $0x18] sm:$0xff]
  %v26 = vld [vmem:[%s0 + $0x20] sm:$0xff]
  %v27 = vld [vmem:[%s0 + $0x28] sm:$0xff]
  %v28 = vld [vmem:[%s0 + $0x30] sm:$0xff]
  %v29 = vld [vmem:[%s0 + $0x38] sm:$0xff]
  %v30 = vld [vmem:[%s0 + $0x40] sm:$0xff]
  %v31 = vld [vmem:[%s0 + $0x48] sm:$0xff]
  %v32 = vld [vmem:[%s0 + $0x50] sm:$0xff]
  %v33 = vld [vmem:[%s0 + $0x58] sm:$0xff]
  %v34 = vld [vmem:[%s0 + $0x60] sm:$0xff]
  %v35 = vld [vmem:[%s0 + $0x68] sm:$0xff]
  %v36 = vld [vmem:[%s0 + $0x70] sm:$0xff]
  %v37 = vld [vmem:[%s0 + $0x78] sm:$0xff]
  %v38 = vld [vmem:[%s0 + $0x80] sm:$0xff]
  %v39 = vld [vmem:[%s0 + $0x88] sm:$0xff]
  %v40 = vld [vmem:[%s0 + $0x90] sm:$0xff]
  %v41 = vld [vmem:[%s0 + $0x98] sm:$0xff]
  %v42 = vld [vmem:[%s0 + $0xa0] sm:$0xff]
  %v43 = vld [vmem:[%s0 + $0xa8] sm:$0xff]
  %v44 = vld [vmem:[%s0 + $0xb0] sm:$0xff]
  %v45 = vld [vmem:[%s0 + $0xb8] sm:$0xff]
  %v46 = vld [vmem:[%s0 + $0xc0] sm:$0xff]
  %v47 = vld [vmem:[%s0 + $0xc8] sm:$0xff]
  %v48 = vld [vmem:[%s0 + $0xd0] sm:$0xff]
  %v49 = vld [vmem:[%s0 + $0xd8] sm:$0xff]
  %v50 = vld [vmem:[%s0 + $0xe0] sm:$0xff]
  %v51 = vld [vmem:[%s0 + $0xe8] sm:$0xff]
  %v52 = vld [vmem:[%s0 + $0xf0] sm:$0xff]
  %v53 = vld [vmem:[%s0 + $0xf8] sm:$0xff]
  %v54 = vld [vmem:[%s1] sm:$0xff]
  %v55 = vld [vmem:[%s1 + $0x8] sm:$0xff]
  %v56 = vld [vmem:[%s1 + $0x10] sm:$0xff]
  %v57 = vld [vmem:[%s1 + $0x18] sm:$0xff]
  %v58 = vld [vmem:[%s1 + $0x20] sm:$0xff]
  %v59 = vld [vmem:[%s1 + $0x28] sm:$0xff]
  %v60 = vld [vmem:[%s1 + $0x30] sm:$0xff]
  %v61 = vld [vmem:[%s1 + $0x38] sm:$0xff]
  %v62 = vld [vmem:[%s1 + $0x40] sm:$0xff]
  %v63 = vld [vmem:[%s1 + $0x48] sm:$0xff]
  %v64 = vld [vmem:[%s1 + $0x50] sm:$0xff]
  %v65 = vld [vmem:[%s1 + $0x58] sm:$0xff]
  %v66 = vld [vmem:[%s1 + $0x60] sm:$0xff]
  %v67 = vld [vmem:[%s1 + $0x68] sm:$0xff]
  %v68 = vld [vmem:[%s1 + $0x70] sm:$0xff]
  %v69 = vld [vmem:[%s1 + $0x78] sm:$0xff]
  %v70 = vld [vmem:[%s1 + $0x80] sm:$0xff]
  %v71 = vld [vmem:[%s1 + $0x88] sm:$0xff]
  %v72 = vld [vmem:[%s1 + $0x90] sm:$0xff]
  %v73 = vld [vmem:[%s1 + $0x98] sm:$0xff]
  %v74 = vld [vmem:[%s1 + $0xa0] sm:$0xff]
  %v75 = vld [vmem:[%s1 + $0xa8] sm:$0xff]
  %v76 = vld [vmem:[%s1 + $0xb0] sm:$0xff]
  %v77 = vld [vmem:[%s1 + $0xb8] sm:$0xff]
  %v78 = vld [vmem:[%s1 + $0xc0] sm:$0xff]
  %v79 = vld [vmem:[%s1 + $0xc8] sm:$0xff]
  %v80 = vld [vmem:[%s1 + $0xd0] sm:$0xff]
  %v81 = vld [vmem:[%s1 + $0xd8] sm:$0xff]
  %v82 = vld [vmem:[%s1 + $0xe0] sm:$0xff]
  %v83 = vld [vmem:[%s1 + $0xe8] sm:$0xff]
  %v84 = vld [vmem:[%s1 + $0xf0] sm:$0xff]
  %v85 = vld [vmem:[%s1 + $0xf8] sm:$0xff]
  %v86 = vld [vmem:[%s1 + $0x100] sm:$0xff]
  %v87 = vld [vmem:[%s1 + $0x108] sm:$0xff]
  %v88 = vld [vmem:[%s1 + $0x110] sm:$0xff]
  %v89 = vld [vmem:[%s1 + $0x118] sm:$0xff]
  %v90 = vld [vmem:[%s1 + $0x120] sm:$0xff]
  %v91 = vld [vmem:[%s1 + $0x128] sm:$0xff]
  %v92 = vld [vmem:[%s1 + $0x130] sm:$0xff]
  %v93 = vld [vmem:[%s1 + $0x138] sm:$0xff]
  %v94 = vld [vmem:[%s1 + $0x140] sm:$0xff]
  %v95 = vld [vmem:[%s1 + $0x148] sm:$0xff]
  %v96 = vld [vmem:[%s1 + $0x150] sm:$0xff]
  %v97 = vld [vmem:[%s1 + $0x158] sm:$0xff]
  %v98 = vld [vmem:[%s1 + $0x160] sm:$0xff]
  %v99 = vld [vmem:[%s1 + $0x168] sm:$0xff]
  %v100 = vld [vmem:[%s1 + $0x170] sm:$0xff]
  %v101 = vld [vmem:[%s1 + $0x178] sm:$0xff]
  %v102 = vld [vmem:[%s1 + $0x180] sm:$0xff]
  %v103 = vld [vmem:[%s1 + $0x188] sm:$0xff]
  %v104 = vld [vmem:[%s1 + $0x190] sm:$0xff]
  %v105 = vld [vmem:[%s1 + $0x198] sm:$0xff]
  %v106 = vld [vmem:[%s1 + $0x1a0] sm:$0xff]
  %v107 = vld [vmem:[%s1 + $0x1a8] sm:$0xff]
  %v108 = vld [vmem:[%s1 + $0x1b0] sm:$0xff]
  %v109 = vld [vmem:[%s1 + $0x1b8] sm:$0xff]
  %v110 = vld [vmem:[%s1 + $0x1c0] sm:$0xff]
  %v111 = vld [vmem:[%s1 + $0x1c8] sm:$0xff]
  %v112 = vld [vmem:[%s1 + $0x1d0] sm:$0xff]
  %v113 = vld [vmem:[%s1 + $0x1d8] sm:$0xff]
  %v114 = vld [vmem:[%s1 + $0x1e0] sm:$0xff]
  %v115 = vld [vmem:[%s1 + $0x1e8] sm:$0xff]
  %v116 = vld [vmem:[%s1 + $0x1f0] sm:$0xff]
  %v117 = vld [vmem:[%s1 + $0x1f8] sm:$0xff]
  %v118 = vld [vmem:[%s1 + $0x200] sm:$0xff]
  %v119 = vld [vmem:[%s1 + $0x208] sm:$0xff]
  %v120 = vld [vmem:[%s1 + $0x210] sm:$0xff]
  %v121 = vld [vmem:[%s1 + $0x218] sm:$0xff]
  %v122 = vld [vmem:[%s1 + $0x220] sm:$0xff]
  %v123 = vld [vmem:[%s1 + $0x228] sm:$0xff]
  %v124 = vld [vmem:[%s1 + $0x230] sm:$0xff]
  %v125 = vld [vmem:[%s1 + $0x238] sm:$0xff]
  %v126 = vld [vmem:[%s1 + $0x240] sm:$0xff]
  %v127 = vld [vmem:[%s1 + $0x248] sm:$0xff]
  %v128 = vld [vmem:[%s1 + $0x250] sm:$0xff]
  %v129 = vld [vmem:[%s1 + $0x258] sm:$0xff]
  %v130 = vld [vmem:[%s1 + $0x260] sm:$0xff]
  %v131 = vld [vmem:[%s1 + $0x268] sm:$0xff]
  %v132 = vld [vmem:[%s1 + $0x270] sm:$0xff]
  %v133 = vld [vmem:[%s1 + $0x278] sm:$0xff]
  %v134 = vld [vmem:[%s1 + $0x280] sm:$0xff]
  %v135 = vld [vmem:[%s1 + $0x288] sm:$0xff]
  %v136 = vld [vmem:[%s1 + $0x290] sm:$0xff]
  %v137 = vld [vmem:[%s1 + $0x298] sm:$0xff]
  %v138 = vld [vmem:[%s1 + $0x2a0] sm:$0xff]
  %v139 = vld [vmem:[%s1 + $0x2a8] sm:$0xff]
  %v140 = vld [vmem:[%s1 + $0x2b0] sm:$0xff]
  %v141 = vld [vmem:[%s1 + $0x2b8] sm:$0xff]
  %v142 = vld [vmem:[%s1 + $0x2c0] sm:$0xff]
  %v143 = vld [vmem:[%s1 + $0x2c8] sm:$0xff]
  %v144 = vld [vmem:[%s1 + $0x2d0] sm:$0xff]
  %v145 = vld [vmem:[%s1 + $0x2d8] sm:$0xff]
  %v146 = vld [vmem:[%s1 + $0x2e0] sm:$0xff]
  %v147 = vld [vmem:[%s1 + $0x2e8] sm:$0xff]
  %v148 = vld [vmem:[%s1 + $0x2f0] sm:$0xff]
  %v149 = vld [vmem:[%s1 + $0x2f8] sm:$0xff]
  %v150 = vld [vmem:[%s1 + $0x300] sm:$0xff]
  %v151 = vld [vmem:[%s1 + $0x308] sm:$0xff]
  %v152 = vld [vmem:[%s1 + $0x310] sm:$0xff]
  %v153 = vld [vmem:[%s1 + $0x318] sm:$0xff]
  %v154 = vld [vmem:[%s1 + $0x320] sm:$0xff]
  %v155 = vld [vmem:[%s1 + $0x328] sm:$0xff]
  %v156 = vld [vmem:[%s1 + $0x330] sm:$0xff]
  %v157 = vld [vmem:[%s1 + $0x338] sm:$0xff]
  %v158 = vld [vmem:[%s1 + $0x340] sm:$0xff]
  %v159 = vld [vmem:[%s1 + $0x348] sm:$0xff]
  %v160 = vld [vmem:[%s1 + $0x350] sm:$0xff]
  %v161 = vld [vmem:[%s1 + $0x358] sm:$0xff]
  %v162 = vld [vmem:[%s1 + $0x360] sm:$0xff]
  %v163 = vld [vmem:[%s1 + $0x368] sm:$0xff]
  %v164 = vld [vmem:[%s1 + $0x370] sm:$0xff]
  %v165 = vld [vmem:[%s1 + $0x378] sm:$0xff]
  %v166 = vld [vmem:[%s1 + $0x380] sm:$0xff]
  %v167 = vld [vmem:[%s1 + $0x388] sm:$0xff]
  %v168 = vld [vmem:[%s1 + $0x390] sm:$0xff]
  %v169 = vld [vmem:[%s1 + $0x398] sm:$0xff]
  %v170 = vld [vmem:[%s1 + $0x3a0] sm:$0xff]
  %v171 = vld [vmem:[%s1 + $0x3a8] sm:$0xff]
  %v172 = vld [vmem:[%s1 + $0x3b0] sm:$0xff]
  %v173 = vld [vmem:[%s1 + $0x3b8] sm:$0xff]
  %v174 = vld [vmem:[%s1 + $0x3c0] sm:$0xff]
  %v175 = vld [vmem:[%s1 + $0x3c8] sm:$0xff]
  %v176 = vld [vmem:[%s1 + $0x3d0] sm:$0xff]
  %v177 = vld [vmem:[%s1 + $0x3d8] sm:$0xff]
  %v178 = vld [vmem:[%s1 + $0x3e0] sm:$0xff]
  %v179 = vld [vmem:[%s1 + $0x3e8] sm:$0xff]
  %v180 = vld [vmem:[%s1 + $0x3f0] sm:$0xff]
  %v181 = vld [vmem:[%s1 + $0x3f8] sm:$0xff]
  %v182 = vld [vmem:[%s1 + $0x400] sm:$0xff]
  %v183 = vld [vmem:[%s1 + $0x408] sm:$0xff]
  %v184 = vld [vmem:[%s1 + $0x410] sm:$0xff]
  %v185 = vld [vmem:[%s1 + $0x418] sm:$0xff]
  %v186 = vld [vmem:[%s1 + $0x420] sm:$0xff]
  %v187 = vld [vmem:[%s1 + $0x428] sm:$0xff]
  %v188 = vld [vmem:[%s1 + $0x430] sm:$0xff]
  %v189 = vld [vmem:[%s1 + $0x438] sm:$0xff]
  %v190 = vld [vmem:[%s1 + $0x440] sm:$0xff]
  %v191 = vld [vmem:[%s1 + $0x448] sm:$0xff]
  %v192 = vld [vmem:[%s1 + $0x450] sm:$0xff]
  %v193 = vld [vmem:[%s1 + $0x458] sm:$0xff]
  %v194 = vld [vmem:[%s1 + $0x460] sm:$0xff]
  %v195 = vld [vmem:[%s1 + $0x468] sm:$0xff]
  %v196 = vld [vmem:[%s1 + $0x470] sm:$0xff]
  %v197 = vld [vmem:[%s1 + $0x478] sm:$0xff]
  %v198 = vld [vmem:[%s1 + $0x480] sm:$0xff]
  %v199 = vld [vmem:[%s1 + $0x488] sm:$0xff]
  %v200 = vld [vmem:[%s1 + $0x490] sm:$0xff]
  %v201 = vld [vmem:[%s1 + $0x498] sm:$0xff]
  %v202 = vld [vmem:[%s1 + $0x4a0] sm:$0xff]
  %v203 = vld [vmem:[%s1 + $0x4a8] sm:$0xff]
  %v204 = vld [vmem:[%s1 + $0x4b0] sm:$0xff]
  %v205 = vld [vmem:[%s1 + $0x4b8] sm:$0xff]
  %v206 = vld [vmem:[%s1 + $0x4c0] sm:$0xff]
  %v207 = vld [vmem:[%s1 + $0x4c8] sm:$0xff]
  %v208 = vld [vmem:[%s1 + $0x4d0] sm:$0xff]
  %v209 = vld [vmem:[%s1 + $0x4d8] sm:$0xff]
  %v210 = vld [vmem:[%s1 + $0x4e0] sm:$0xff]
  %v211 = vld [vmem:[%s1 + $0x4e8] sm:$0xff]
  %v212 = vld [vmem:[%s1 + $0x4f0] sm:$0xff]
  %v213 = vld [vmem:[%s1 + $0x4f8] sm:$0xff]
  %v214 = vld [vmem:[%s1 + $0x500] sm:$0xff]
  %v215 = vld [vmem:[%s1 + $0x508] sm:$0xff]
  %v216 = vld [vmem:[%s1 + $0x510] sm:$0xff]
  %v217 = vld [vmem:[%s1 + $0x518] sm:$0xff]
  %v218 = vld [vmem:[%s1 + $0x520] sm:$0xff]
  %v219 = vld [vmem:[%s1 + $0x528] sm:$0xff]
  %v220 = vld [vmem:[%s1 + $0x530] sm:$0xff]
  %v221 = vld [vmem:[%s1 + $0x538] sm:$0xff]
  %v222 = vld [vmem:[%s1 + $0x540] sm:$0xff]
  %v223 = vld [vmem:[%s1 + $0x548] sm:$0xff]
  %v224 = vld [vmem:[%s1 + $0x550] sm:$0xff]
  %v225 = vld [vmem:[%s1 + $0x558] sm:$0xff]
  %v226 = vld [vmem:[%s1 + $0x560] sm:$0xff]
  %v227 = vld [vmem:[%s1 + $0x568] sm:$0xff]
  %v228 = vld [vmem:[%s1 + $0x570] sm:$0xff]
  %v229 = vld [vmem:[%s1 + $0x578] sm:$0xff]
  %v230 = vld [vmem:[%s1 + $0x580] sm:$0xff]
  %v231 = vld [vmem:[%s1 + $0x588] sm:$0xff]
  %v232 = vld [vmem:[%s1 + $0x590] sm:$0xff]
  %v233 = vld [vmem:[%s1 + $0x598] sm:$0xff]
  %v234 = vld [vmem:[%s1 + $0x5a0] sm:$0xff]
  %v235 = vld [vmem:[%s1 + $0x5a8] sm:$0xff]
  %v236 = vld [vmem:[%s1 + $0x5b0] sm:$0xff]
  %v237 = vld [vmem:[%s1 + $0x5b8] sm:$0xff]
  %v238 = vld [vmem:[%s1 + $0x5c0] sm:$0xff]
  %v239 = vld [vmem:[%s1 + $0x5c8] sm:$0xff]
  %v240 = vld [vmem:[%s1 + $0x5d0] sm:$0xff]
  %v241 = vld [vmem:[%s1 + $0x5d8] sm:$0xff]
  %v242 = vld [vmem:[%s1 + $0x5e0] sm:$0xff]
  %v243 = vld [vmem:[%s1 + $0x5e8] sm:$0xff]
  %v244 = vld [vmem:[%s1 + $0x5f0] sm:$0xff]
  %v245 = vld [vmem:[%s1 + $0x5f8] sm:$0xff]
  %v246 = vld [vmem:[%s1 + $0x600] sm:$0xff]
  %v247 = vld [vmem:[%s1 + $0x608] sm:$0xff]
  %v248 = vld [vmem:[%s1 + $0x610] sm:$0xff]
  %v249 = vld [vmem:[%s1 + $0x618] sm:$0xff]
  %v250 = vld [vmem:[%s1 + $0x620] sm:$0xff]
  %v251 = vld [vmem:[%s1 + $0x628] sm:$0xff]
  %v252 = vld [vmem:[%s1 + $0x630] sm:$0xff]
  %v253 = vld [vmem:[%s1 + $0x638] sm:$0xff]
  %v254 = vld [vmem:[%s1 + $0x640] sm:$0xff]
  %v255 = vld [vmem:[%s1 + $0x648] sm:$0xff]
  %v256 = vld [vmem:[%s1 + $0x650] sm:$0xff]
  %v257 = vld [vmem:[%s1 + $0x658] sm:$0xff]
  %v258 = vld [vmem:[%s1 + $0x660] sm:$0xff]
  %v259 = vld [vmem:[%s1 + $0x668] sm:$0xff]
  %v260 = vld [vmem:[%s1 + $0x670] sm:$0xff]
  %v261 = vld [vmem:[%s1 + $0x678] sm:$0xff]
  %v262 = vld [vmem:[%s1 + $0x680] sm:$0xff]
  %v263 = vld [vmem:[%s1 + $0x688] sm:$0xff]
  %v264 = vld [vmem:[%s1 + $0x690] sm:$0xff]
  %v265 = vld [vmem:[%s1 + $0x698] sm:$0xff]
  %v266 = vld [vmem:[%s1 + $0x6a0] sm:$0xff]
  %v267 = vld [vmem:[%s1 + $0x6a8] sm:$0xff]
  %v268 = vld [vmem:[%s1 + $0x6b0] sm:$0xff]
  %v269 = vld [vmem:[%s1 + $0x6b8] sm:$0xff]
  %v270 = vld [vmem:[%s1 + $0x6c0] sm:$0xff]
  %v271 = vld [vmem:[%s1 + $0x6c8] sm:$0xff]
  %v272 = vld [vmem:[%s1 + $0x6d0] sm:$0xff]
  %v273 = vld [vmem:[%s1 + $0x6d8] sm:$0xff]
  %v274 = vld [vmem:[%s1 + $0x6e0] sm:$0xff]
  %v275 = vld [vmem:[%s1 + $0x6e8] sm:$0xff]
  %v276 = vld [vmem:[%s1 + $0x6f0] sm:$0xff]
  %v277 = vld [vmem:[%s1 + $0x6f8] sm:$0xff]
  %v278 = vld [vmem:[%s1 + $0x700] sm:$0xff]
  %v279 = vld [vmem:[%s1 + $0x708] sm:$0xff]
  %v280 = vld [vmem:[%s1 + $0x710] sm:$0xff]
  %v281 = vld [vmem:[%s1 + $0x718] sm:$0xff]
  %v282 = vld [vmem:[%s1 + $0x720] sm:$0xff]
  %v283 = vld [vmem:[%s1 + $0x728] sm:$0xff]
  %v284 = vld [vmem:[%s1 + $0x730] sm:$0xff]
  %v285 = vld [vmem:[%s1 + $0x738] sm:$0xff]
  %v286 = vld [vmem:[%s1 + $0x740] sm:$0xff]
  %v287 = vld [vmem:[%s1 + $0x748] sm:$0xff]
  %v288 = vld [vmem:[%s1 + $0x750] sm:$0xff]
  %v289 = vld [vmem:[%s1 + $0x758] sm:$0xff]
  %v290 = vld [vmem:[%s1 + $0x760] sm:$0xff]
  %v291 = vld [vmem:[%s1 + $0x768] sm:$0xff]
  %v292 = vld [vmem:[%s1 + $0x770] sm:$0xff]
  %v293 = vld [vmem:[%s1 + $0x778] sm:$0xff]
  %v294 = vld [vmem:[%s1 + $0x780] sm:$0xff]
  %v295 = vld [vmem:[%s1 + $0x788] sm:$0xff]
  %v296 = vld [vmem:[%s1 + $0x790] sm:$0xff]
  %v297 = vld [vmem:[%s1 + $0x798] sm:$0xff]
  %v298 = vld [vmem:[%s1 + $0x7a0] sm:$0xff]
  %v299 = vld [vmem:[%s1 + $0x7a8] sm:$0xff]
  %v300 = vld [vmem:[%s1 + $0x7b0] sm:$0xff]
  %v301 = vld [vmem:[%s1 + $0x7b8] sm:$0xff]
  %v302 = vld [vmem:[%s1 + $0x7c0] sm:$0xff]
  %v303 = vld [vmem:[%s1 + $0x7c8] sm:$0xff]
  %v304 = vld [vmem:[%s1 + $0x7d0] sm:$0xff]
  %v305 = vld [vmem:[%s1 + $0x7d8] sm:$0xff]
  %v306 = vld [vmem:[%s1 + $0x7e0] sm:$0xff]
  %v307 = vld [vmem:[%s1 + $0x7e8] sm:$0xff]
  %v308 = vld [vmem:[%s1 + $0x7f0] sm:$0xff]
  %v309 = vld [vmem:[%s1 + $0x7f8] sm:$0xff]
  %v310 = vld [vmem:[%s2] sm:$0x3]
  %v312 = vlaneseq
  %v313 = vshrl.u32 %v312, 7
  %v314 = vsub.s32 0, %v313
  %v315 = vrot.slane %v310, %v314
  %v316 = vlaneseq
  %v317 = vshrl.u32 %v316, 7
  %v318 = vsub.s32 1, %v317
  %v319 = vrot.slane %v310, %v318
  %v354 = vunpack.c.l.b16 %v22
  %v355 = vunpack.c.h.b16 %v22
  %v356 = vunpack.c.l.b16 %v23
  %v357 = vunpack.c.h.b16 %v23
  %v358 = vunpack.c.l.b16 %v24
  %v359 = vunpack.c.h.b16 %v24
  %v360 = vunpack.c.l.b16 %v25
  %v361 = vunpack.c.h.b16 %v25
  %v362 = vunpack.c.l.b16 %v26
  %v363 = vunpack.c.h.b16 %v26
  %v364 = vunpack.c.l.b16 %v27
  %v365 = vunpack.c.h.b16 %v27
  %v366 = vunpack.c.l.b16 %v28
  %v367 = vunpack.c.h.b16 %v28
  %v368 = vunpack.c.l.b16 %v29
  %v369 = vunpack.c.h.b16 %v29
  %v370 = vunpack.c.l.b16 %v30
  %v371 = vunpack.c.h.b16 %v30
  %v372 = vunpack.c.l.b16 %v31
  %v373 = vunpack.c.h.b16 %v31
  %v374 = vunpack.c.l.b16 %v32
  %v375 = vunpack.c.h.b16 %v32
  %v376 = vunpack.c.l.b16 %v33
  %v377 = vunpack.c.h.b16 %v33
  %v378 = vunpack.c.l.b16 %v34
  %v379 = vunpack.c.h.b16 %v34
  %v380 = vunpack.c.l.b16 %v35
  %v381 = vunpack.c.h.b16 %v35
  %v382 = vunpack.c.l.b16 %v36
  %v383 = vunpack.c.h.b16 %v36
  %v384 = vunpack.c.l.b16 %v37
  %v385 = vunpack.c.h.b16 %v37
  %v386 = vunpack.c.l.b16 %v38
  %v387 = vunpack.c.h.b16 %v38
  %v388 = vunpack.c.l.b16 %v39
  %v389 = vunpack.c.h.b16 %v39
  %v390 = vunpack.c.l.b16 %v40
  %v391 = vunpack.c.h.b16 %v40
  %v392 = vunpack.c.l.b16 %v41
  %v393 = vunpack.c.h.b16 %v41
  %v394 = vunpack.c.l.b16 %v42
  %v395 = vunpack.c.h.b16 %v42
  %v396 = vunpack.c.l.b16 %v43
  %v397 = vunpack.c.h.b16 %v43
  %v398 = vunpack.c.l.b16 %v44
  %v399 = vunpack.c.h.b16 %v44
  %v400 = vunpack.c.l.b16 %v45
  %v401 = vunpack.c.h.b16 %v45
  %v402 = vunpack.c.l.b16 %v46
  %v403 = vunpack.c.h.b16 %v46
  %v404 = vunpack.c.l.b16 %v47
  %v405 = vunpack.c.h.b16 %v47
  %v406 = vunpack.c.l.b16 %v48
  %v407 = vunpack.c.h.b16 %v48
  %v408 = vunpack.c.l.b16 %v49
  %v409 = vunpack.c.h.b16 %v49
  %v410 = vunpack.c.l.b16 %v50
  %v411 = vunpack.c.h.b16 %v50
  %v412 = vunpack.c.l.b16 %v51
  %v413 = vunpack.c.h.b16 %v51
  %v414 = vunpack.c.l.b16 %v52
  %v415 = vunpack.c.h.b16 %v52
  %v416 = vunpack.c.l.b16 %v53
  %v417 = vunpack.c.h.b16 %v53
  %v418 = vpack.c.b16 %v370, %v354
  %v419 = vpack.c.b16 %v371, %v355
  %v420 = vpack.c.b16 %v372, %v356
  %v421 = vpack.c.b16 %v373, %v357
  %v422 = vpack.c.b16 %v374, %v358
  %v423 = vpack.c.b16 %v375, %v359
  %v424 = vpack.c.b16 %v376, %v360
  %v425 = vpack.c.b16 %v377, %v361
  %v426 = vpack.c.b16 %v378, %v362
  %v427 = vpack.c.b16 %v379, %v363
  %v428 = vpack.c.b16 %v380, %v364
  %v429 = vpack.c.b16 %v381, %v365
  %v430 = vpack.c.b16 %v382, %v366
  %v431 = vpack.c.b16 %v383, %v367
  %v432 = vpack.c.b16 %v384, %v368
  %v433 = vpack.c.b16 %v385, %v369
  %v434 = vpack.c.b16 %v402, %v386
  %v435 = vpack.c.b16 %v403, %v387
  %v436 = vpack.c.b16 %v404, %v388
  %v437 = vpack.c.b16 %v405, %v389
  %v438 = vpack.c.b16 %v406, %v390
  %v439 = vpack.c.b16 %v407, %v391
  %v440 = vpack.c.b16 %v408, %v392
  %v441 = vpack.c.b16 %v409, %v393
  %v442 = vpack.c.b16 %v410, %v394
  %v443 = vpack.c.b16 %v411, %v395
  %v444 = vpack.c.b16 %v412, %v396
  %v445 = vpack.c.b16 %v413, %v397
  %v446 = vpack.c.b16 %v414, %v398
  %v447 = vpack.c.b16 %v415, %v399
  %v448 = vpack.c.b16 %v416, %v400
  %v449 = vpack.c.b16 %v417, %v401
  %v738 = vunpack.c.l.b16 %v54
  %v739 = vunpack.c.h.b16 %v54
  %v740 = vunpack.c.l.b16 %v55
  %v741 = vunpack.c.h.b16 %v55
  %v742 = vunpack.c.l.b16 %v56
  %v743 = vunpack.c.h.b16 %v56
  %v744 = vunpack.c.l.b16 %v57
  %v745 = vunpack.c.h.b16 %v57
  %v746 = vunpack.c.l.b16 %v58
  %v747 = vunpack.c.h.b16 %v58
  %v748 = vunpack.c.l.b16 %v59
  %v749 = vunpack.c.h.b16 %v59
  %v750 = vunpack.c.l.b16 %v60
  %v751 = vunpack.c.h.b16 %v60
  %v752 = vunpack.c.l.b16 %v61
  %v753 = vunpack.c.h.b16 %v61
  %v754 = vunpack.c.l.b16 %v62
  %v755 = vunpack.c.h.b16 %v62
  %v756 = vunpack.c.l.b16 %v63
  %v757 = vunpack.c.h.b16 %v63
  %v758 = vunpack.c.l.b16 %v64
  %v759 = vunpack.c.h.b16 %v64
  %v760 = vunpack.c.l.b16 %v65
  %v761 = vunpack.c.h.b16 %v65
  %v762 = vunpack.c.l.b16 %v66
  %v763 = vunpack.c.h.b16 %v66
  %v764 = vunpack.c.l.b16 %v67
  %v765 = vunpack.c.h.b16 %v67
  %v766 = vunpack.c.l.b16 %v68
  %v767 = vunpack.c.h.b16 %v68
  %v768 = vunpack.c.l.b16 %v69
  %v769 = vunpack.c.h.b16 %v69
  %v770 = vunpack.c.l.b16 %v70
  %v771 = vunpack.c.h.b16 %v70
  %v772 = vunpack.c.l.b16 %v71
  %v773 = vunpack.c.h.b16 %v71
  %v774 = vunpack.c.l.b16 %v72
  %v775 = vunpack.c.h.b16 %v72
  %v776 = vunpack.c.l.b16 %v73
  %v777 = vunpack.c.h.b16 %v73
  %v778 = vunpack.c.l.b16 %v74
  %v779 = vunpack.c.h.b16 %v74
  %v780 = vunpack.c.l.b16 %v75
  %v781 = vunpack.c.h.b16 %v75
  %v782 = vunpack.c.l.b16 %v76
  %v783 = vunpack.c.h.b16 %v76
  %v784 = vunpack.c.l.b16 %v77
  %v785 = vunpack.c.h.b16 %v77
  %v786 = vunpack.c.l.b16 %v78
  %v787 = vunpack.c.h.b16 %v78
  %v788 = vunpack.c.l.b16 %v79
  %v789 = vunpack.c.h.b16 %v79
  %v790 = vunpack.c.l.b16 %v80
  %v791 = vunpack.c.h.b16 %v80
  %v792 = vunpack.c.l.b16 %v81
  %v793 = vunpack.c.h.b16 %v81
  %v794 = vunpack.c.l.b16 %v82
  %v795 = vunpack.c.h.b16 %v82
  %v796 = vunpack.c.l.b16 %v83
  %v797 = vunpack.c.h.b16 %v83
  %v798 = vunpack.c.l.b16 %v84
  %v799 = vunpack.c.h.b16 %v84
  %v800 = vunpack.c.l.b16 %v85
  %v801 = vunpack.c.h.b16 %v85
  %v802 = vunpack.c.l.b16 %v86
  %v803 = vunpack.c.h.b16 %v86
  %v804 = vunpack.c.l.b16 %v87
  %v805 = vunpack.c.h.b16 %v87
  %v806 = vunpack.c.l.b16 %v88
  %v807 = vunpack.c.h.b16 %v88
  %v808 = vunpack.c.l.b16 %v89
  %v809 = vunpack.c.h.b16 %v89
  %v810 = vunpack.c.l.b16 %v90
  %v811 = vunpack.c.h.b16 %v90
  %v812 = vunpack.c.l.b16 %v91
  %v813 = vunpack.c.h.b16 %v91
  %v814 = vunpack.c.l.b16 %v92
  %v815 = vunpack.c.h.b16 %v92
  %v816 = vunpack.c.l.b16 %v93
  %v817 = vunpack.c.h.b16 %v93
  %v818 = vunpack.c.l.b16 %v94
  %v819 = vunpack.c.h.b16 %v94
  %v820 = vunpack.c.l.b16 %v95
  %v821 = vunpack.c.h.b16 %v95
  %v822 = vunpack.c.l.b16 %v96
  %v823 = vunpack.c.h.b16 %v96
  %v824 = vunpack.c.l.b16 %v97
  %v825 = vunpack.c.h.b16 %v97
  %v826 = vunpack.c.l.b16 %v98
  %v827 = vunpack.c.h.b16 %v98
  %v828 = vunpack.c.l.b16 %v99
  %v829 = vunpack.c.h.b16 %v99
  %v830 = vunpack.c.l.b16 %v100
  %v831 = vunpack.c.h.b16 %v100
  %v832 = vunpack.c.l.b16 %v101
  %v833 = vunpack.c.h.b16 %v101
  %v834 = vunpack.c.l.b16 %v102
  %v835 = vunpack.c.h.b16 %v102
  %v836 = vunpack.c.l.b16 %v103
  %v837 = vunpack.c.h.b16 %v103
  %v838 = vunpack.c.l.b16 %v104
  %v839 = vunpack.c.h.b16 %v104
  %v840 = vunpack.c.l.b16 %v105
  %v841 = vunpack.c.h.b16 %v105
  %v842 = vunpack.c.l.b16 %v106
  %v843 = vunpack.c.h.b16 %v106
  %v844 = vunpack.c.l.b16 %v107
  %v845 = vunpack.c.h.b16 %v107
  %v846 = vunpack.c.l.b16 %v108
  %v847 = vunpack.c.h.b16 %v108
  %v848 = vunpack.c.l.b16 %v109
  %v849 = vunpack.c.h.b16 %v109
  %v850 = vunpack.c.l.b16 %v110
  %v851 = vunpack.c.h.b16 %v110
  %v852 = vunpack.c.l.b16 %v111
  %v853 = vunpack.c.h.b16 %v111
  %v854 = vunpack.c.l.b16 %v112
  %v855 = vunpack.c.h.b16 %v112
  %v856 = vunpack.c.l.b16 %v113
  %v857 = vunpack.c.h.b16 %v113
  %v858 = vunpack.c.l.b16 %v114
  %v859 = vunpack.c.h.b16 %v114
  %v860 = vunpack.c.l.b16 %v115
  %v861 = vunpack.c.h.b16 %v115
  %v862 = vunpack.c.l.b16 %v116
  %v863 = vunpack.c.h.b16 %v116
  %v864 = vunpack.c.l.b16 %v117
  %v865 = vunpack.c.h.b16 %v117
  %v866 = vunpack.c.l.b16 %v118
  %v867 = vunpack.c.h.b16 %v118
  %v868 = vunpack.c.l.b16 %v119
  %v869 = vunpack.c.h.b16 %v119
  %v870 = vunpack.c.l.b16 %v120
  %v871 = vunpack.c.h.b16 %v120
  %v872 = vunpack.c.l.b16 %v121
  %v873 = vunpack.c.h.b16 %v121
  %v874 = vunpack.c.l.b16 %v122
  %v875 = vunpack.c.h.b16 %v122
  %v876 = vunpack.c.l.b16 %v123
  %v877 = vunpack.c.h.b16 %v123
  %v878 = vunpack.c.l.b16 %v124
  %v879 = vunpack.c.h.b16 %v124
  %v880 = vunpack.c.l.b16 %v125
  %v881 = vunpack.c.h.b16 %v125
  %v882 = vunpack.c.l.b16 %v126
  %v883 = vunpack.c.h.b16 %v126
  %v884 = vunpack.c.l.b16 %v127
  %v885 = vunpack.c.h.b16 %v127
  %v886 = vunpack.c.l.b16 %v128
  %v887 = vunpack.c.h.b16 %v128
  %v888 = vunpack.c.l.b16 %v129
  %v889 = vunpack.c.h.b16 %v129
  %v890 = vunpack.c.l.b16 %v130
  %v891 = vunpack.c.h.b16 %v130
  %v892 = vunpack.c.l.b16 %v131
  %v893 = vunpack.c.h.b16 %v131
  %v894 = vunpack.c.l.b16 %v132
  %v895 = vunpack.c.h.b16 %v132
  %v896 = vunpack.c.l.b16 %v133
  %v897 = vunpack.c.h.b16 %v133
  %v898 = vunpack.c.l.b16 %v134
  %v899 = vunpack.c.h.b16 %v134
  %v900 = vunpack.c.l.b16 %v135
  %v901 = vunpack.c.h.b16 %v135
  %v902 = vunpack.c.l.b16 %v136
  %v903 = vunpack.c.h.b16 %v136
  %v904 = vunpack.c.l.b16 %v137
  %v905 = vunpack.c.h.b16 %v137
  %v906 = vunpack.c.l.b16 %v138
  %v907 = vunpack.c.h.b16 %v138
  %v908 = vunpack.c.l.b16 %v139
  %v909 = vunpack.c.h.b16 %v139
  %v910 = vunpack.c.l.b16 %v140
  %v911 = vunpack.c.h.b16 %v140
  %v912 = vunpack.c.l.b16 %v141
  %v913 = vunpack.c.h.b16 %v141
  %v914 = vunpack.c.l.b16 %v142
  %v915 = vunpack.c.h.b16 %v142
  %v916 = vunpack.c.l.b16 %v143
  %v917 = vunpack.c.h.b16 %v143
  %v918 = vunpack.c.l.b16 %v144
  %v919 = vunpack.c.h.b16 %v144
  %v920 = vunpack.c.l.b16 %v145
  %v921 = vunpack.c.h.b16 %v145
  %v922 = vunpack.c.l.b16 %v146
  %v923 = vunpack.c.h.b16 %v146
  %v924 = vunpack.c.l.b16 %v147
  %v925 = vunpack.c.h.b16 %v147
  %v926 = vunpack.c.l.b16 %v148
  %v927 = vunpack.c.h.b16 %v148
  %v928 = vunpack.c.l.b16 %v149
  %v929 = vunpack.c.h.b16 %v149
  %v930 = vunpack.c.l.b16 %v150
  %v931 = vunpack.c.h.b16 %v150
  %v932 = vunpack.c.l.b16 %v151
  %v933 = vunpack.c.h.b16 %v151
  %v934 = vunpack.c.l.b16 %v152
  %v935 = vunpack.c.h.b16 %v152
  %v936 = vunpack.c.l.b16 %v153
  %v937 = vunpack.c.h.b16 %v153
  %v938 = vunpack.c.l.b16 %v154
  %v939 = vunpack.c.h.b16 %v154
  %v940 = vunpack.c.l.b16 %v155
  %v941 = vunpack.c.h.b16 %v155
  %v942 = vunpack.c.l.b16 %v156
  %v943 = vunpack.c.h.b16 %v156
  %v944 = vunpack.c.l.b16 %v157
  %v945 = vunpack.c.h.b16 %v157
  %v946 = vunpack.c.l.b16 %v158
  %v947 = vunpack.c.h.b16 %v158
  %v948 = vunpack.c.l.b16 %v159
  %v949 = vunpack.c.h.b16 %v159
  %v950 = vunpack.c.l.b16 %v160
  %v951 = vunpack.c.h.b16 %v160
  %v952 = vunpack.c.l.b16 %v161
  %v953 = vunpack.c.h.b16 %v161
  %v954 = vunpack.c.l.b16 %v162
  %v955 = vunpack.c.h.b16 %v162
  %v956 = vunpack.c.l.b16 %v163
  %v957 = vunpack.c.h.b16 %v163
  %v958 = vunpack.c.l.b16 %v164
  %v959 = vunpack.c.h.b16 %v164
  %v960 = vunpack.c.l.b16 %v165
  %v961 = vunpack.c.h.b16 %v165
  %v962 = vunpack.c.l.b16 %v166
  %v963 = vunpack.c.h.b16 %v166
  %v964 = vunpack.c.l.b16 %v167
  %v965 = vunpack.c.h.b16 %v167
  %v966 = vunpack.c.l.b16 %v168
  %v967 = vunpack.c.h.b16 %v168
  %v968 = vunpack.c.l.b16 %v169
  %v969 = vunpack.c.h.b16 %v169
  %v970 = vunpack.c.l.b16 %v170
  %v971 = vunpack.c.h.b16 %v170
  %v972 = vunpack.c.l.b16 %v171
  %v973 = vunpack.c.h.b16 %v171
  %v974 = vunpack.c.l.b16 %v172
  %v975 = vunpack.c.h.b16 %v172
  %v976 = vunpack.c.l.b16 %v173
  %v977 = vunpack.c.h.b16 %v173
  %v978 = vunpack.c.l.b16 %v174
  %v979 = vunpack.c.h.b16 %v174
  %v980 = vunpack.c.l.b16 %v175
  %v981 = vunpack.c.h.b16 %v175
  %v982 = vunpack.c.l.b16 %v176
  %v983 = vunpack.c.h.b16 %v176
  %v984 = vunpack.c.l.b16 %v177
  %v985 = vunpack.c.h.b16 %v177
  %v986 = vunpack.c.l.b16 %v178
  %v987 = vunpack.c.h.b16 %v178
  %v988 = vunpack.c.l.b16 %v179
  %v989 = vunpack.c.h.b16 %v179
  %v990 = vunpack.c.l.b16 %v180
  %v991 = vunpack.c.h.b16 %v180
  %v992 = vunpack.c.l.b16 %v181
  %v993 = vunpack.c.h.b16 %v181
  %v994 = vunpack.c.l.b16 %v182
  %v995 = vunpack.c.h.b16 %v182
  %v996 = vunpack.c.l.b16 %v183
  %v997 = vunpack.c.h.b16 %v183
  %v998 = vunpack.c.l.b16 %v184
  %v999 = vunpack.c.h.b16 %v184
  %v1000 = vunpack.c.l.b16 %v185
  %v1001 = vunpack.c.h.b16 %v185
  %v1002 = vunpack.c.l.b16 %v186
  %v1003 = vunpack.c.h.b16 %v186
  %v1004 = vunpack.c.l.b16 %v187
  %v1005 = vunpack.c.h.b16 %v187
  %v1006 = vunpack.c.l.b16 %v188
  %v1007 = vunpack.c.h.b16 %v188
  %v1008 = vunpack.c.l.b16 %v189
  %v1009 = vunpack.c.h.b16 %v189
  %v1010 = vunpack.c.l.b16 %v190
  %v1011 = vunpack.c.h.b16 %v190
  %v1012 = vunpack.c.l.b16 %v191
  %v1013 = vunpack.c.h.b16 %v191
  %v1014 = vunpack.c.l.b16 %v192
  %v1015 = vunpack.c.h.b16 %v192
  %v1016 = vunpack.c.l.b16 %v193
  %v1017 = vunpack.c.h.b16 %v193
  %v1018 = vunpack.c.l.b16 %v194
  %v1019 = vunpack.c.h.b16 %v194
  %v1020 = vunpack.c.l.b16 %v195
  %v1021 = vunpack.c.h.b16 %v195
  %v1022 = vunpack.c.l.b16 %v196
  %v1023 = vunpack.c.h.b16 %v196
  %v1024 = vunpack.c.l.b16 %v197
  %v1025 = vunpack.c.h.b16 %v197
  %v1026 = vunpack.c.l.b16 %v198
  %v1027 = vunpack.c.h.b16 %v198
  %v1028 = vunpack.c.l.b16 %v199
  %v1029 = vunpack.c.h.b16 %v199
  %v1030 = vunpack.c.l.b16 %v200
  %v1031 = vunpack.c.h.b16 %v200
  %v1032 = vunpack.c.l.b16 %v201
  %v1033 = vunpack.c.h.b16 %v201
  %v1034 = vunpack.c.l.b16 %v202
  %v1035 = vunpack.c.h.b16 %v202
  %v1036 = vunpack.c.l.b16 %v203
  %v1037 = vunpack.c.h.b16 %v203
  %v1038 = vunpack.c.l.b16 %v204
  %v1039 = vunpack.c.h.b16 %v204
  %v1040 = vunpack.c.l.b16 %v205
  %v1041 = vunpack.c.h.b16 %v205
  %v1042 = vunpack.c.l.b16 %v206
  %v1043 = vunpack.c.h.b16 %v206
  %v1044 = vunpack.c.l.b16 %v207
  %v1045 = vunpack.c.h.b16 %v207
  %v1046 = vunpack.c.l.b16 %v208
  %v1047 = vunpack.c.h.b16 %v208
  %v1048 = vunpack.c.l.b16 %v209
  %v1049 = vunpack.c.h.b16 %v209
  %v1050 = vunpack.c.l.b16 %v210
  %v1051 = vunpack.c.h.b16 %v210
  %v1052 = vunpack.c.l.b16 %v211
  %v1053 = vunpack.c.h.b16 %v211
  %v1054 = vunpack.c.l.b16 %v212
  %v1055 = vunpack.c.h.b16 %v212
  %v1056 = vunpack.c.l.b16 %v213
  %v1057 = vunpack.c.h.b16 %v213
  %v1058 = vunpack.c.l.b16 %v214
  %v1059 = vunpack.c.h.b16 %v214
  %v1060 = vunpack.c.l.b16 %v215
  %v1061 = vunpack.c.h.b16 %v215
  %v1062 = vunpack.c.l.b16 %v216
  %v1063 = vunpack.c.h.b16 %v216
  %v1064 = vunpack.c.l.b16 %v217
  %v1065 = vunpack.c.h.b16 %v217
  %v1066 = vunpack.c.l.b16 %v218
  %v1067 = vunpack.c.h.b16 %v218
  %v1068 = vunpack.c.l.b16 %v219
  %v1069 = vunpack.c.h.b16 %v219
  %v1070 = vunpack.c.l.b16 %v220
  %v1071 = vunpack.c.h.b16 %v220
  %v1072 = vunpack.c.l.b16 %v221
  %v1073 = vunpack.c.h.b16 %v221
  %v1074 = vunpack.c.l.b16 %v222
  %v1075 = vunpack.c.h.b16 %v222
  %v1076 = vunpack.c.l.b16 %v223
  %v1077 = vunpack.c.h.b16 %v223
  %v1078 = vunpack.c.l.b16 %v224
  %v1079 = vunpack.c.h.b16 %v224
  %v1080 = vunpack.c.l.b16 %v225
  %v1081 = vunpack.c.h.b16 %v225
  %v1082 = vunpack.c.l.b16 %v226
  %v1083 = vunpack.c.h.b16 %v226
  %v1084 = vunpack.c.l.b16 %v227
  %v1085 = vunpack.c.h.b16 %v227
  %v1086 = vunpack.c.l.b16 %v228
  %v1087 = vunpack.c.h.b16 %v228
  %v1088 = vunpack.c.l.b16 %v229
  %v1089 = vunpack.c.h.b16 %v229
  %v1090 = vunpack.c.l.b16 %v230
  %v1091 = vunpack.c.h.b16 %v230
  %v1092 = vunpack.c.l.b16 %v231
  %v1093 = vunpack.c.h.b16 %v231
  %v1094 = vunpack.c.l.b16 %v232
  %v1095 = vunpack.c.h.b16 %v232
  %v1096 = vunpack.c.l.b16 %v233
  %v1097 = vunpack.c.h.b16 %v233
  %v1098 = vunpack.c.l.b16 %v234
  %v1099 = vunpack.c.h.b16 %v234
  %v1100 = vunpack.c.l.b16 %v235
  %v1101 = vunpack.c.h.b16 %v235
  %v1102 = vunpack.c.l.b16 %v236
  %v1103 = vunpack.c.h.b16 %v236
  %v1104 = vunpack.c.l.b16 %v237
  %v1105 = vunpack.c.h.b16 %v237
  %v1106 = vunpack.c.l.b16 %v238
  %v1107 = vunpack.c.h.b16 %v238
  %v1108 = vunpack.c.l.b16 %v239
  %v1109 = vunpack.c.h.b16 %v239
  %v1110 = vunpack.c.l.b16 %v240
  %v1111 = vunpack.c.h.b16 %v240
  %v1112 = vunpack.c.l.b16 %v241
  %v1113 = vunpack.c.h.b16 %v241
  %v1114 = vunpack.c.l.b16 %v242
  %v1115 = vunpack.c.h.b16 %v242
  %v1116 = vunpack.c.l.b16 %v243
  %v1117 = vunpack.c.h.b16 %v243
  %v1118 = vunpack.c.l.b16 %v244
  %v1119 = vunpack.c.h.b16 %v244
  %v1120 = vunpack.c.l.b16 %v245
  %v1121 = vunpack.c.h.b16 %v245
  %v1122 = vunpack.c.l.b16 %v246
  %v1123 = vunpack.c.h.b16 %v246
  %v1124 = vunpack.c.l.b16 %v247
  %v1125 = vunpack.c.h.b16 %v247
  %v1126 = vunpack.c.l.b16 %v248
  %v1127 = vunpack.c.h.b16 %v248
  %v1128 = vunpack.c.l.b16 %v249
  %v1129 = vunpack.c.h.b16 %v249
  %v1130 = vunpack.c.l.b16 %v250
  %v1131 = vunpack.c.h.b16 %v250
  %v1132 = vunpack.c.l.b16 %v251
  %v1133 = vunpack.c.h.b16 %v251
  %v1134 = vunpack.c.l.b16 %v252
  %v1135 = vunpack.c.h.b16 %v252
  %v1136 = vunpack.c.l.b16 %v253
  %v1137 = vunpack.c.h.b16 %v253
  %v1138 = vunpack.c.l.b16 %v254
  %v1139 = vunpack.c.h.b16 %v254
  %v1140 = vunpack.c.l.b16 %v255
  %v1141 = vunpack.c.h.b16 %v255
  %v1142 = vunpack.c.l.b16 %v256
  %v1143 = vunpack.c.h.b16 %v256
  %v1144 = vunpack.c.l.b16 %v257
  %v1145 = vunpack.c.h.b16 %v257
  %v1146 = vunpack.c.l.b16 %v258
  %v1147 = vunpack.c.h.b16 %v258
  %v1148 = vunpack.c.l.b16 %v259
  %v1149 = vunpack.c.h.b16 %v259
  %v1150 = vunpack.c.l.b16 %v260
  %v1151 = vunpack.c.h.b16 %v260
  %v1152 = vunpack.c.l.b16 %v261
  %v1153 = vunpack.c.h.b16 %v261
  %v1154 = vunpack.c.l.b16 %v262
  %v1155 = vunpack.c.h.b16 %v262
  %v1156 = vunpack.c.l.b16 %v263
  %v1157 = vunpack.c.h.b16 %v263
  %v1158 = vunpack.c.l.b16 %v264
  %v1159 = vunpack.c.h.b16 %v264
  %v1160 = vunpack.c.l.b16 %v265
  %v1161 = vunpack.c.h.b16 %v265
  %v1162 = vunpack.c.l.b16 %v266
  %v1163 = vunpack.c.h.b16 %v266
  %v1164 = vunpack.c.l.b16 %v267
  %v1165 = vunpack.c.h.b16 %v267
  %v1166 = vunpack.c.l.b16 %v268
  %v1167 = vunpack.c.h.b16 %v268
  %v1168 = vunpack.c.l.b16 %v269
  %v1169 = vunpack.c.h.b16 %v269
  %v1170 = vunpack.c.l.b16 %v270
  %v1171 = vunpack.c.h.b16 %v270
  %v1172 = vunpack.c.l.b16 %v271
  %v1173 = vunpack.c.h.b16 %v271
  %v1174 = vunpack.c.l.b16 %v272
  %v1175 = vunpack.c.h.b16 %v272
  %v1176 = vunpack.c.l.b16 %v273
  %v1177 = vunpack.c.h.b16 %v273
  %v1178 = vunpack.c.l.b16 %v274
  %v1179 = vunpack.c.h.b16 %v274
  %v1180 = vunpack.c.l.b16 %v275
  %v1181 = vunpack.c.h.b16 %v275
  %v1182 = vunpack.c.l.b16 %v276
  %v1183 = vunpack.c.h.b16 %v276
  %v1184 = vunpack.c.l.b16 %v277
  %v1185 = vunpack.c.h.b16 %v277
  %v1186 = vunpack.c.l.b16 %v278
  %v1187 = vunpack.c.h.b16 %v278
  %v1188 = vunpack.c.l.b16 %v279
  %v1189 = vunpack.c.h.b16 %v279
  %v1190 = vunpack.c.l.b16 %v280
  %v1191 = vunpack.c.h.b16 %v280
  %v1192 = vunpack.c.l.b16 %v281
  %v1193 = vunpack.c.h.b16 %v281
  %v1194 = vunpack.c.l.b16 %v282
  %v1195 = vunpack.c.h.b16 %v282
  %v1196 = vunpack.c.l.b16 %v283
  %v1197 = vunpack.c.h.b16 %v283
  %v1198 = vunpack.c.l.b16 %v284
  %v1199 = vunpack.c.h.b16 %v284
  %v1200 = vunpack.c.l.b16 %v285
  %v1201 = vunpack.c.h.b16 %v285
  %v1202 = vunpack.c.l.b16 %v286
  %v1203 = vunpack.c.h.b16 %v286
  %v1204 = vunpack.c.l.b16 %v287
  %v1205 = vunpack.c.h.b16 %v287
  %v1206 = vunpack.c.l.b16 %v288
  %v1207 = vunpack.c.h.b16 %v288
  %v1208 = vunpack.c.l.b16 %v289
  %v1209 = vunpack.c.h.b16 %v289
  %v1210 = vunpack.c.l.b16 %v290
  %v1211 = vunpack.c.h.b16 %v290
  %v1212 = vunpack.c.l.b16 %v291
  %v1213 = vunpack.c.h.b16 %v291
  %v1214 = vunpack.c.l.b16 %v292
  %v1215 = vunpack.c.h.b16 %v292
  %v1216 = vunpack.c.l.b16 %v293
  %v1217 = vunpack.c.h.b16 %v293
  %v1218 = vunpack.c.l.b16 %v294
  %v1219 = vunpack.c.h.b16 %v294
  %v1220 = vunpack.c.l.b16 %v295
  %v1221 = vunpack.c.h.b16 %v295
  %v1222 = vunpack.c.l.b16 %v296
  %v1223 = vunpack.c.h.b16 %v296
  %v1224 = vunpack.c.l.b16 %v297
  %v1225 = vunpack.c.h.b16 %v297
  %v1226 = vunpack.c.l.b16 %v298
  %v1227 = vunpack.c.h.b16 %v298
  %v1228 = vunpack.c.l.b16 %v299
  %v1229 = vunpack.c.h.b16 %v299
  %v1230 = vunpack.c.l.b16 %v300
  %v1231 = vunpack.c.h.b16 %v300
  %v1232 = vunpack.c.l.b16 %v301
  %v1233 = vunpack.c.h.b16 %v301
  %v1234 = vunpack.c.l.b16 %v302
  %v1235 = vunpack.c.h.b16 %v302
  %v1236 = vunpack.c.l.b16 %v303
  %v1237 = vunpack.c.h.b16 %v303
  %v1238 = vunpack.c.l.b16 %v304
  %v1239 = vunpack.c.h.b16 %v304
  %v1240 = vunpack.c.l.b16 %v305
  %v1241 = vunpack.c.h.b16 %v305
  %v1242 = vunpack.c.l.b16 %v306
  %v1243 = vunpack.c.h.b16 %v306
  %v1244 = vunpack.c.l.b16 %v307
  %v1245 = vunpack.c.h.b16 %v307
  %v1246 = vunpack.c.l.b16 %v308
  %v1247 = vunpack.c.h.b16 %v308
  %v1248 = vunpack.c.l.b16 %v309
  %v1249 = vunpack.c.h.b16 %v309
  %v1250 = vpack.c.b16 %v740, %v738
  %v1251 = vpack.c.b16 %v741, %v739
  %v1252 = vpack.c.b16 %v744, %v742
  %v1253 = vpack.c.b16 %v745, %v743
  %v1254 = vpack.c.b16 %v748, %v746
  %v1255 = vpack.c.b16 %v749, %v747
  %v1256 = vpack.c.b16 %v752, %v750
  %v1257 = vpack.c.b16 %v753, %v751
  %v1258 = vpack.c.b16 %v756, %v754
  %v1259 = vpack.c.b16 %v757, %v755
  %v1260 = vpack.c.b16 %v760, %v758
  %v1261 = vpack.c.b16 %v761, %v759
  %v1262 = vpack.c.b16 %v764, %v762
  %v1263 = vpack.c.b16 %v765, %v763
  %v1264 = vpack.c.b16 %v768, %v766
  %v1265 = vpack.c.b16 %v769, %v767
  %v1266 = vpack.c.b16 %v772, %v770
  %v1267 = vpack.c.b16 %v773, %v771
  %v1268 = vpack.c.b16 %v776, %v774
  %v1269 = vpack.c.b16 %v777, %v775
  %v1270 = vpack.c.b16 %v780, %v778
  %v1271 = vpack.c.b16 %v781, %v779
  %v1272 = vpack.c.b16 %v784, %v782
  %v1273 = vpack.c.b16 %v785, %v783
  %v1274 = vpack.c.b16 %v788, %v786
  %v1275 = vpack.c.b16 %v789, %v787
  %v1276 = vpack.c.b16 %v792, %v790
  %v1277 = vpack.c.b16 %v793, %v791
  %v1278 = vpack.c.b16 %v796, %v794
  %v1279 = vpack.c.b16 %v797, %v795
  %v1280 = vpack.c.b16 %v800, %v798
  %v1281 = vpack.c.b16 %v801, %v799
  %v1282 = vpack.c.b16 %v804, %v802
  %v1283 = vpack.c.b16 %v805, %v803
  %v1284 = vpack.c.b16 %v808, %v806
  %v1285 = vpack.c.b16 %v809, %v807
  %v1286 = vpack.c.b16 %v812, %v810
  %v1287 = vpack.c.b16 %v813, %v811
  %v1288 = vpack.c.b16 %v816, %v814
  %v1289 = vpack.c.b16 %v817, %v815
  %v1290 = vpack.c.b16 %v820, %v818
  %v1291 = vpack.c.b16 %v821, %v819
  %v1292 = vpack.c.b16 %v824, %v822
  %v1293 = vpack.c.b16 %v825, %v823
  %v1294 = vpack.c.b16 %v828, %v826
  %v1295 = vpack.c.b16 %v829, %v827
  %v1296 = vpack.c.b16 %v832, %v830
  %v1297 = vpack.c.b16 %v833, %v831
  %v1298 = vpack.c.b16 %v836, %v834
  %v1299 = vpack.c.b16 %v837, %v835
  %v1300 = vpack.c.b16 %v840, %v838
  %v1301 = vpack.c.b16 %v841, %v839
  %v1302 = vpack.c.b16 %v844, %v842
  %v1303 = vpack.c.b16 %v845, %v843
  %v1304 = vpack.c.b16 %v848, %v846
  %v1305 = vpack.c.b16 %v849, %v847
  %v1306 = vpack.c.b16 %v852, %v850
  %v1307 = vpack.c.b16 %v853, %v851
  %v1308 = vpack.c.b16 %v856, %v854
  %v1309 = vpack.c.b16 %v857, %v855
  %v1310 = vpack.c.b16 %v860, %v858
  %v1311 = vpack.c.b16 %v861, %v859
  %v1312 = vpack.c.b16 %v864, %v862
  %v1313 = vpack.c.b16 %v865, %v863
  %v1314 = vpack.c.b16 %v868, %v866
  %v1315 = vpack.c.b16 %v869, %v867
  %v1316 = vpack.c.b16 %v872, %v870
  %v1317 = vpack.c.b16 %v873, %v871
  %v1318 = vpack.c.b16 %v876, %v874
  %v1319 = vpack.c.b16 %v877, %v875
  %v1320 = vpack.c.b16 %v880, %v878
  %v1321 = vpack.c.b16 %v881, %v879
  %v1322 = vpack.c.b16 %v884, %v882
  %v1323 = vpack.c.b16 %v885, %v883
  %v1324 = vpack.c.b16 %v888, %v886
  %v1325 = vpack.c.b16 %v889, %v887
  %v1326 = vpack.c.b16 %v892, %v890
  %v1327 = vpack.c.b16 %v893, %v891
  %v1328 = vpack.c.b16 %v896, %v894
  %v1329 = vpack.c.b16 %v897, %v895
  %v1330 = vpack.c.b16 %v900, %v898
  %v1331 = vpack.c.b16 %v901, %v899
  %v1332 = vpack.c.b16 %v904, %v902
  %v1333 = vpack.c.b16 %v905, %v903
  %v1334 = vpack.c.b16 %v908, %v906
  %v1335 = vpack.c.b16 %v909, %v907
  %v1336 = vpack.c.b16 %v912, %v910
  %v1337 = vpack.c.b16 %v913, %v911
  %v1338 = vpack.c.b16 %v916, %v914
  %v1339 = vpack.c.b16 %v917, %v915
  %v1340 = vpack.c.b16 %v920, %v918
  %v1341 = vpack.c.b16 %v921, %v919
  %v1342 = vpack.c.b16 %v924, %v922
  %v1343 = vpack.c.b16 %v925, %v923
  %v1344 = vpack.c.b16 %v928, %v926
  %v1345 = vpack.c.b16 %v929, %v927
  %v1346 = vpack.c.b16 %v932, %v930
  %v1347 = vpack.c.b16 %v933, %v931
  %v1348 = vpack.c.b16 %v936, %v934
  %v1349 = vpack.c.b16 %v937, %v935
  %v1350 = vpack.c.b16 %v940, %v938
  %v1351 = vpack.c.b16 %v941, %v939
  %v1352 = vpack.c.b16 %v944, %v942
  %v1353 = vpack.c.b16 %v945, %v943
  %v1354 = vpack.c.b16 %v948, %v946
  %v1355 = vpack.c.b16 %v949, %v947
  %v1356 = vpack.c.b16 %v952, %v950
  %v1357 = vpack.c.b16 %v953, %v951
  %v1358 = vpack.c.b16 %v956, %v954
  %v1359 = vpack.c.b16 %v957, %v955
  %v1360 = vpack.c.b16 %v960, %v958
  %v1361 = vpack.c.b16 %v961, %v959
  %v1362 = vpack.c.b16 %v964, %v962
  %v1363 = vpack.c.b16 %v965, %v963
  %v1364 = vpack.c.b16 %v968, %v966
  %v1365 = vpack.c.b16 %v969, %v967
  %v1366 = vpack.c.b16 %v972, %v970
  %v1367 = vpack.c.b16 %v973, %v971
  %v1368 = vpack.c.b16 %v976, %v974
  %v1369 = vpack.c.b16 %v977, %v975
  %v1370 = vpack.c.b16 %v980, %v978
  %v1371 = vpack.c.b16 %v981, %v979
  %v1372 = vpack.c.b16 %v984, %v982
  %v1373 = vpack.c.b16 %v985, %v983
  %v1374 = vpack.c.b16 %v988, %v986
  %v1375 = vpack.c.b16 %v989, %v987
  %v1376 = vpack.c.b16 %v992, %v990
  %v1377 = vpack.c.b16 %v993, %v991
  %v1378 = vpack.c.b16 %v996, %v994
  %v1379 = vpack.c.b16 %v997, %v995
  %v1380 = vpack.c.b16 %v1000, %v998
  %v1381 = vpack.c.b16 %v1001, %v999
  %v1382 = vpack.c.b16 %v1004, %v1002
  %v1383 = vpack.c.b16 %v1005, %v1003
  %v1384 = vpack.c.b16 %v1008, %v1006
  %v1385 = vpack.c.b16 %v1009, %v1007
  %v1386 = vpack.c.b16 %v1012, %v1010
  %v1387 = vpack.c.b16 %v1013, %v1011
  %v1388 = vpack.c.b16 %v1016, %v1014
  %v1389 = vpack.c.b16 %v1017, %v1015
  %v1390 = vpack.c.b16 %v1020, %v1018
  %v1391 = vpack.c.b16 %v1021, %v1019
  %v1392 = vpack.c.b16 %v1024, %v1022
  %v1393 = vpack.c.b16 %v1025, %v1023
  %v1394 = vpack.c.b16 %v1028, %v1026
  %v1395 = vpack.c.b16 %v1029, %v1027
  %v1396 = vpack.c.b16 %v1032, %v1030
  %v1397 = vpack.c.b16 %v1033, %v1031
  %v1398 = vpack.c.b16 %v1036, %v1034
  %v1399 = vpack.c.b16 %v1037, %v1035
  %v1400 = vpack.c.b16 %v1040, %v1038
  %v1401 = vpack.c.b16 %v1041, %v1039
  %v1402 = vpack.c.b16 %v1044, %v1042
  %v1403 = vpack.c.b16 %v1045, %v1043
  %v1404 = vpack.c.b16 %v1048, %v1046
  %v1405 = vpack.c.b16 %v1049, %v1047
  %v1406 = vpack.c.b16 %v1052, %v1050
  %v1407 = vpack.c.b16 %v1053, %v1051
  %v1408 = vpack.c.b16 %v1056, %v1054
  %v1409 = vpack.c.b16 %v1057, %v1055
  %v1410 = vpack.c.b16 %v1060, %v1058
  %v1411 = vpack.c.b16 %v1061, %v1059
  %v1412 = vpack.c.b16 %v1064, %v1062
  %v1413 = vpack.c.b16 %v1065, %v1063
  %v1414 = vpack.c.b16 %v1068, %v1066
  %v1415 = vpack.c.b16 %v1069, %v1067
  %v1416 = vpack.c.b16 %v1072, %v1070
  %v1417 = vpack.c.b16 %v1073, %v1071
  %v1418 = vpack.c.b16 %v1076, %v1074
  %v1419 = vpack.c.b16 %v1077, %v1075
  %v1420 = vpack.c.b16 %v1080, %v1078
  %v1421 = vpack.c.b16 %v1081, %v1079
  %v1422 = vpack.c.b16 %v1084, %v1082
  %v1423 = vpack.c.b16 %v1085, %v1083
  %v1424 = vpack.c.b16 %v1088, %v1086
  %v1425 = vpack.c.b16 %v1089, %v1087
  %v1426 = vpack.c.b16 %v1092, %v1090
  %v1427 = vpack.c.b16 %v1093, %v1091
  %v1428 = vpack.c.b16 %v1096, %v1094
  %v1429 = vpack.c.b16 %v1097, %v1095
  %v1430 = vpack.c.b16 %v1100, %v1098
  %v1431 = vpack.c.b16 %v1101, %v1099
  %v1432 = vpack.c.b16 %v1104, %v1102
  %v1433 = vpack.c.b16 %v1105, %v1103
  %v1434 = vpack.c.b16 %v1108, %v1106
  %v1435 = vpack.c.b16 %v1109, %v1107
  %v1436 = vpack.c.b16 %v1112, %v1110
  %v1437 = vpack.c.b16 %v1113, %v1111
  %v1438 = vpack.c.b16 %v1116, %v1114
  %v1439 = vpack.c.b16 %v1117, %v1115
  %v1440 = vpack.c.b16 %v1120, %v1118
  %v1441 = vpack.c.b16 %v1121, %v1119
  %v1442 = vpack.c.b16 %v1124, %v1122
  %v1443 = vpack.c.b16 %v1125, %v1123
  %v1444 = vpack.c.b16 %v1128, %v1126
  %v1445 = vpack.c.b16 %v1129, %v1127
  %v1446 = vpack.c.b16 %v1132, %v1130
  %v1447 = vpack.c.b16 %v1133, %v1131
  %v1448 = vpack.c.b16 %v1136, %v1134
  %v1449 = vpack.c.b16 %v1137, %v1135
  %v1450 = vpack.c.b16 %v1140, %v1138
  %v1451 = vpack.c.b16 %v1141, %v1139
  %v1452 = vpack.c.b16 %v1144, %v1142
  %v1453 = vpack.c.b16 %v1145, %v1143
  %v1454 = vpack.c.b16 %v1148, %v1146
  %v1455 = vpack.c.b16 %v1149, %v1147
  %v1456 = vpack.c.b16 %v1152, %v1150
  %v1457 = vpack.c.b16 %v1153, %v1151
  %v1458 = vpack.c.b16 %v1156, %v1154
  %v1459 = vpack.c.b16 %v1157, %v1155
  %v1460 = vpack.c.b16 %v1160, %v1158
  %v1461 = vpack.c.b16 %v1161, %v1159
  %v1462 = vpack.c.b16 %v1164, %v1162
  %v1463 = vpack.c.b16 %v1165, %v1163
  %v1464 = vpack.c.b16 %v1168, %v1166
  %v1465 = vpack.c.b16 %v1169, %v1167
  %v1466 = vpack.c.b16 %v1172, %v1170
  %v1467 = vpack.c.b16 %v1173, %v1171
  %v1468 = vpack.c.b16 %v1176, %v1174
  %v1469 = vpack.c.b16 %v1177, %v1175
  %v1470 = vpack.c.b16 %v1180, %v1178
  %v1471 = vpack.c.b16 %v1181, %v1179
  %v1472 = vpack.c.b16 %v1184, %v1182
  %v1473 = vpack.c.b16 %v1185, %v1183
  %v1474 = vpack.c.b16 %v1188, %v1186
  %v1475 = vpack.c.b16 %v1189, %v1187
  %v1476 = vpack.c.b16 %v1192, %v1190
  %v1477 = vpack.c.b16 %v1193, %v1191
  %v1478 = vpack.c.b16 %v1196, %v1194
  %v1479 = vpack.c.b16 %v1197, %v1195
  %v1480 = vpack.c.b16 %v1200, %v1198
  %v1481 = vpack.c.b16 %v1201, %v1199
  %v1482 = vpack.c.b16 %v1204, %v1202
  %v1483 = vpack.c.b16 %v1205, %v1203
  %v1484 = vpack.c.b16 %v1208, %v1206
  %v1485 = vpack.c.b16 %v1209, %v1207
  %v1486 = vpack.c.b16 %v1212, %v1210
  %v1487 = vpack.c.b16 %v1213, %v1211
  %v1488 = vpack.c.b16 %v1216, %v1214
  %v1489 = vpack.c.b16 %v1217, %v1215
  %v1490 = vpack.c.b16 %v1220, %v1218
  %v1491 = vpack.c.b16 %v1221, %v1219
  %v1492 = vpack.c.b16 %v1224, %v1222
  %v1493 = vpack.c.b16 %v1225, %v1223
  %v1494 = vpack.c.b16 %v1228, %v1226
  %v1495 = vpack.c.b16 %v1229, %v1227
  %v1496 = vpack.c.b16 %v1232, %v1230
  %v1497 = vpack.c.b16 %v1233, %v1231
  %v1498 = vpack.c.b16 %v1236, %v1234
  %v1499 = vpack.c.b16 %v1237, %v1235
  %v1500 = vpack.c.b16 %v1240, %v1238
  %v1501 = vpack.c.b16 %v1241, %v1239
  %v1502 = vpack.c.b16 %v1244, %v1242
  %v1503 = vpack.c.b16 %v1245, %v1243
  %v1504 = vpack.c.b16 %v1248, %v1246
  %v1505 = vpack.c.b16 %v1249, %v1247
  %1762 = vmatprep.subr.bf16.mxu0 %v1251
  %1763 = vmatpush1.bf16.msra.mxu0 %v1250
  %1764 = vmatprep.subr.bf16.mxu0 %v1253
  %1765 = vmatpush1.bf16.msra.mxu0 %v1252
  %1766 = vmatprep.subr.bf16.mxu0 %v1255
  %1767 = vmatpush1.bf16.msra.mxu0 %v1254
  %1768 = vmatprep.subr.bf16.mxu0 %v1257
  %1769 = vmatpush1.bf16.msra.mxu0 %v1256
  %1770 = vmatprep.subr.bf16.mxu0 %v1259
  %1771 = vmatpush1.bf16.msra.mxu0 %v1258
  %1772 = vmatprep.subr.bf16.mxu0 %v1261
  %1773 = vmatpush1.bf16.msra.mxu0 %v1260
  %1774 = vmatprep.subr.bf16.mxu0 %v1263
  %1775 = vmatpush1.bf16.msra.mxu0 %v1262
  %1776 = vmatprep.subr.bf16.mxu0 %v1265
  %1777 = vmatpush1.bf16.msra.mxu0 %v1264
  %1778 = vmatprep.subr.bf16.mxu0 %v1267
  %1779 = vmatpush1.bf16.msra.mxu0 %v1266
  %1780 = vmatprep.subr.bf16.mxu0 %v1269
  %1781 = vmatpush1.bf16.msra.mxu0 %v1268
  %1782 = vmatprep.subr.bf16.mxu0 %v1271
  %1783 = vmatpush1.bf16.msra.mxu0 %v1270
  %1784 = vmatprep.subr.bf16.mxu0 %v1273
  %1785 = vmatpush1.bf16.msra.mxu0 %v1272
  %1786 = vmatprep.subr.bf16.mxu0 %v1275
  %1787 = vmatpush1.bf16.msra.mxu0 %v1274
  %1788 = vmatprep.subr.bf16.mxu0 %v1277
  %1789 = vmatpush1.bf16.msra.mxu0 %v1276
  %1790 = vmatprep.subr.bf16.mxu0 %v1279
  %1791 = vmatpush1.bf16.msra.mxu0 %v1278
  %1792 = vmatprep.subr.bf16.mxu0 %v1281
  %1793 = vmatpush1.bf16.msra.mxu0 %v1280
  %1794 = vmatprep.mubr.bf16.mxu0 %v419
  %1795 = vmatmul.mubr.bf16.gmra.mrb[0].mxu0 %v418
  %v1796 = vpop.f32.mrb[0].mxu0
  %v1797 = vadd.f32 %v315, %v1796
  %v1798 = vpop.f32.mrb[0].mxu0
  %v1799 = vadd.f32 %v319, %v1798
  %v1800 = vpop.f32.mrb[0].mxu0
  %v1801 = vadd.f32 %v315, %v1800
  %v1802 = vpop.f32.mrb[0].mxu0
  %v1803 = vadd.f32 %v319, %v1802
  %1804 = vmatprep.mubr.bf16.mxu0 %v435
  %1805 = vmatmul.mubr.bf16.gmra.mrb[0].mxu0 %v434
  %v1806 = vpop.f32.mrb[0].mxu0
  %v1807 = vadd.f32 %v315, %v1806
  %v1808 = vpop.f32.mrb[0].mxu0
  %v1809 = vadd.f32 %v319, %v1808
  %v1810 = vpop.f32.mrb[0].mxu0
  %v1811 = vadd.f32 %v315, %v1810
  %v1812 = vpop.f32.mrb[0].mxu0
  %v1813 = vadd.f32 %v319, %v1812
  %1814 = vdwg.mxu0
  %1815 = vmatprep.subr.bf16.mxu0 %v1283
  %1816 = vmatpush1.bf16.msra.mxu0 %v1282
  %1817 = vmatprep.subr.bf16.mxu0 %v1285
  %1818 = vmatpush1.bf16.msra.mxu0 %v1284
  %1819 = vmatprep.subr.bf16.mxu0 %v1287
  %1820 = vmatpush1.bf16.msra.mxu0 %v1286
  %1821 = vmatprep.subr.bf16.mxu0 %v1289
  %1822 = vmatpush1.bf16.msra.mxu0 %v1288
  %1823 = vmatprep.subr.bf16.mxu0 %v1291
  %1824 = vmatpush1.bf16.msra.mxu0 %v1290
  %1825 = vmatprep.subr.bf16.mxu0 %v1293
  %1826 = vmatpush1.bf16.msra.mxu0 %v1292
  %1827 = vmatprep.subr.bf16.mxu0 %v1295
  %1828 = vmatpush1.bf16.msra.mxu0 %v1294
  %1829 = vmatprep.subr.bf16.mxu0 %v1297
  %1830 = vmatpush1.bf16.msra.mxu0 %v1296
  %1831 = vmatprep.subr.bf16.mxu0 %v1299
  %1832 = vmatpush1.bf16.msra.mxu0 %v1298
  %1833 = vmatprep.subr.bf16.mxu0 %v1301
  %1834 = vmatpush1.bf16.msra.mxu0 %v1300
  %1835 = vmatprep.subr.bf16.mxu0 %v1303
  %1836 = vmatpush1.bf16.msra.mxu0 %v1302
  %1837 = vmatprep.subr.bf16.mxu0 %v1305
  %1838 = vmatpush1.bf16.msra.mxu0 %v1304
  %1839 = vmatprep.subr.bf16.mxu0 %v1307
  %1840 = vmatpush1.bf16.msra.mxu0 %v1306
  %1841 = vmatprep.subr.bf16.mxu0 %v1309
  %1842 = vmatpush1.bf16.msra.mxu0 %v1308
  %1843 = vmatprep.subr.bf16.mxu0 %v1311
  %1844 = vmatpush1.bf16.msra.mxu0 %v1310
  %1845 = vmatprep.subr.bf16.mxu0 %v1313
  %1846 = vmatpush1.bf16.msra.mxu0 %v1312
  %1847 = vmatprep.mubr.bf16.mxu0 %v421
  %1848 = vmatmul.mubr.bf16.gmra.mrb[0].mxu0 %v420
  %v1849 = vpop.f32.mrb[0].mxu0
  %v1850 = vadd.f32 %v1797, %v1849
  %v1851 = vpop.f32.mrb[0].mxu0
  %v1852 = vadd.f32 %v1799, %v1851
  %v1853 = vpop.f32.mrb[0].mxu0
  %v1854 = vadd.f32 %v1801, %v1853
  %v1855 = vpop.f32.mrb[0].mxu0
  %v1856 = vadd.f32 %v1803, %v1855
  %1857 = vmatprep.mubr.bf16.mxu0 %v437
  %1858 = vmatmul.mubr.bf16.gmra.mrb[0].mxu0 %v436
  %v1859 = vpop.f32.mrb[0].mxu0
  %v1860 = vadd.f32 %v1807, %v1859
  %v1861 = vpop.f32.mrb[0].mxu0
  %v1862 = vadd.f32 %v1809, %v1861
  %v1863 = vpop.f32.mrb[0].mxu0
  %v1864 = vadd.f32 %v1811, %v1863
  %v1865 = vpop.f32.mrb[0].mxu0
  %v1866 = vadd.f32 %v1813, %v1865
  %1867 = vdwg.mxu0
  %1868 = vmatprep.subr.bf16.mxu0 %v1315
  %1869 = vmatpush1.bf16.msra.mxu0 %v1314
  %1870 = vmatprep.subr.bf16.mxu0 %v1317
  %1871 = vmatpush1.bf16.msra.mxu0 %v1316
  %1872 = vmatprep.subr.bf16.mxu0 %v1319
  %1873 = vmatpush1.bf16.msra.mxu0 %v1318
  %1874 = vmatprep.subr.bf16.mxu0 %v1321
  %1875 = vmatpush1.bf16.msra.mxu0 %v1320
  %1876 = vmatprep.subr.bf16.mxu0 %v1323
  %1877 = vmatpush1.bf16.msra.mxu0 %v1322
  %1878 = vmatprep.subr.bf16.mxu0 %v1325
  %1879 = vmatpush1.bf16.msra.mxu0 %v1324
  %1880 = vmatprep.subr.bf16.mxu0 %v1327
  %1881 = vmatpush1.bf16.msra.mxu0 %v1326
  %1882 = vmatprep.subr.bf16.mxu0 %v1329
  %1883 = vmatpush1.bf16.msra.mxu0 %v1328
  %1884 = vmatprep.subr.bf16.mxu0 %v1331
  %1885 = vmatpush1.bf16.msra.mxu0 %v1330
  %1886 = vmatprep.subr.bf16.mxu0 %v1333
  %1887 = vmatpush1.bf16.msra.mxu0 %v1332
  %1888 = vmatprep.subr.bf16.mxu0 %v1335
  %1889 = vmatpush1.bf16.msra.mxu0 %v1334
  %1890 = vmatprep.subr.bf16.mxu0 %v1337
  %1891 = vmatpush1.bf16.msra.mxu0 %v1336
  %1892 = vmatprep.subr.bf16.mxu0 %v1339
  %1893 = vmatpush1.bf16.msra.mxu0 %v1338
  %1894 = vmatprep.subr.bf16.mxu0 %v1341
  %1895 = vmatpush1.bf16.msra.mxu0 %v1340
  %1896 = vmatprep.subr.bf16.mxu0 %v1343
  %1897 = vmatpush1.bf16.msra.mxu0 %v1342
  %1898 = vmatprep.subr.bf16.mxu0 %v1345
  %1899 = vmatpush1.bf16.msra.mxu0 %v1344
  %1900 = vmatprep.mubr.bf16.mxu0 %v423
  %1901 = vmatmul.mubr.bf16.gmra.mrb[0].mxu0 %v422
  %v1902 = vpop.f32.mrb[0].mxu0
  %v1903 = vadd.f32 %v1850, %v1902
  %v1904 = vpop.f32.mrb[0].mxu0
  %v1905 = vadd.f32 %v1852, %v1904
  %v1906 = vpop.f32.mrb[0].mxu0
  %v1907 = vadd.f32 %v1854, %v1906
  %v1908 = vpop.f32.mrb[0].mxu0
  %v1909 = vadd.f32 %v1856, %v1908
  %1910 = vmatprep.mubr.bf16.mxu0 %v439
  %1911 = vmatmul.mubr.bf16.gmra.mrb[0].mxu0 %v438
  %v1912 = vpop.f32.mrb[0].mxu0
  %v1913 = vadd.f32 %v1860, %v1912
  %v1914 = vpop.f32.mrb[0].mxu0
  %v1915 = vadd.f32 %v1862, %v1914
  %v1916 = vpop.f32.mrb[0].mxu0
  %v1917 = vadd.f32 %v1864, %v1916
  %v1918 = vpop.f32.mrb[0].mxu0
  %v1919 = vadd.f32 %v1866, %v1918
  %1920 = vdwg.mxu0
  %1921 = vmatprep.subr.bf16.mxu0 %v1347
  %1922 = vmatpush1.bf16.msra.mxu0 %v1346
  %1923 = vmatprep.subr.bf16.mxu0 %v1349
  %1924 = vmatpush1.bf16.msra.mxu0 %v1348
  %1925 = vmatprep.subr.bf16.mxu0 %v1351
  %1926 = vmatpush1.bf16.msra.mxu0 %v1350
  %1927 = vmatprep.subr.bf16.mxu0 %v1353
  %1928 = vmatpush1.bf16.msra.mxu0 %v1352
  %1929 = vmatprep.subr.bf16.mxu0 %v1355
  %1930 = vmatpush1.bf16.msra.mxu0 %v1354
  %1931 = vmatprep.subr.bf16.mxu0 %v1357
  %1932 = vmatpush1.bf16.msra.mxu0 %v1356
  %1933 = vmatprep.subr.bf16.mxu0 %v1359
  %1934 = vmatpush1.bf16.msra.mxu0 %v1358
  %1935 = vmatprep.subr.bf16.mxu0 %v1361
  %1936 = vmatpush1.bf16.msra.mxu0 %v1360
  %1937 = vmatprep.subr.bf16.mxu0 %v1363
  %1938 = vmatpush1.bf16.msra.mxu0 %v1362
  %1939 = vmatprep.subr.bf16.mxu0 %v1365
  %1940 = vmatpush1.bf16.msra.mxu0 %v1364
  %1941 = vmatprep.subr.bf16.mxu0 %v1367
  %1942 = vmatpush1.bf16.msra.mxu0 %v1366
  %1943 = vmatprep.subr.bf16.mxu0 %v1369
  %1944 = vmatpush1.bf16.msra.mxu0 %v1368
  %1945 = vmatprep.subr.bf16.mxu0 %v1371
  %1946 = vmatpush1.bf16.msra.mxu0 %v1370
  %1947 = vmatprep.subr.bf16.mxu0 %v1373
  %1948 = vmatpush1.bf16.msra.mxu0 %v1372
  %1949 = vmatprep.subr.bf16.mxu0 %v1375
  %1950 = vmatpush1.bf16.msra.mxu0 %v1374
  %1951 = vmatprep.subr.bf16.mxu0 %v1377
  %1952 = vmatpush1.bf16.msra.mxu0 %v1376
  %1953 = vmatprep.mubr.bf16.mxu0 %v425
  %1954 = vmatmul.mubr.bf16.gmra.mrb[0].mxu0 %v424
  %v1955 = vpop.f32.mrb[0].mxu0
  %v1956 = vadd.f32 %v1903, %v1955
  %v1957 = vpop.f32.mrb[0].mxu0
  %v1958 = vadd.f32 %v1905, %v1957
  %v1959 = vpop.f32.mrb[0].mxu0
  %v1960 = vadd.f32 %v1907, %v1959
  %v1961 = vpop.f32.mrb[0].mxu0
  %v1962 = vadd.f32 %v1909, %v1961
  %1963 = vmatprep.mubr.bf16.mxu0 %v441
  %1964 = vmatmul.mubr.bf16.gmra.mrb[0].mxu0 %v440
  %v1965 = vpop.f32.mrb[0].mxu0
  %v1966 = vadd.f32 %v1913, %v1965
  %v1967 = vpop.f32.mrb[0].mxu0
  %v1968 = vadd.f32 %v1915, %v1967
  %v1969 = vpop.f32.mrb[0].mxu0
  %v1970 = vadd.f32 %v1917, %v1969
  %v1971 = vpop.f32.mrb[0].mxu0
  %v1972 = vadd.f32 %v1919, %v1971
  %1973 = vdwg.mxu0
  %1974 = vmatprep.subr.bf16.mxu0 %v1379
  %1975 = vmatpush1.bf16.msra.mxu0 %v1378
  %1976 = vmatprep.subr.bf16.mxu0 %v1381
  %1977 = vmatpush1.bf16.msra.mxu0 %v1380
  %1978 = vmatprep.subr.bf16.mxu0 %v1383
  %1979 = vmatpush1.bf16.msra.mxu0 %v1382
  %1980 = vmatprep.subr.bf16.mxu0 %v1385
  %1981 = vmatpush1.bf16.msra.mxu0 %v1384
  %1982 = vmatprep.subr.bf16.mxu0 %v1387
  %1983 = vmatpush1.bf16.msra.mxu0 %v1386
  %1984 = vmatprep.subr.bf16.mxu0 %v1389
  %1985 = vmatpush1.bf16.msra.mxu0 %v1388
  %1986 = vmatprep.subr.bf16.mxu0 %v1391
  %1987 = vmatpush1.bf16.msra.mxu0 %v1390
  %1988 = vmatprep.subr.bf16.mxu0 %v1393
  %1989 = vmatpush1.bf16.msra.mxu0 %v1392
  %1990 = vmatprep.subr.bf16.mxu0 %v1395
  %1991 = vmatpush1.bf16.msra.mxu0 %v1394
  %1992 = vmatprep.subr.bf16.mxu0 %v1397
  %1993 = vmatpush1.bf16.msra.mxu0 %v1396
  %1994 = vmatprep.subr.bf16.mxu0 %v1399
  %1995 = vmatpush1.bf16.msra.mxu0 %v1398
  %1996 = vmatprep.subr.bf16.mxu0 %v1401
  %1997 = vmatpush1.bf16.msra.mxu0 %v1400
  %1998 = vmatprep.subr.bf16.mxu0 %v1403
  %1999 = vmatpush1.bf16.msra.mxu0 %v1402
  %2000 = vmatprep.subr.bf16.mxu0 %v1405
  %2001 = vmatpush1.bf16.msra.mxu0 %v1404
  %2002 = vmatprep.subr.bf16.mxu0 %v1407
  %2003 = vmatpush1.bf16.msra.mxu0 %v1406
  %2004 = vmatprep.subr.bf16.mxu0 %v1409
  %2005 = vmatpush1.bf16.msra.mxu0 %v1408
  %2006 = vmatprep.mubr.bf16.mxu0 %v427
  %2007 = vmatmul.mubr.bf16.gmra.mrb[0].mxu0 %v426
  %v2008 = vpop.f32.mrb[0].mxu0
  %v2009 = vadd.f32 %v1956, %v2008
  %v2010 = vpop.f32.mrb[0].mxu0
  %v2011 = vadd.f32 %v1958, %v2010
  %v2012 = vpop.f32.mrb[0].mxu0
  %v2013 = vadd.f32 %v1960, %v2012
  %v2014 = vpop.f32.mrb[0].mxu0
  %v2015 = vadd.f32 %v1962, %v2014
  %2016 = vmatprep.mubr.bf16.mxu0 %v443
  %2017 = vmatmul.mubr.bf16.gmra.mrb[0].mxu0 %v442
  %v2018 = vpop.f32.mrb[0].mxu0
  %v2019 = vadd.f32 %v1966, %v2018
  %v2020 = vpop.f32.mrb[0].mxu0
  %v2021 = vadd.f32 %v1968, %v2020
  %v2022 = vpop.f32.mrb[0].mxu0
  %v2023 = vadd.f32 %v1970, %v2022
  %v2024 = vpop.f32.mrb[0].mxu0
  %v2025 = vadd.f32 %v1972, %v2024
  %2026 = vdwg.mxu0
  %2027 = vmatprep.subr.bf16.mxu0 %v1411
  %2028 = vmatpush1.bf16.msra.mxu0 %v1410
  %2029 = vmatprep.subr.bf16.mxu0 %v1413
  %2030 = vmatpush1.bf16.msra.mxu0 %v1412
  %2031 = vmatprep.subr.bf16.mxu0 %v1415
  %2032 = vmatpush1.bf16.msra.mxu0 %v1414
  %2033 = vmatprep.subr.bf16.mxu0 %v1417
  %2034 = vmatpush1.bf16.msra.mxu0 %v1416
  %2035 = vmatprep.subr.bf16.mxu0 %v1419
  %2036 = vmatpush1.bf16.msra.mxu0 %v1418
  %2037 = vmatprep.subr.bf16.mxu0 %v1421
  %2038 = vmatpush1.bf16.msra.mxu0 %v1420
  %2039 = vmatprep.subr.bf16.mxu0 %v1423
  %2040 = vmatpush1.bf16.msra.mxu0 %v1422
  %2041 = vmatprep.subr.bf16.mxu0 %v1425
  %2042 = vmatpush1.bf16.msra.mxu0 %v1424
  %2043 = vmatprep.subr.bf16.mxu0 %v1427
  %2044 = vmatpush1.bf16.msra.mxu0 %v1426
  %2045 = vmatprep.subr.bf16.mxu0 %v1429
  %2046 = vmatpush1.bf16.msra.mxu0 %v1428
  %2047 = vmatprep.subr.bf16.mxu0 %v1431
  %2048 = vmatpush1.bf16.msra.mxu0 %v1430
  %2049 = vmatprep.subr.bf16.mxu0 %v1433
  %2050 = vmatpush1.bf16.msra.mxu0 %v1432
  %2051 = vmatprep.subr.bf16.mxu0 %v1435
  %2052 = vmatpush1.bf16.msra.mxu0 %v1434
  %2053 = vmatprep.subr.bf16.mxu0 %v1437
  %2054 = vmatpush1.bf16.msra.mxu0 %v1436
  %2055 = vmatprep.subr.bf16.mxu0 %v1439
  %2056 = vmatpush1.bf16.msra.mxu0 %v1438
  %2057 = vmatprep.subr.bf16.mxu0 %v1441
  %2058 = vmatpush1.bf16.msra.mxu0 %v1440
  %2059 = vmatprep.mubr.bf16.mxu0 %v429
  %2060 = vmatmul.mubr.bf16.gmra.mrb[0].mxu0 %v428
  %v2061 = vpop.f32.mrb[0].mxu0
  %v2062 = vadd.f32 %v2009, %v2061
  %v2063 = vpop.f32.mrb[0].mxu0
  %v2064 = vadd.f32 %v2011, %v2063
  %v2065 = vpop.f32.mrb[0].mxu0
  %v2066 = vadd.f32 %v2013, %v2065
  %v2067 = vpop.f32.mrb[0].mxu0
  %v2068 = vadd.f32 %v2015, %v2067
  %2069 = vmatprep.mubr.bf16.mxu0 %v445
  %2070 = vmatmul.mubr.bf16.gmra.mrb[0].mxu0 %v444
  %v2071 = vpop.f32.mrb[0].mxu0
  %v2072 = vadd.f32 %v2019, %v2071
  %v2073 = vpop.f32.mrb[0].mxu0
  %v2074 = vadd.f32 %v2021, %v2073
  %v2075 = vpop.f32.mrb[0].mxu0
  %v2076 = vadd.f32 %v2023, %v2075
  %v2077 = vpop.f32.mrb[0].mxu0
  %v2078 = vadd.f32 %v2025, %v2077
  %2079 = vdwg.mxu0
  %2080 = vmatprep.subr.bf16.mxu0 %v1443
  %2081 = vmatpush1.bf16.msra.mxu0 %v1442
  %2082 = vmatprep.subr.bf16.mxu0 %v1445
  %2083 = vmatpush1.bf16.msra.mxu0 %v1444
  %2084 = vmatprep.subr.bf16.mxu0 %v1447
  %2085 = vmatpush1.bf16.msra.mxu0 %v1446
  %2086 = vmatprep.subr.bf16.mxu0 %v1449
  %2087 = vmatpush1.bf16.msra.mxu0 %v1448
  %2088 = vmatprep.subr.bf16.mxu0 %v1451
  %2089 = vmatpush1.bf16.msra.mxu0 %v1450
  %2090 = vmatprep.subr.bf16.mxu0 %v1453
  %2091 = vmatpush1.bf16.msra.mxu0 %v1452
  %2092 = vmatprep.subr.bf16.mxu0 %v1455
  %2093 = vmatpush1.bf16.msra.mxu0 %v1454
  %2094 = vmatprep.subr.bf16.mxu0 %v1457
  %2095 = vmatpush1.bf16.msra.mxu0 %v1456
  %2096 = vmatprep.subr.bf16.mxu0 %v1459
  %2097 = vmatpush1.bf16.msra.mxu0 %v1458
  %2098 = vmatprep.subr.bf16.mxu0 %v1461
  %2099 = vmatpush1.bf16.msra.mxu0 %v1460
  %2100 = vmatprep.subr.bf16.mxu0 %v1463
  %2101 = vmatpush1.bf16.msra.mxu0 %v1462
  %2102 = vmatprep.subr.bf16.mxu0 %v1465
  %2103 = vmatpush1.bf16.msra.mxu0 %v1464
  %2104 = vmatprep.subr.bf16.mxu0 %v1467
  %2105 = vmatpush1.bf16.msra.mxu0 %v1466
  %2106 = vmatprep.subr.bf16.mxu0 %v1469
  %2107 = vmatpush1.bf16.msra.mxu0 %v1468
  %2108 = vmatprep.subr.bf16.mxu0 %v1471
  %2109 = vmatpush1.bf16.msra.mxu0 %v1470
  %2110 = vmatprep.subr.bf16.mxu0 %v1473
  %2111 = vmatpush1.bf16.msra.mxu0 %v1472
  %2112 = vmatprep.mubr.bf16.mxu0 %v431
  %2113 = vmatmul.mubr.bf16.gmra.mrb[0].mxu0 %v430
  %v2114 = vpop.f32.mrb[0].mxu0
  %v2115 = vadd.f32 %v2062, %v2114
  %v2116 = vpop.f32.mrb[0].mxu0
  %v2117 = vadd.f32 %v2064, %v2116
  %v2118 = vpop.f32.mrb[0].mxu0
  %v2119 = vadd.f32 %v2066, %v2118
  %v2120 = vpop.f32.mrb[0].mxu0
  %v2121 = vadd.f32 %v2068, %v2120
  %2122 = vmatprep.mubr.bf16.mxu0 %v447
  %2123 = vmatmul.mubr.bf16.gmra.mrb[0].mxu0 %v446
  %v2124 = vpop.f32.mrb[0].mxu0
  %v2125 = vadd.f32 %v2072, %v2124
  %v2126 = vpop.f32.mrb[0].mxu0
  %v2127 = vadd.f32 %v2074, %v2126
  %v2128 = vpop.f32.mrb[0].mxu0
  %v2129 = vadd.f32 %v2076, %v2128
  %v2130 = vpop.f32.mrb[0].mxu0
  %v2131 = vadd.f32 %v2078, %v2130
  %2132 = vdwg.mxu0
  %2133 = vmatprep.subr.bf16.mxu0 %v1475
  %2134 = vmatpush1.bf16.msra.mxu0 %v1474
  %2135 = vmatprep.subr.bf16.mxu0 %v1477
  %2136 = vmatpush1.bf16.msra.mxu0 %v1476
  %2137 = vmatprep.subr.bf16.mxu0 %v1479
  %2138 = vmatpush1.bf16.msra.mxu0 %v1478
  %2139 = vmatprep.subr.bf16.mxu0 %v1481
  %2140 = vmatpush1.bf16.msra.mxu0 %v1480
  %2141 = vmatprep.subr.bf16.mxu0 %v1483
  %2142 = vmatpush1.bf16.msra.mxu0 %v1482
  %2143 = vmatprep.subr.bf16.mxu0 %v1485
  %2144 = vmatpush1.bf16.msra.mxu0 %v1484
  %2145 = vmatprep.subr.bf16.mxu0 %v1487
  %2146 = vmatpush1.bf16.msra.mxu0 %v1486
  %2147 = vmatprep.subr.bf16.mxu0 %v1489
  %2148 = vmatpush1.bf16.msra.mxu0 %v1488
  %2149 = vmatprep.subr.bf16.mxu0 %v1491
  %2150 = vmatpush1.bf16.msra.mxu0 %v1490
  %2151 = vmatprep.subr.bf16.mxu0 %v1493
  %2152 = vmatpush1.bf16.msra.mxu0 %v1492
  %2153 = vmatprep.subr.bf16.mxu0 %v1495
  %2154 = vmatpush1.bf16.msra.mxu0 %v1494
  %2155 = vmatprep.subr.bf16.mxu0 %v1497
  %2156 = vmatpush1.bf16.msra.mxu0 %v1496
  %2157 = vmatprep.subr.bf16.mxu0 %v1499
  %2158 = vmatpush1.bf16.msra.mxu0 %v1498
  %2159 = vmatprep.subr.bf16.mxu0 %v1501
  %2160 = vmatpush1.bf16.msra.mxu0 %v1500
  %2161 = vmatprep.subr.bf16.mxu0 %v1503
  %2162 = vmatpush1.bf16.msra.mxu0 %v1502
  %2163 = vmatprep.subr.bf16.mxu0 %v1505
  %2164 = vmatpush1.bf16.msra.mxu0 %v1504
  %2165 = vmatprep.mubr.bf16.mxu0 %v433
  %2166 = vmatmul.mubr.bf16.gmra.mrb[0].mxu0 %v432
  %v2167 = vpop.f32.mrb[0].mxu0
  %v2168 = vadd.f32 %v2115, %v2167
  %v2169 = vpop.f32.mrb[0].mxu0
  %v2170 = vadd.f32 %v2117, %v2169
  %v2171 = vpop.f32.mrb[0].mxu0
  %v2172 = vadd.f32 %v2119, %v2171
  %v2173 = vpop.f32.mrb[0].mxu0
  %v2174 = vadd.f32 %v2121, %v2173
  %2175 = vmatprep.mubr.bf16.mxu0 %v449
  %2176 = vmatmul.mubr.bf16.gmra.mrb[0].mxu0 %v448
  %v2177 = vpop.f32.mrb[0].mxu0
  %v2178 = vadd.f32 %v2125, %v2177
  %v2179 = vpop.f32.mrb[0].mxu0
  %v2180 = vadd.f32 %v2127, %v2179
  %v2181 = vpop.f32.mrb[0].mxu0
  %v2182 = vadd.f32 %v2129, %v2181
  %v2183 = vpop.f32.mrb[0].mxu0
  %v2184 = vadd.f32 %v2131, %v2183
  %2185 = vdwg.mxu0
  %vm2186 = vcmp.gt.f32.partialorder %v2168, 0.0
  %vm2187 = vcmp.gt.f32.partialorder %v2170, 0.0
  %vm2188 = vcmp.gt.f32.partialorder %v2172, 0.0
  %vm2189 = vcmp.gt.f32.partialorder %v2174, 0.0
  %vm2190 = vcmp.gt.f32.partialorder %v2178, 0.0
  %vm2191 = vcmp.gt.f32.partialorder %v2180, 0.0
  %vm2192 = vcmp.gt.f32.partialorder %v2182, 0.0
  %vm2193 = vcmp.gt.f32.partialorder %v2184, 0.0
  %v2194 = vmul.f32 %v2168, 1.442695
  %v2195 = vpow.pop %v2194
  %v2196 = vmul.f32 %v2170, 1.442695
  %v2197 = vpow.pop %v2196
  %v2198 = vmul.f32 %v2172, 1.442695
  %v2199 = vpow.pop %v2198
  %v2200 = vmul.f32 %v2174, 1.442695
  %v2201 = vpow.pop %v2200
  %v2202 = vmul.f32 %v2178, 1.442695
  %v2203 = vpow.pop %v2202
  %v2204 = vmul.f32 %v2180, 1.442695
  %v2205 = vpow.pop %v2204
  %v2206 = vmul.f32 %v2182, 1.442695
  %v2207 = vpow.pop %v2206
  %v2208 = vmul.f32 %v2184, 1.442695
  %v2209 = vpow.pop %v2208
  %v2210 = vsub.f32 %v2195, 1.0
  %v2211 = vsub.f32 %v2197, 1.0
  %v2212 = vsub.f32 %v2199, 1.0
  %v2213 = vsub.f32 %v2201, 1.0
  %v2214 = vsub.f32 %v2203, 1.0
  %v2215 = vsub.f32 %v2205, 1.0
  %v2216 = vsub.f32 %v2207, 1.0
  %v2217 = vsub.f32 %v2209, 1.0
  %v2218 = vsel %vm2186, %v2168, %v2210
  %v2219 = vsel %vm2187, %v2170, %v2211
  %v2220 = vsel %vm2188, %v2172, %v2212
  %v2221 = vsel %vm2189, %v2174, %v2213
  %v2222 = vsel %vm2190, %v2178, %v2214
  %v2223 = vsel %vm2191, %v2180, %v2215
  %v2224 = vsel %vm2192, %v2182, %v2216
  %v2225 = vsel %vm2193, %v2184, %v2217
  %v2226 = vld [vmem:[%s3] sm:$0xff]
  %v2227 = vld [vmem:[%s3 + $0x8] sm:$0xff]
  %v2228 = vld [vmem:[%s3 + $0x10] sm:$0xff]
  %v2229 = vld [vmem:[%s3 + $0x18] sm:$0xff]
  %v2230 = vmul.f32 %v2218, %v2226
  %v2231 = vmul.f32 %v2219, %v2227
  %v2232 = vmul.f32 %v2220, %v2228
  %v2233 = vmul.f32 %v2221, %v2229
  %v2234 = vmul.f32 %v2222, %v2226
  %v2235 = vmul.f32 %v2223, %v2227
  %v2236 = vmul.f32 %v2224, %v2228
  %v2237 = vmul.f32 %v2225, %v2229
  %v2238 = vadd.f32 %v2230, %v2231
  %2239 = vadd.xlane.f32.xlu0 %v2238
  %v2240 = vpop.xlane.xlu0 %2239
  %v2241 = vadd.f32 %v2232, %v2233
  %2242 = vadd.xlane.f32.xlu0 %v2241
  %v2243 = vpop.xlane.xlu0 %2242
  %v2244 = vadd.f32 %v2234, %v2235
  %2245 = vadd.xlane.f32.xlu0 %v2244
  %v2246 = vpop.xlane.xlu0 %2245
  %v2247 = vadd.f32 %v2236, %v2237
  %2248 = vadd.xlane.f32.xlu0 %v2247
  %v2249 = vpop.xlane.xlu0 %2248
  %v2254 = vlaneseq
  %v2255 = vand.u32 %v2254, 127
  %v2256 = vlaneseq
  %v2257 = vshrl.u32 %v2256, 7
  %v2258 = vsub.s32 %v2255, %v2257
  %v2259 = vrot.slane %v2240, %v2258
  %v2260 = vadd.s32 %v2255, 4294967288
  %v2261 = vlaneseq
  %v2262 = vshrl.u32 %v2261, 7
  %v2263 = vsub.s32 %v2260, %v2262
  %v2264 = vrot.slane %v2243, %v2263
  %vm2265 = vcmask 130112
  %v2266 = vsel %vm2265, %v2264, %v2259
  %v2267 = vlaneseq
  %v2268 = vshrl.u32 %v2267, 7
  %v2269 = vsub.s32 %v2255, %v2268
  %v2270 = vrot.slane %v2246, %v2269
  %v2271 = vlaneseq
  %v2272 = vshrl.u32 %v2271, 7
  %v2273 = vsub.s32 %v2260, %v2272
  %v2274 = vrot.slane %v2249, %v2273
  %v2275 = vsel %vm2265, %v2274, %v2270
  %vm2276 = vcmask 1041409
  %v2277 = vsel %vm2276, %v2275, %v2266
  %vm2279 = vcmask 123904
  %v2280 = vsel %vm2279, %v2277, 0.0
  %2281 = vadd.xlane.f32.xlu0 %v2280
  %v2282 = vpop.xlane.xlu0 %2281
  %v2283 = vld [vmem:[#allocation2] sm:$0x1]
  %v2285 = vlaneseq
  %v2286 = vshrl.u32 %v2285, 7
  %v2287 = vsub.s32 0, %v2286
  %v2288 = vrot.slane %v2283, %v2287
  %v2290 = vadd.f32 %v2282, %v2288
  %vm2291 = vcmask 1024
  %2292 = vst.msk [vmem:[%s5] sm:$0x3] %vm2291, %v2290
  // Predicated region
  $region22: #{discriminator_forward.5} parent=0 // pred_check
    _
  $region23: #{discriminator_forward.5} parent=0 // pred_check_branch
    %2294 = sbr.rel (0) target = $region25
  $region24: #{discriminator_forward.5} parent=0 // pred_region
    _
  $region25: #{discriminator_forward.5} parent=0 // pred_fallthru
    _
  // Predicated region
  $region26: #{discriminator_forward.5} parent=0 // pred_check
    _
  $region27: #{discriminator_forward.5} parent=0 // pred_check_branch
    %2296 = sbr.rel (0) target = $region29
  $region28: #{discriminator_forward.5} parent=0 // pred_region
    _
  $region29: #{discriminator_forward.5} parent=0 // pred_fallthru
    _

</llo_original>
